<compile_context>
chip_gen: v6e
topology: v6e:2x2x1
jax: 0.10.0
libtpu: 0.0.40
codegen_flags: <defaults>
</compile_context>

<pallas_src>
import numpy as np
import jax
import jax.numpy as jnp
from jax.experimental import pallas as pl
from jax.experimental.pallas import tpu as pltpu


def prepare_cam_params(conv_w, conv_b, fc_w, fc_b, *, batch, height, width):
    """One-time prep of kernel-ready constants (outside the per-call hot path)."""
    Cout, Cin, K, K2 = conv_w.shape
    assert K == K2 and K % 2 == 1
    pad = K // 2
    HW = height * width
    KK = K * K
    A = fc_w.shape[1]
    assert fc_w.shape[0] == Cout * HW
    assert HW % 128 == 0, "lane layout assumes H*W is a multiple of 128"

    # Conv weight per tap: w_taps[t, co, ci] = conv_w[co, ci, dh, dw], t = dh*K+dw.
    w_taps = jnp.transpose(conv_w, (2, 3, 0, 1)).reshape(KK, Cout, Cin)
    bc = conv_b.reshape(Cout, 1)

    # FC weight with the reference flattening (feature index co*HW + p).
    fw3 = fc_w.reshape(Cout, HW, A)          # fw3[co, p, a]
    fb2 = fc_b.reshape(1, A)

    # Per-tap lane shifts + validity masks (zero-padding semantics).  Masks are
    # pre-broadcast over Cin and tiled over the batch (batch lives on lanes).
    r = np.arange(HW) // width
    c = np.arange(HW) % width
    L = batch * HW
    shifts, mask_rows = [], []
    for dh in range(K):
        for dw in range(K):
            off = (dh - pad) * width + (dw - pad)
            shifts.append(int((-off) % L))                     # roll amount
            rr = r + (dh - pad)
            cc = c + (dw - pad)
            m = ((rr >= 0) & (rr < height) & (cc >= 0) & (cc < width))
            m = np.tile(m.astype(np.float32), batch)           # (N*HW,)
            mask_rows.append(np.broadcast_to(m, (Cin, L)))     # (Cin, N*HW)
    masks = jnp.asarray(np.stack(mask_rows, axis=0))           # (KK, Cin, N*HW)

    dims = dict(N=batch, Cin=Cin, Cout=Cout, H=height, W=width, K=K, A=A)
    return dict(w_taps=w_taps, bc=bc, fw3=fw3, fb2=fb2, masks=masks,
                shifts=tuple(shifts), dims=dims)


def _make_kernel(dims, shifts):
    N, Cin, Cout = dims["N"], dims["Cin"], dims["Cout"]
    H, W, K, A = dims["H"], dims["W"], dims["K"], dims["A"]
    HW = H * W
    KK = K * K

    def kernel(x_ref, w_ref, bc_ref, mk_ref, fw_ref, fb_ref, o_ref):
        # Batch on lanes: (Cin, N*HW).  HW is a multiple of 128, so the concat
        # offsets are vreg-aligned.
        if N == 1:
            x_wide = x_ref[0]
        else:
            x_wide = jnp.concatenate([x_ref[n] for n in range(N)], axis=1)

        # Conv + bias + ReLU.  Each tap: one XLU roll + one precomputed-mask
        # multiply + one small MXU matmul accumulated in f32.  Image-boundary
        # and sample-boundary wraparound are both zeroed by the masks.
        conv = None
        for t in range(KK):
            s = shifts[t]
            tap = x_wide if s == 0 else pltpu.roll(x_wide, shift=s, axis=1)
            tap = tap * mk_ref[t]                               # (Cin, N*HW)
            part = jnp.dot(w_ref[t], tap,
                           preferred_element_type=jnp.float32)  # (Cout, N*HW)
            conv = part if conv is None else conv + part
        act = jnp.maximum(conv + bc_ref[...], 0.0)              # (Cout, N*HW)

        # FC head on the MXU: per sample (256-aligned lane slice), accumulate
        # Cout tiny (1,HW)x(HW,A) matmuls; emit (N, A) directly as row stores.
        for n in range(N):
            a_n = act[:, n * HW:(n + 1) * HW]                   # (Cout, HW)
            acc = fb_ref[...]                                   # (1, A)
            for co in range(Cout):
                acc = acc + jnp.dot(a_n[co:co + 1, :], fw_ref[co],
                                    preferred_element_type=jnp.float32)
            o_ref[n:n + 1, :] = acc.astype(o_ref.dtype)

    return kernel


def make_cam_forward(params):
    """Build the jitted forward; all prep arrays are bound once here."""
    dims = params["dims"]
    N, Cin, H, W, A = dims["N"], dims["Cin"], dims["H"], dims["W"], dims["A"]
    HW = H * W
    kernel = _make_kernel(dims, params["shifts"])

    w_taps, bc, fw3 = params["w_taps"], params["bc"], params["fw3"]
    fb2, masks = params["fb2"], params["masks"]

    call = pl.pallas_call(
        kernel,
        out_shape=jax.ShapeDtypeStruct((N, A), jnp.float32),
        in_specs=[
            pl.BlockSpec((N, Cin, HW), lambda: (0, 0, 0)),
            pl.BlockSpec(w_taps.shape, lambda: (0, 0, 0)),
            pl.BlockSpec(bc.shape, lambda: (0, 0)),
            pl.BlockSpec(masks.shape, lambda: (0, 0, 0)),
            pl.BlockSpec(fw3.shape, lambda: (0, 0, 0)),
            pl.BlockSpec(fb2.shape, lambda: (0, 0)),
        ],
        out_specs=pl.BlockSpec((N, A), lambda: (0, 0)),
    )

    @jax.jit
    def forward(x):
        if x.ndim == 3:                        # CAM_wrapper: x.unsqueeze(0)
            x = x[None]
        if x.shape != (N, Cin, H, W):
            raise ValueError(f"expected {(N, Cin, H, W)}, got {x.shape}")
        x3 = x.reshape(N, Cin, HW)             # free reshape, no transpose
        return call(x3, w_taps, bc, masks, fw3, fb2)

    return forward


if __name__ == "__main__":
    N, Cin, H, W = 2, 4, 16, 16
    Cout, K = 8, 3
    n_actions = 6
    F = Cout * H * W

    key = jax.random.PRNGKey(0)
    k_x, k_cw, k_cb, k_fw, k_fb = jax.random.split(key, 5)

    x = jax.random.normal(k_x, (N, Cin, H, W), jnp.float32)
    conv_w = 0.1 * jax.random.normal(k_cw, (Cout, Cin, K, K), jnp.float32)
    conv_b = 0.1 * jax.random.normal(k_cb, (Cout,), jnp.float32)
    fc_w = 0.05 * jax.random.normal(k_fw, (F, n_actions), jnp.float32)
    fc_b = 0.05 * jax.random.normal(k_fb, (n_actions,), jnp.float32)

    params = prepare_cam_params(conv_w, conv_b, fc_w, fc_b,
                                batch=N, height=H, width=W)
    cam_forward = make_cam_forward(params)

    logits = jax.block_until_ready(cam_forward(x))

    # Pure-JAX reference (same semantics as the PyTorch module).
    ref_feat = jax.lax.conv_general_dilated(
        x, conv_w, window_strides=(1, 1), padding="SAME",
        dimension_numbers=("NCHW", "OIHW", "NCHW"))
    ref_feat = jnp.maximum(ref_feat + conv_b.reshape(1, Cout, 1, 1), 0.0)
    ref_logits = ref_feat.reshape(N, -1) @ fc_w + fc_b

    assert logits.shape == (N, n_actions)
    assert jnp.allclose(logits, ref_logits, rtol=1e-4, atol=1e-4)
    print("KERNEL_OK")
</pallas_src>

<mosaic_0001>
module attributes {stable_mosaic.version = 11 : i64} {
  func.func @kernel(%arg0: memref<2x4x256xf32, #tpu.memory_space<vmem>>, %arg1: memref<9x8x4xf32, #tpu.memory_space<vmem>>, %arg2: memref<8x1xf32, #tpu.memory_space<vmem>>, %arg3: memref<9x4x512xf32, #tpu.memory_space<vmem>>, %arg4: memref<8x256x6xf32, #tpu.memory_space<vmem>>, %arg5: memref<1x6xf32, #tpu.memory_space<vmem>>, %arg6: memref<2x6xf32, #tpu.memory_space<vmem>>) attributes {dimension_semantics = [], scalar_prefetch = 0 : i64, scratch_operands = 0 : i64, tpu.core_type = #tpu.core_type<tc>} {
    %c0 = arith.constant 0 : index
    %c0_0 = arith.constant 0 : index
    %c0_1 = arith.constant 0 : index
    %0 = vector.load %arg0[%c0, %c0_0, %c0_1] : memref<2x4x256xf32, #tpu.memory_space<vmem>>, vector<1x4x256xf32>
    %1 = vector.shape_cast %0 : vector<1x4x256xf32> to vector<4x256xf32>
    %c1 = arith.constant 1 : index
    %c0_2 = arith.constant 0 : index
    %c0_3 = arith.constant 0 : index
    %2 = vector.load %arg0[%c1, %c0_2, %c0_3] : memref<2x4x256xf32, #tpu.memory_space<vmem>>, vector<1x4x256xf32>
    %3 = vector.shape_cast %2 : vector<1x4x256xf32> to vector<4x256xf32>
    %4 = tpu.concatenate %1, %3 in 1 : vector<4x256xf32>, vector<4x256xf32> -> vector<4x512xf32>
    %c17_i32 = arith.constant 17 : i32
    %5 = tpu.dynamic_rotate %4 by %c17_i32 dim 1 : vector<4x512xf32>, i32 -> vector<4x512xf32>
    %c0_4 = arith.constant 0 : index
    %c0_5 = arith.constant 0 : index
    %c0_6 = arith.constant 0 : index
    %6 = vector.load %arg3[%c0_4, %c0_5, %c0_6] : memref<9x4x512xf32, #tpu.memory_space<vmem>>, vector<1x4x512xf32>
    %7 = vector.shape_cast %6 : vector<1x4x512xf32> to vector<4x512xf32>
    %8 = arith.mulf %5, %7 : vector<4x512xf32>
    %c0_7 = arith.constant 0 : index
    %c0_8 = arith.constant 0 : index
    %c0_9 = arith.constant 0 : index
    %9 = vector.load %arg1[%c0_7, %c0_8, %c0_9] : memref<9x8x4xf32, #tpu.memory_space<vmem>>, vector<1x8x4xf32>
    %10 = vector.shape_cast %9 : vector<1x8x4xf32> to vector<8x4xf32>
    %cst = arith.constant dense<0.000000e+00> : vector<8x512xf32>
    %11 = tpu.matmul %10, %8, %cst {dimension_numbers = #tpu.dot_dimension_numbers<[1], [0], [0], [1], [0, 0, 1, 1], [], []>} : vector<8x4xf32>, vector<4x512xf32>, vector<8x512xf32> -> vector<8x512xf32>
    %c16_i32 = arith.constant 16 : i32
    %12 = tpu.dynamic_rotate %4 by %c16_i32 dim 1 : vector<4x512xf32>, i32 -> vector<4x512xf32>
    %c1_10 = arith.constant 1 : index
    %c0_11 = arith.constant 0 : index
    %c0_12 = arith.constant 0 : index
    %13 = vector.load %arg3[%c1_10, %c0_11, %c0_12] : memref<9x4x512xf32, #tpu.memory_space<vmem>>, vector<1x4x512xf32>
    %14 = vector.shape_cast %13 : vector<1x4x512xf32> to vector<4x512xf32>
    %15 = arith.mulf %12, %14 : vector<4x512xf32>
    %c1_13 = arith.constant 1 : index
    %c0_14 = arith.constant 0 : index
    %c0_15 = arith.constant 0 : index
    %16 = vector.load %arg1[%c1_13, %c0_14, %c0_15] : memref<9x8x4xf32, #tpu.memory_space<vmem>>, vector<1x8x4xf32>
    %17 = vector.shape_cast %16 : vector<1x8x4xf32> to vector<8x4xf32>
    %cst_16 = arith.constant dense<0.000000e+00> : vector<8x512xf32>
    %18 = tpu.matmul %17, %15, %cst_16 {dimension_numbers = #tpu.dot_dimension_numbers<[1], [0], [0], [1], [0, 0, 1, 1], [], []>} : vector<8x4xf32>, vector<4x512xf32>, vector<8x512xf32> -> vector<8x512xf32>
    %19 = arith.addf %11, %18 : vector<8x512xf32>
    %c15_i32 = arith.constant 15 : i32
    %20 = tpu.dynamic_rotate %4 by %c15_i32 dim 1 : vector<4x512xf32>, i32 -> vector<4x512xf32>
    %c2 = arith.constant 2 : index
    %c0_17 = arith.constant 0 : index
    %c0_18 = arith.constant 0 : index
    %21 = vector.load %arg3[%c2, %c0_17, %c0_18] : memref<9x4x512xf32, #tpu.memory_space<vmem>>, vector<1x4x512xf32>
    %22 = vector.shape_cast %21 : vector<1x4x512xf32> to vector<4x512xf32>
    %23 = arith.mulf %20, %22 : vector<4x512xf32>
    %c2_19 = arith.constant 2 : index
    %c0_20 = arith.constant 0 : index
    %c0_21 = arith.constant 0 : index
    %24 = vector.load %arg1[%c2_19, %c0_20, %c0_21] : memref<9x8x4xf32, #tpu.memory_space<vmem>>, vector<1x8x4xf32>
    %25 = vector.shape_cast %24 : vector<1x8x4xf32> to vector<8x4xf32>
    %cst_22 = arith.constant dense<0.000000e+00> : vector<8x512xf32>
    %26 = tpu.matmul %25, %23, %cst_22 {dimension_numbers = #tpu.dot_dimension_numbers<[1], [0], [0], [1], [0, 0, 1, 1], [], []>} : vector<8x4xf32>, vector<4x512xf32>, vector<8x512xf32> -> vector<8x512xf32>
    %27 = arith.addf %19, %26 : vector<8x512xf32>
    %c1_i32 = arith.constant 1 : i32
    %28 = tpu.dynamic_rotate %4 by %c1_i32 dim 1 : vector<4x512xf32>, i32 -> vector<4x512xf32>
    %c3 = arith.constant 3 : index
    %c0_23 = arith.constant 0 : index
    %c0_24 = arith.constant 0 : index
    %29 = vector.load %arg3[%c3, %c0_23, %c0_24] : memref<9x4x512xf32, #tpu.memory_space<vmem>>, vector<1x4x512xf32>
    %30 = vector.shape_cast %29 : vector<1x4x512xf32> to vector<4x512xf32>
    %31 = arith.mulf %28, %30 : vector<4x512xf32>
    %c3_25 = arith.constant 3 : index
    %c0_26 = arith.constant 0 : index
    %c0_27 = arith.constant 0 : index
    %32 = vector.load %arg1[%c3_25, %c0_26, %c0_27] : memref<9x8x4xf32, #tpu.memory_space<vmem>>, vector<1x8x4xf32>
    %33 = vector.shape_cast %32 : vector<1x8x4xf32> to vector<8x4xf32>
    %cst_28 = arith.constant dense<0.000000e+00> : vector<8x512xf32>
    %34 = tpu.matmul %33, %31, %cst_28 {dimension_numbers = #tpu.dot_dimension_numbers<[1], [0], [0], [1], [0, 0, 1, 1], [], []>} : vector<8x4xf32>, vector<4x512xf32>, vector<8x512xf32> -> vector<8x512xf32>
    %35 = arith.addf %27, %34 : vector<8x512xf32>
    %c4 = arith.constant 4 : index
    %c0_29 = arith.constant 0 : index
    %c0_30 = arith.constant 0 : index
    %36 = vector.load %arg3[%c4, %c0_29, %c0_30] : memref<9x4x512xf32, #tpu.memory_space<vmem>>, vector<1x4x512xf32>
    %37 = vector.shape_cast %36 : vector<1x4x512xf32> to vector<4x512xf32>
    %38 = arith.mulf %4, %37 : vector<4x512xf32>
    %c4_31 = arith.constant 4 : index
    %c0_32 = arith.constant 0 : index
    %c0_33 = arith.constant 0 : index
    %39 = vector.load %arg1[%c4_31, %c0_32, %c0_33] : memref<9x8x4xf32, #tpu.memory_space<vmem>>, vector<1x8x4xf32>
    %40 = vector.shape_cast %39 : vector<1x8x4xf32> to vector<8x4xf32>
    %cst_34 = arith.constant dense<0.000000e+00> : vector<8x512xf32>
    %41 = tpu.matmul %40, %38, %cst_34 {dimension_numbers = #tpu.dot_dimension_numbers<[1], [0], [0], [1], [0, 0, 1, 1], [], []>} : vector<8x4xf32>, vector<4x512xf32>, vector<8x512xf32> -> vector<8x512xf32>
    %42 = arith.addf %35, %41 : vector<8x512xf32>
    %c511_i32 = arith.constant 511 : i32
    %43 = tpu.dynamic_rotate %4 by %c511_i32 dim 1 : vector<4x512xf32>, i32 -> vector<4x512xf32>
    %c5 = arith.constant 5 : index
    %c0_35 = arith.constant 0 : index
    %c0_36 = arith.constant 0 : index
    %44 = vector.load %arg3[%c5, %c0_35, %c0_36] : memref<9x4x512xf32, #tpu.memory_space<vmem>>, vector<1x4x512xf32>
    %45 = vector.shape_cast %44 : vector<1x4x512xf32> to vector<4x512xf32>
    %46 = arith.mulf %43, %45 : vector<4x512xf32>
    %c5_37 = arith.constant 5 : index
    %c0_38 = arith.constant 0 : index
    %c0_39 = arith.constant 0 : index
    %47 = vector.load %arg1[%c5_37, %c0_38, %c0_39] : memref<9x8x4xf32, #tpu.memory_space<vmem>>, vector<1x8x4xf32>
    %48 = vector.shape_cast %47 : vector<1x8x4xf32> to vector<8x4xf32>
    %cst_40 = arith.constant dense<0.000000e+00> : vector<8x512xf32>
    %49 = tpu.matmul %48, %46, %cst_40 {dimension_numbers = #tpu.dot_dimension_numbers<[1], [0], [0], [1], [0, 0, 1, 1], [], []>} : vector<8x4xf32>, vector<4x512xf32>, vector<8x512xf32> -> vector<8x512xf32>
    %50 = arith.addf %42, %49 : vector<8x512xf32>
    %c497_i32 = arith.constant 497 : i32
    %51 = tpu.dynamic_rotate %4 by %c497_i32 dim 1 : vector<4x512xf32>, i32 -> vector<4x512xf32>
    %c6 = arith.constant 6 : index
    %c0_41 = arith.constant 0 : index
    %c0_42 = arith.constant 0 : index
    %52 = vector.load %arg3[%c6, %c0_41, %c0_42] : memref<9x4x512xf32, #tpu.memory_space<vmem>>, vector<1x4x512xf32>
    %53 = vector.shape_cast %52 : vector<1x4x512xf32> to vector<4x512xf32>
    %54 = arith.mulf %51, %53 : vector<4x512xf32>
    %c6_43 = arith.constant 6 : index
    %c0_44 = arith.constant 0 : index
    %c0_45 = arith.constant 0 : index
    %55 = vector.load %arg1[%c6_43, %c0_44, %c0_45] : memref<9x8x4xf32, #tpu.memory_space<vmem>>, vector<1x8x4xf32>
    %56 = vector.shape_cast %55 : vector<1x8x4xf32> to vector<8x4xf32>
    %cst_46 = arith.constant dense<0.000000e+00> : vector<8x512xf32>
    %57 = tpu.matmul %56, %54, %cst_46 {dimension_numbers = #tpu.dot_dimension_numbers<[1], [0], [0], [1], [0, 0, 1, 1], [], []>} : vector<8x4xf32>, vector<4x512xf32>, vector<8x512xf32> -> vector<8x512xf32>
    %58 = arith.addf %50, %57 : vector<8x512xf32>
    %c496_i32 = arith.constant 496 : i32
    %59 = tpu.dynamic_rotate %4 by %c496_i32 dim 1 : vector<4x512xf32>, i32 -> vector<4x512xf32>
    %c7 = arith.constant 7 : index
    %c0_47 = arith.constant 0 : index
    %c0_48 = arith.constant 0 : index
    %60 = vector.load %arg3[%c7, %c0_47, %c0_48] : memref<9x4x512xf32, #tpu.memory_space<vmem>>, vector<1x4x512xf32>
    %61 = vector.shape_cast %60 : vector<1x4x512xf32> to vector<4x512xf32>
    %62 = arith.mulf %59, %61 : vector<4x512xf32>
    %c7_49 = arith.constant 7 : index
    %c0_50 = arith.constant 0 : index
    %c0_51 = arith.constant 0 : index
    %63 = vector.load %arg1[%c7_49, %c0_50, %c0_51] : memref<9x8x4xf32, #tpu.memory_space<vmem>>, vector<1x8x4xf32>
    %64 = vector.shape_cast %63 : vector<1x8x4xf32> to vector<8x4xf32>
    %cst_52 = arith.constant dense<0.000000e+00> : vector<8x512xf32>
    %65 = tpu.matmul %64, %62, %cst_52 {dimension_numbers = #tpu.dot_dimension_numbers<[1], [0], [0], [1], [0, 0, 1, 1], [], []>} : vector<8x4xf32>, vector<4x512xf32>, vector<8x512xf32> -> vector<8x512xf32>
    %66 = arith.addf %58, %65 : vector<8x512xf32>
    %c495_i32 = arith.constant 495 : i32
    %67 = tpu.dynamic_rotate %4 by %c495_i32 dim 1 : vector<4x512xf32>, i32 -> vector<4x512xf32>
    %c8 = arith.constant 8 : index
    %c0_53 = arith.constant 0 : index
    %c0_54 = arith.constant 0 : index
    %68 = vector.load %arg3[%c8, %c0_53, %c0_54] : memref<9x4x512xf32, #tpu.memory_space<vmem>>, vector<1x4x512xf32>
    %69 = vector.shape_cast %68 : vector<1x4x512xf32> to vector<4x512xf32>
    %70 = arith.mulf %67, %69 : vector<4x512xf32>
    %c8_55 = arith.constant 8 : index
    %c0_56 = arith.constant 0 : index
    %c0_57 = arith.constant 0 : index
    %71 = vector.load %arg1[%c8_55, %c0_56, %c0_57] : memref<9x8x4xf32, #tpu.memory_space<vmem>>, vector<1x8x4xf32>
    %72 = vector.shape_cast %71 : vector<1x8x4xf32> to vector<8x4xf32>
    %cst_58 = arith.constant dense<0.000000e+00> : vector<8x512xf32>
    %73 = tpu.matmul %72, %70, %cst_58 {dimension_numbers = #tpu.dot_dimension_numbers<[1], [0], [0], [1], [0, 0, 1, 1], [], []>} : vector<8x4xf32>, vector<4x512xf32>, vector<8x512xf32> -> vector<8x512xf32>
    %74 = arith.addf %66, %73 : vector<8x512xf32>
    %c0_59 = arith.constant 0 : index
    %c0_60 = arith.constant 0 : index
    %75 = vector.load %arg2[%c0_59, %c0_60] : memref<8x1xf32, #tpu.memory_space<vmem>>, vector<8x1xf32>
    %76 = vector.broadcast %75 : vector<8x1xf32> to vector<8x512xf32>
    %77 = arith.addf %74, %76 : vector<8x512xf32>
    %cst_61 = arith.constant 0.000000e+00 : f32
    %78 = vector.broadcast %cst_61 : f32 to vector<8x512xf32>
    %79 = arith.maximumf %77, %78 : vector<8x512xf32>
    %80 = vector.extract_strided_slice %79 {offsets = [0, 0], sizes = [8, 256], strides = [1, 1]} : vector<8x512xf32> to vector<8x256xf32>
    %c0_62 = arith.constant 0 : index
    %c0_63 = arith.constant 0 : index
    %81 = vector.load %arg5[%c0_62, %c0_63] : memref<1x6xf32, #tpu.memory_space<vmem>>, vector<1x6xf32>
    %82 = vector.extract_strided_slice %80 {offsets = [0, 0], sizes = [1, 256], strides = [1, 1]} : vector<8x256xf32> to vector<1x256xf32>
    %c0_64 = arith.constant 0 : index
    %c0_65 = arith.constant 0 : index
    %c0_66 = arith.constant 0 : index
    %83 = vector.load %arg4[%c0_64, %c0_65, %c0_66] : memref<8x256x6xf32, #tpu.memory_space<vmem>>, vector<1x256x6xf32>
    %84 = vector.shape_cast %83 : vector<1x256x6xf32> to vector<256x6xf32>
    %cst_67 = arith.constant dense<0.000000e+00> : vector<1x6xf32>
    %85 = tpu.matmul %82, %84, %cst_67 {dimension_numbers = #tpu.dot_dimension_numbers<[1], [0], [0], [1], [0, 0, 1, 1], [], []>} : vector<1x256xf32>, vector<256x6xf32>, vector<1x6xf32> -> vector<1x6xf32>
    %86 = arith.addf %81, %85 : vector<1x6xf32>
    %87 = vector.extract_strided_slice %80 {offsets = [1, 0], sizes = [1, 256], strides = [1, 1]} : vector<8x256xf32> to vector<1x256xf32>
    %c1_68 = arith.constant 1 : index
    %c0_69 = arith.constant 0 : index
    %c0_70 = arith.constant 0 : index
    %88 = vector.load %arg4[%c1_68, %c0_69, %c0_70] : memref<8x256x6xf32, #tpu.memory_space<vmem>>, vector<1x256x6xf32>
    %89 = vector.shape_cast %88 : vector<1x256x6xf32> to vector<256x6xf32>
    %cst_71 = arith.constant dense<0.000000e+00> : vector<1x6xf32>
    %90 = tpu.matmul %87, %89, %cst_71 {dimension_numbers = #tpu.dot_dimension_numbers<[1], [0], [0], [1], [0, 0, 1, 1], [], []>} : vector<1x256xf32>, vector<256x6xf32>, vector<1x6xf32> -> vector<1x6xf32>
    %91 = arith.addf %86, %90 : vector<1x6xf32>
    %92 = vector.extract_strided_slice %80 {offsets = [2, 0], sizes = [1, 256], strides = [1, 1]} : vector<8x256xf32> to vector<1x256xf32>
    %c2_72 = arith.constant 2 : index
    %c0_73 = arith.constant 0 : index
    %c0_74 = arith.constant 0 : index
    %93 = vector.load %arg4[%c2_72, %c0_73, %c0_74] : memref<8x256x6xf32, #tpu.memory_space<vmem>>, vector<1x256x6xf32>
    %94 = vector.shape_cast %93 : vector<1x256x6xf32> to vector<256x6xf32>
    %cst_75 = arith.constant dense<0.000000e+00> : vector<1x6xf32>
    %95 = tpu.matmul %92, %94, %cst_75 {dimension_numbers = #tpu.dot_dimension_numbers<[1], [0], [0], [1], [0, 0, 1, 1], [], []>} : vector<1x256xf32>, vector<256x6xf32>, vector<1x6xf32> -> vector<1x6xf32>
    %96 = arith.addf %91, %95 : vector<1x6xf32>
    %97 = vector.extract_strided_slice %80 {offsets = [3, 0], sizes = [1, 256], strides = [1, 1]} : vector<8x256xf32> to vector<1x256xf32>
    %c3_76 = arith.constant 3 : index
    %c0_77 = arith.constant 0 : index
    %c0_78 = arith.constant 0 : index
    %98 = vector.load %arg4[%c3_76, %c0_77, %c0_78] : memref<8x256x6xf32, #tpu.memory_space<vmem>>, vector<1x256x6xf32>
    %99 = vector.shape_cast %98 : vector<1x256x6xf32> to vector<256x6xf32>
    %cst_79 = arith.constant dense<0.000000e+00> : vector<1x6xf32>
    %100 = tpu.matmul %97, %99, %cst_79 {dimension_numbers = #tpu.dot_dimension_numbers<[1], [0], [0], [1], [0, 0, 1, 1], [], []>} : vector<1x256xf32>, vector<256x6xf32>, vector<1x6xf32> -> vector<1x6xf32>
    %101 = arith.addf %96, %100 : vector<1x6xf32>
    %102 = vector.extract_strided_slice %80 {offsets = [4, 0], sizes = [1, 256], strides = [1, 1]} : vector<8x256xf32> to vector<1x256xf32>
    %c4_80 = arith.constant 4 : index
    %c0_81 = arith.constant 0 : index
    %c0_82 = arith.constant 0 : index
    %103 = vector.load %arg4[%c4_80, %c0_81, %c0_82] : memref<8x256x6xf32, #tpu.memory_space<vmem>>, vector<1x256x6xf32>
    %104 = vector.shape_cast %103 : vector<1x256x6xf32> to vector<256x6xf32>
    %cst_83 = arith.constant dense<0.000000e+00> : vector<1x6xf32>
    %105 = tpu.matmul %102, %104, %cst_83 {dimension_numbers = #tpu.dot_dimension_numbers<[1], [0], [0], [1], [0, 0, 1, 1], [], []>} : vector<1x256xf32>, vector<256x6xf32>, vector<1x6xf32> -> vector<1x6xf32>
    %106 = arith.addf %101, %105 : vector<1x6xf32>
    %107 = vector.extract_strided_slice %80 {offsets = [5, 0], sizes = [1, 256], strides = [1, 1]} : vector<8x256xf32> to vector<1x256xf32>
    %c5_84 = arith.constant 5 : index
    %c0_85 = arith.constant 0 : index
    %c0_86 = arith.constant 0 : index
    %108 = vector.load %arg4[%c5_84, %c0_85, %c0_86] : memref<8x256x6xf32, #tpu.memory_space<vmem>>, vector<1x256x6xf32>
    %109 = vector.shape_cast %108 : vector<1x256x6xf32> to vector<256x6xf32>
    %cst_87 = arith.constant dense<0.000000e+00> : vector<1x6xf32>
    %110 = tpu.matmul %107, %109, %cst_87 {dimension_numbers = #tpu.dot_dimension_numbers<[1], [0], [0], [1], [0, 0, 1, 1], [], []>} : vector<1x256xf32>, vector<256x6xf32>, vector<1x6xf32> -> vector<1x6xf32>
    %111 = arith.addf %106, %110 : vector<1x6xf32>
    %112 = vector.extract_strided_slice %80 {offsets = [6, 0], sizes = [1, 256], strides = [1, 1]} : vector<8x256xf32> to vector<1x256xf32>
    %c6_88 = arith.constant 6 : index
    %c0_89 = arith.constant 0 : index
    %c0_90 = arith.constant 0 : index
    %113 = vector.load %arg4[%c6_88, %c0_89, %c0_90] : memref<8x256x6xf32, #tpu.memory_space<vmem>>, vector<1x256x6xf32>
    %114 = vector.shape_cast %113 : vector<1x256x6xf32> to vector<256x6xf32>
    %cst_91 = arith.constant dense<0.000000e+00> : vector<1x6xf32>
    %115 = tpu.matmul %112, %114, %cst_91 {dimension_numbers = #tpu.dot_dimension_numbers<[1], [0], [0], [1], [0, 0, 1, 1], [], []>} : vector<1x256xf32>, vector<256x6xf32>, vector<1x6xf32> -> vector<1x6xf32>
    %116 = arith.addf %111, %115 : vector<1x6xf32>
    %117 = vector.extract_strided_slice %80 {offsets = [7, 0], sizes = [1, 256], strides = [1, 1]} : vector<8x256xf32> to vector<1x256xf32>
    %c7_92 = arith.constant 7 : index
    %c0_93 = arith.constant 0 : index
    %c0_94 = arith.constant 0 : index
    %118 = vector.load %arg4[%c7_92, %c0_93, %c0_94] : memref<8x256x6xf32, #tpu.memory_space<vmem>>, vector<1x256x6xf32>
    %119 = vector.shape_cast %118 : vector<1x256x6xf32> to vector<256x6xf32>
    %cst_95 = arith.constant dense<0.000000e+00> : vector<1x6xf32>
    %120 = tpu.matmul %117, %119, %cst_95 {dimension_numbers = #tpu.dot_dimension_numbers<[1], [0], [0], [1], [0, 0, 1, 1], [], []>} : vector<1x256xf32>, vector<256x6xf32>, vector<1x6xf32> -> vector<1x6xf32>
    %121 = arith.addf %116, %120 : vector<1x6xf32>
    %c0_96 = arith.constant 0 : index
    %c0_97 = arith.constant 0 : index
    %122 = vector.load %arg6[%c0_96, %c0_97] : memref<2x6xf32, #tpu.memory_space<vmem>>, vector<1x6xf32>
    tpu.vector_store %arg6[%c0_96, %c0_97], %121 {strides = array<i32>} : memref<2x6xf32, #tpu.memory_space<vmem>>, vector<1x6xf32>,
    %123 = vector.extract_strided_slice %79 {offsets = [0, 256], sizes = [8, 256], strides = [1, 1]} : vector<8x512xf32> to vector<8x256xf32>
    %c0_98 = arith.constant 0 : index
    %c0_99 = arith.constant 0 : index
    %124 = vector.load %arg5[%c0_98, %c0_99] : memref<1x6xf32, #tpu.memory_space<vmem>>, vector<1x6xf32>
    %125 = vector.extract_strided_slice %123 {offsets = [0, 0], sizes = [1, 256], strides = [1, 1]} : vector<8x256xf32> to vector<1x256xf32>
    %c0_100 = arith.constant 0 : index
    %c0_101 = arith.constant 0 : index
    %c0_102 = arith.constant 0 : index
    %126 = vector.load %arg4[%c0_100, %c0_101, %c0_102] : memref<8x256x6xf32, #tpu.memory_space<vmem>>, vector<1x256x6xf32>
    %127 = vector.shape_cast %126 : vector<1x256x6xf32> to vector<256x6xf32>
    %cst_103 = arith.constant dense<0.000000e+00> : vector<1x6xf32>
    %128 = tpu.matmul %125, %127, %cst_103 {dimension_numbers = #tpu.dot_dimension_numbers<[1], [0], [0], [1], [0, 0, 1, 1], [], []>} : vector<1x256xf32>, vector<256x6xf32>, vector<1x6xf32> -> vector<1x6xf32>
    %129 = arith.addf %124, %128 : vector<1x6xf32>
    %130 = vector.extract_strided_slice %123 {offsets = [1, 0], sizes = [1, 256], strides = [1, 1]} : vector<8x256xf32> to vector<1x256xf32>
    %c1_104 = arith.constant 1 : index
    %c0_105 = arith.constant 0 : index
    %c0_106 = arith.constant 0 : index
    %131 = vector.load %arg4[%c1_104, %c0_105, %c0_106] : memref<8x256x6xf32, #tpu.memory_space<vmem>>, vector<1x256x6xf32>
    %132 = vector.shape_cast %131 : vector<1x256x6xf32> to vector<256x6xf32>
    %cst_107 = arith.constant dense<0.000000e+00> : vector<1x6xf32>
    %133 = tpu.matmul %130, %132, %cst_107 {dimension_numbers = #tpu.dot_dimension_numbers<[1], [0], [0], [1], [0, 0, 1, 1], [], []>} : vector<1x256xf32>, vector<256x6xf32>, vector<1x6xf32> -> vector<1x6xf32>
    %134 = arith.addf %129, %133 : vector<1x6xf32>
    %135 = vector.extract_strided_slice %123 {offsets = [2, 0], sizes = [1, 256], strides = [1, 1]} : vector<8x256xf32> to vector<1x256xf32>
    %c2_108 = arith.constant 2 : index
    %c0_109 = arith.constant 0 : index
    %c0_110 = arith.constant 0 : index
    %136 = vector.load %arg4[%c2_108, %c0_109, %c0_110] : memref<8x256x6xf32, #tpu.memory_space<vmem>>, vector<1x256x6xf32>
    %137 = vector.shape_cast %136 : vector<1x256x6xf32> to vector<256x6xf32>
    %cst_111 = arith.constant dense<0.000000e+00> : vector<1x6xf32>
    %138 = tpu.matmul %135, %137, %cst_111 {dimension_numbers = #tpu.dot_dimension_numbers<[1], [0], [0], [1], [0, 0, 1, 1], [], []>} : vector<1x256xf32>, vector<256x6xf32>, vector<1x6xf32> -> vector<1x6xf32>
    %139 = arith.addf %134, %138 : vector<1x6xf32>
    %140 = vector.extract_strided_slice %123 {offsets = [3, 0], sizes = [1, 256], strides = [1, 1]} : vector<8x256xf32> to vector<1x256xf32>
    %c3_112 = arith.constant 3 : index
    %c0_113 = arith.constant 0 : index
    %c0_114 = arith.constant 0 : index
    %141 = vector.load %arg4[%c3_112, %c0_113, %c0_114] : memref<8x256x6xf32, #tpu.memory_space<vmem>>, vector<1x256x6xf32>
    %142 = vector.shape_cast %141 : vector<1x256x6xf32> to vector<256x6xf32>
    %cst_115 = arith.constant dense<0.000000e+00> : vector<1x6xf32>
    %143 = tpu.matmul %140, %142, %cst_115 {dimension_numbers = #tpu.dot_dimension_numbers<[1], [0], [0], [1], [0, 0, 1, 1], [], []>} : vector<1x256xf32>, vector<256x6xf32>, vector<1x6xf32> -> vector<1x6xf32>
    %144 = arith.addf %139, %143 : vector<1x6xf32>
    %145 = vector.extract_strided_slice %123 {offsets = [4, 0], sizes = [1, 256], strides = [1, 1]} : vector<8x256xf32> to vector<1x256xf32>
    %c4_116 = arith.constant 4 : index
    %c0_117 = arith.constant 0 : index
    %c0_118 = arith.constant 0 : index
    %146 = vector.load %arg4[%c4_116, %c0_117, %c0_118] : memref<8x256x6xf32, #tpu.memory_space<vmem>>, vector<1x256x6xf32>
    %147 = vector.shape_cast %146 : vector<1x256x6xf32> to vector<256x6xf32>
    %cst_119 = arith.constant dense<0.000000e+00> : vector<1x6xf32>
    %148 = tpu.matmul %145, %147, %cst_119 {dimension_numbers = #tpu.dot_dimension_numbers<[1], [0], [0], [1], [0, 0, 1, 1], [], []>} : vector<1x256xf32>, vector<256x6xf32>, vector<1x6xf32> -> vector<1x6xf32>
    %149 = arith.addf %144, %148 : vector<1x6xf32>
    %150 = vector.extract_strided_slice %123 {offsets = [5, 0], sizes = [1, 256], strides = [1, 1]} : vector<8x256xf32> to vector<1x256xf32>
    %c5_120 = arith.constant 5 : index
    %c0_121 = arith.constant 0 : index
    %c0_122 = arith.constant 0 : index
    %151 = vector.load %arg4[%c5_120, %c0_121, %c0_122] : memref<8x256x6xf32, #tpu.memory_space<vmem>>, vector<1x256x6xf32>
    %152 = vector.shape_cast %151 : vector<1x256x6xf32> to vector<256x6xf32>
    %cst_123 = arith.constant dense<0.000000e+00> : vector<1x6xf32>
    %153 = tpu.matmul %150, %152, %cst_123 {dimension_numbers = #tpu.dot_dimension_numbers<[1], [0], [0], [1], [0, 0, 1, 1], [], []>} : vector<1x256xf32>, vector<256x6xf32>, vector<1x6xf32> -> vector<1x6xf32>
    %154 = arith.addf %149, %153 : vector<1x6xf32>
    %155 = vector.extract_strided_slice %123 {offsets = [6, 0], sizes = [1, 256], strides = [1, 1]} : vector<8x256xf32> to vector<1x256xf32>
    %c6_124 = arith.constant 6 : index
    %c0_125 = arith.constant 0 : index
    %c0_126 = arith.constant 0 : index
    %156 = vector.load %arg4[%c6_124, %c0_125, %c0_126] : memref<8x256x6xf32, #tpu.memory_space<vmem>>, vector<1x256x6xf32>
    %157 = vector.shape_cast %156 : vector<1x256x6xf32> to vector<256x6xf32>
    %cst_127 = arith.constant dense<0.000000e+00> : vector<1x6xf32>
    %158 = tpu.matmul %155, %157, %cst_127 {dimension_numbers = #tpu.dot_dimension_numbers<[1], [0], [0], [1], [0, 0, 1, 1], [], []>} : vector<1x256xf32>, vector<256x6xf32>, vector<1x6xf32> -> vector<1x6xf32>
    %159 = arith.addf %154, %158 : vector<1x6xf32>
    %160 = vector.extract_strided_slice %123 {offsets = [7, 0], sizes = [1, 256], strides = [1, 1]} : vector<8x256xf32> to vector<1x256xf32>
    %c7_128 = arith.constant 7 : index
    %c0_129 = arith.constant 0 : index
    %c0_130 = arith.constant 0 : index
    %161 = vector.load %arg4[%c7_128, %c0_129, %c0_130] : memref<8x256x6xf32, #tpu.memory_space<vmem>>, vector<1x256x6xf32>
    %162 = vector.shape_cast %161 : vector<1x256x6xf32> to vector<256x6xf32>
    %cst_131 = arith.constant dense<0.000000e+00> : vector<1x6xf32>
    %163 = tpu.matmul %160, %162, %cst_131 {dimension_numbers = #tpu.dot_dimension_numbers<[1], [0], [0], [1], [0, 0, 1, 1], [], []>} : vector<1x256xf32>, vector<256x6xf32>, vector<1x6xf32> -> vector<1x6xf32>
    %164 = arith.addf %159, %163 : vector<1x6xf32>
    %c1_132 = arith.constant 1 : index
    %c0_133 = arith.constant 0 : index
    %165 = vector.load %arg6[%c1_132, %c0_133] : memref<2x6xf32, #tpu.memory_space<vmem>>, vector<1x6xf32>
    tpu.vector_store %arg6[%c1_132, %c0_133], %164 {strides = array<i32>} : memref<2x6xf32, #tpu.memory_space<vmem>>, vector<1x6xf32>,
    return
  }
}

</mosaic_0001>

<llo_original>
// kernel: forward.1
$region0: #{forward.1}
  #allocation0 [shape = 'u32[]', space=smem, size = 0x4, offset = 0x4, fixed_abs, tag = 'smem constant byte address 0x4 - core index']
  #allocation1 [shape = 'u32[144,128]{1,0:T(1,128)}', space=vmem, size = 0x12000, scoped, tag = 'internal scratch']
  %s0 = inlined_call_operand.vmem [shape: f32[2,4,256], index: 0, kind: input, shape index: {}]
  %s1 = inlined_call_operand.hbm [shape: f32[9,8,4], index: 1, kind: input, shape index: {}]
  %s2 = inlined_call_operand.hbm [shape: f32[8,1], index: 2, kind: input, shape index: {}]
  %s3 = inlined_call_operand.vmem [shape: f32[9,4,512], index: 3, kind: input, shape index: {}]
  %s4 = inlined_call_operand.hbm [shape: f32[8,256,6], index: 4, kind: input, shape index: {}]
  %s5 = inlined_call_operand.vmem [shape: f32[1,6], index: 5, kind: input, shape index: {}]
  %s6 = inlined_call_operand.hbm [shape: f32[2,6], index: 6, kind: output, shape index: {}]
  %s7 = sld [smem:[#allocation0]]
  $region46: #{forward.1} parent=0
    _
  %s9 = ssub.s32 1, %s7
  %s10 = scalar_select 0, %s9, %s7
  $region1: #{forward.1} parent=0
    #allocation2 [shape = 'u8[36864]{0}', space=vmem, size = 0x9000, scoped, tag = 'input window, operand 1, single buffered']
    #allocation3 [shape = 's32[1]{0}', space=sflag, size = 0x4, scoped, tag = 'scoped memory for forward.1']
    #allocation4 [shape = 's32[1]{0}', space=sflag, size = 0x4, scoped, tag = 'scoped memory for forward.1']
    #allocation5 [shape = 'u8[4096]{0}', space=vmem, size = 0x1000, scoped, tag = 'input window, operand 2, single buffered']
    #allocation6 [shape = 's32[1]{0}', space=sflag, size = 0x4, scoped, tag = 'scoped memory for forward.1']
    #allocation7 [shape = 'u8[1048576]{0}', space=vmem, size = 0x100000, scoped, tag = 'input window, operand 4, single buffered']
    #allocation8 [shape = 'u8[1024]{0}', space=vmem, size = 0x400, scoped, tag = 'output window, operand 0, single buffered']
    %11 = vsyncpa [#allocation3], 0
    %12 = vsyncpa [#allocation6], 0
    %13 = vsyncpa [#allocation4], 0
    // Predicated region
    $region2: #{forward.1} parent=1 // pred_check
      _
    $region3: #{forward.1} parent=1 // pred_check_branch
      %15 = sbr.rel (0) target = $region5
    $region4: #{forward.1} parent=1 // pred_region
      _
    $region5: #{forward.1} parent=1 // pred_fallthru
      _
    // Predicated region
    $region6: #{forward.1} parent=1 // pred_check
      _
    $region7: #{forward.1} parent=1 // pred_check_branch
      %17 = sbr.rel (0) target = $region9
    $region8: #{forward.1} parent=1 // pred_region
      %s19 = ssub.s32 1152, 1152
      %20 = vsyncadd [#allocation3], %s19
      %s21 = sshll.u32 [#allocation2], 4
      %s22 = int_to_ptr.vmem [resolvable:$true] %s21
      %27 = dma.hbm_to_vmem [thread:$0]  %s1, 1152, %s22, [#allocation3], 128, 128, 8
    $region9: #{forward.1} parent=1 // pred_fallthru
      _
    // Predicated region
    $region10: #{forward.1} parent=1 // pred_check
      _
    $region11: #{forward.1} parent=1 // pred_check_branch
      %29 = sbr.rel (0) target = $region13
    $region12: #{forward.1} parent=1 // pred_region
      %s31 = ssub.s32 128, 128
      %32 = vsyncadd [#allocation6], %s31
      %s34 = sshll.u32 [#allocation5], 4
      %s35 = int_to_ptr.vmem [resolvable:$true] %s34
      %37 = dma.hbm_to_vmem [thread:$0]  %s2, 128, %s35, [#allocation6]
    $region13: #{forward.1} parent=1 // pred_fallthru
      _
    // Predicated region
    $region14: #{forward.1} parent=1 // pred_check
      _
    $region15: #{forward.1} parent=1 // pred_check_branch
      %39 = sbr.rel (0) target = $region17
    $region16: #{forward.1} parent=1 // pred_region
      _
    $region17: #{forward.1} parent=1 // pred_fallthru
      _
    // Predicated region
    $region18: #{forward.1} parent=1 // pred_check
      _
    $region19: #{forward.1} parent=1 // pred_check_branch
      %41 = sbr.rel (0) target = $region21
    $region20: #{forward.1} parent=1 // pred_region
      %s43 = ssub.s32 32768, 32768
      %44 = vsyncadd [#allocation6], %s43
      %s45 = sshll.u32 [#allocation7], 4
      %s46 = int_to_ptr.vmem [resolvable:$true] %s45
      %51 = dma.hbm_to_vmem [thread:$0]  %s4, 32768, %s46, [#allocation6], 128, 128, 8
    $region21: #{forward.1} parent=1 // pred_fallthru
      _
    // Predicated region
    $region22: #{forward.1} parent=1 // pred_check
      _
    $region23: #{forward.1} parent=1 // pred_check_branch
      %53 = sbr.rel (0) target = $region25
    $region24: #{forward.1} parent=1 // pred_region
      _
    $region25: #{forward.1} parent=1 // pred_fallthru
      _
    // Predicated region
    $region26: #{forward.1} parent=1 // pred_check
      _
    $region27: #{forward.1} parent=1 // pred_check_branch
      %55 = sbr.rel (0) target = $region29
    $region28: #{forward.1} parent=1 // pred_region
      %56 = dma.done [#allocation3], 1152
    $region29: #{forward.1} parent=1 // pred_fallthru
      _
    // Predicated region
    $region30: #{forward.1} parent=1 // pred_check
      _
    $region31: #{forward.1} parent=1 // pred_check_branch
      %58 = sbr.rel (0) target = $region33
    $region32: #{forward.1} parent=1 // pred_region
      %59 = dma.done [#allocation6], 128
    $region33: #{forward.1} parent=1 // pred_fallthru
      _
    // Predicated region
    $region34: #{forward.1} parent=1 // pred_check
      _
    $region35: #{forward.1} parent=1 // pred_check_branch
      %61 = sbr.rel (0) target = $region37
    $region36: #{forward.1} parent=1 // pred_region
      %62 = dma.done [#allocation6], 32768
    $region37: #{forward.1} parent=1 // pred_fallthru
      _
    %v63 = vld [vmem:[%s0] sm:$0xff]
    %s64 = scalar_lea.vmem %s0, 8
    %v65 = vld [vmem:[%s64] sm:$0xff]
    %v67 = vcombine.high %v63, %v63
    %v70 = vcombine.high %v65, %v65
    %72 = vrot.lane.b32.xlu0 %v63, 17
    %v73 = vpop.permute.xlu0 %72
    %74 = vrot.lane.b32.xlu0 %v67, 17
    %v75 = vpop.permute.xlu0 %74
    %76 = vrot.lane.b32.xlu0 %v65, 17
    %v77 = vpop.permute.xlu0 %76
    %78 = vrot.lane.b32.xlu0 %v70, 17
    %v79 = vpop.permute.xlu0 %78
    %v80 = vlaneseq
    %v81 = vand.u32 %v80, 127
    %vm82 = vcmp.lt.s32.totalorder %v81, 17
    %v83 = vsel %vm82, %v77, %v79
    %v84 = vsel %vm82, %v75, %v77
    %v85 = vsel %vm82, %v73, %v75
    %v86 = vsel %vm82, %v79, %v73
    %v87 = vld [vmem:[%s3] sm:$0xff]
    %v88 = vld [vmem:[%s3 + $0x8] sm:$0xff]
    %v91 = vcombine.high %v87, %v87
    %v92 = vcombine.high %v88, %v88
    %v95 = vmul.f32 %v86, %v87
    %v96 = vmul.f32 %v85, %v91
    %v97 = vmul.f32 %v84, %v88
    %v98 = vmul.f32 %v83, %v92
    %v99 = vld [vmem:[#allocation2] sm:$0xff]
    %100 = vrot.lane.b32.xlu0 %v63, 16
    %v101 = vpop.permute.xlu0 %100
    %102 = vrot.lane.b32.xlu0 %v67, 16
    %v103 = vpop.permute.xlu0 %102
    %104 = vrot.lane.b32.xlu0 %v65, 16
    %v105 = vpop.permute.xlu0 %104
    %106 = vrot.lane.b32.xlu0 %v70, 16
    %v107 = vpop.permute.xlu0 %106
    %vm108 = vcmp.lt.s32.totalorder %v81, 16
    %v109 = vsel %vm108, %v105, %v107
    %v110 = vsel %vm108, %v103, %v105
    %v111 = vsel %vm108, %v101, %v103
    %v112 = vsel %vm108, %v107, %v101
    %s113 = scalar_lea.vmem %s3, 16
    %v114 = vld [vmem:[%s113] sm:$0xff]
    %v115 = vld [vmem:[%s113 + $0x8] sm:$0xff]
    %v118 = vcombine.high %v114, %v114
    %v119 = vcombine.high %v115, %v115
    %v122 = vmul.f32 %v112, %v114
    %v123 = vmul.f32 %v111, %v118
    %v124 = vmul.f32 %v110, %v115
    %v125 = vmul.f32 %v109, %v119
    %s126 = scalar_lea.vmem [#allocation2], 8
    %v127 = vld [vmem:[%s126] sm:$0xff]
    %vm128 = vcmask 31744
    %v130 = vsel %vm128, %v127, 0
    %vm132 = vcmask 1043456
    %v134 = vsel %vm132, %v122, 0
    %v137 = vsel %vm132, %v123, 0
    %v140 = vsel %vm132, %v124, 0
    %v143 = vsel %vm132, %v125, 0
    %145 = vmatprep.subr.mxu0 0.0
    %146 = vmatpush1.msra.mxu0 0.0
    %147 = vmatprep.subr.mxu0 0.0
    %148 = vmatpush1.msra.mxu0 0.0
    %149 = vmatprep.subr.mxu0 0.0
    %150 = vmatpush1.msra.mxu0 0.0
    %151 = vmatprep.subr.mxu0 0.0
    %152 = vmatpush1.msra.mxu0 0.0
    %153 = vmatprep.subr.mxu0 0.0
    %154 = vmatpush1.msra.mxu0 0.0
    %155 = vmatprep.subr.mxu0 0.0
    %156 = vmatpush1.msra.mxu0 0.0
    %157 = vmatprep.subr.mxu0 0.0
    %158 = vmatpush1.msra.mxu0 0.0
    %159 = vmatprep.subr.mxu0 0.0
    %160 = vmatpush1.msra.mxu0 0.0
    %161 = vmatprep.subr.mxu0 0.0
    %162 = vmatpush1.msra.mxu0 0.0
    %163 = vmatprep.subr.mxu0 0.0
    %164 = vmatpush1.msra.mxu0 0.0
    %165 = vmatprep.subr.mxu0 0.0
    %166 = vmatpush1.msra.mxu0 0.0
    %167 = vmatprep.subr.mxu0 0.0
    %168 = vmatpush1.msra.mxu0 0.0
    %169 = vmatprep.subr.mxu0 0.0
    %170 = vmatpush1.msra.mxu0 0.0
    %171 = vmatprep.subr.mxu0 0.0
    %172 = vmatpush1.msra.mxu0 0.0
    %173 = vmatprep.subr.mxu0 0.0
    %174 = vmatpush1.msra.mxu0 0.0
    %175 = vmatprep.subr.mxu0 %v137
    %176 = vmatpush1.msra.mxu0 %v134
    %177 = vmatprep.subr.mxu0 0.0
    %178 = vmatpush2.msra.mxu0 0.0
    %179 = vmatprep.subr.mxu0 0.0
    %180 = vmatpush2.msra.mxu0 0.0
    %181 = vmatprep.subr.mxu0 0.0
    %182 = vmatpush2.msra.mxu0 0.0
    %183 = vmatprep.subr.mxu0 0.0
    %184 = vmatpush2.msra.mxu0 0.0
    %185 = vmatprep.subr.mxu0 0.0
    %186 = vmatpush2.msra.mxu0 0.0
    %187 = vmatprep.subr.mxu0 0.0
    %188 = vmatpush2.msra.mxu0 0.0
    %189 = vmatprep.subr.mxu0 0.0
    %190 = vmatpush2.msra.mxu0 0.0
    %191 = vmatprep.subr.mxu0 0.0
    %192 = vmatpush2.msra.mxu0 0.0
    %193 = vmatprep.subr.mxu0 0.0
    %194 = vmatpush2.msra.mxu0 0.0
    %195 = vmatprep.subr.mxu0 0.0
    %196 = vmatpush2.msra.mxu0 0.0
    %197 = vmatprep.subr.mxu0 0.0
    %198 = vmatpush2.msra.mxu0 0.0
    %199 = vmatprep.subr.mxu0 0.0
    %200 = vmatpush2.msra.mxu0 0.0
    %201 = vmatprep.subr.mxu0 0.0
    %202 = vmatpush2.msra.mxu0 0.0
    %203 = vmatprep.subr.mxu0 0.0
    %204 = vmatpush2.msra.mxu0 0.0
    %205 = vmatprep.subr.mxu0 0.0
    %206 = vmatpush2.msra.mxu0 0.0
    %207 = vmatprep.subr.mxu0 0.0
    %208 = vmatpush2.msra.mxu0 0.0
    %209 = vmatprep.mubr.f32.mxu0 0.0
    %210 = vmatmul.mubr.f32.gmra.mxu0 %v130
    %v211 = vpop.f32.mrf.mxu0
    %v212 = vadd.f32 0.0, %v211
    %v213 = vpop.f32.mrf.mxu0
    %v214 = vadd.f32 0.0, %v213
    %215 = vdwg.mxu0
    %216 = vmatprep.subr.mxu0 0.0
    %217 = vmatpush1.msra.mxu0 0.0
    %218 = vmatprep.subr.mxu0 0.0
    %219 = vmatpush1.msra.mxu0 0.0
    %220 = vmatprep.subr.mxu0 0.0
    %221 = vmatpush1.msra.mxu0 0.0
    %222 = vmatprep.subr.mxu0 0.0
    %223 = vmatpush1.msra.mxu0 0.0
    %224 = vmatprep.subr.mxu0 0.0
    %225 = vmatpush1.msra.mxu0 0.0
    %226 = vmatprep.subr.mxu0 0.0
    %227 = vmatpush1.msra.mxu0 0.0
    %228 = vmatprep.subr.mxu0 0.0
    %229 = vmatpush1.msra.mxu0 0.0
    %230 = vmatprep.subr.mxu0 0.0
    %231 = vmatpush1.msra.mxu0 0.0
    %232 = vmatprep.subr.mxu0 0.0
    %233 = vmatpush1.msra.mxu0 0.0
    %234 = vmatprep.subr.mxu0 0.0
    %235 = vmatpush1.msra.mxu0 0.0
    %236 = vmatprep.subr.mxu0 0.0
    %237 = vmatpush1.msra.mxu0 0.0
    %238 = vmatprep.subr.mxu0 0.0
    %239 = vmatpush1.msra.mxu0 0.0
    %240 = vmatprep.subr.mxu0 0.0
    %241 = vmatpush1.msra.mxu0 0.0
    %242 = vmatprep.subr.mxu0 0.0
    %243 = vmatpush1.msra.mxu0 0.0
    %244 = vmatprep.subr.mxu0 0.0
    %245 = vmatpush1.msra.mxu0 0.0
    %246 = vmatprep.subr.mxu0 %v143
    %247 = vmatpush1.msra.mxu0 %v140
    %248 = vmatprep.subr.mxu0 0.0
    %249 = vmatpush2.msra.mxu0 0.0
    %250 = vmatprep.subr.mxu0 0.0
    %251 = vmatpush2.msra.mxu0 0.0
    %252 = vmatprep.subr.mxu0 0.0
    %253 = vmatpush2.msra.mxu0 0.0
    %254 = vmatprep.subr.mxu0 0.0
    %255 = vmatpush2.msra.mxu0 0.0
    %256 = vmatprep.subr.mxu0 0.0
    %257 = vmatpush2.msra.mxu0 0.0
    %258 = vmatprep.subr.mxu0 0.0
    %259 = vmatpush2.msra.mxu0 0.0
    %260 = vmatprep.subr.mxu0 0.0
    %261 = vmatpush2.msra.mxu0 0.0
    %262 = vmatprep.subr.mxu0 0.0
    %263 = vmatpush2.msra.mxu0 0.0
    %264 = vmatprep.subr.mxu0 0.0
    %265 = vmatpush2.msra.mxu0 0.0
    %266 = vmatprep.subr.mxu0 0.0
    %267 = vmatpush2.msra.mxu0 0.0
    %268 = vmatprep.subr.mxu0 0.0
    %269 = vmatpush2.msra.mxu0 0.0
    %270 = vmatprep.subr.mxu0 0.0
    %271 = vmatpush2.msra.mxu0 0.0
    %272 = vmatprep.subr.mxu0 0.0
    %273 = vmatpush2.msra.mxu0 0.0
    %274 = vmatprep.subr.mxu0 0.0
    %275 = vmatpush2.msra.mxu0 0.0
    %276 = vmatprep.subr.mxu0 0.0
    %277 = vmatpush2.msra.mxu0 0.0
    %278 = vmatprep.subr.mxu0 0.0
    %279 = vmatpush2.msra.mxu0 0.0
    %280 = vmatprep.mubr.f32.mxu0 0.0
    %281 = vmatmul.mubr.f32.gmra.mxu0 %v130
    %v282 = vpop.f32.mrf.mxu0
    %v283 = vadd.f32 0.0, %v282
    %v284 = vpop.f32.mrf.mxu0
    %v285 = vadd.f32 0.0, %v284
    %286 = vdwg.mxu0
    %v288 = vsel %vm128, %v99, 0
    %v291 = vsel %vm132, %v95, 0
    %v294 = vsel %vm132, %v96, 0
    %v297 = vsel %vm132, %v97, 0
    %v300 = vsel %vm132, %v98, 0
    %302 = vmatprep.subr.mxu0 0.0
    %303 = vmatpush1.msra.mxu0 0.0
    %304 = vmatprep.subr.mxu0 0.0
    %305 = vmatpush1.msra.mxu0 0.0
    %306 = vmatprep.subr.mxu0 0.0
    %307 = vmatpush1.msra.mxu0 0.0
    %308 = vmatprep.subr.mxu0 0.0
    %309 = vmatpush1.msra.mxu0 0.0
    %310 = vmatprep.subr.mxu0 0.0
    %311 = vmatpush1.msra.mxu0 0.0
    %312 = vmatprep.subr.mxu0 0.0
    %313 = vmatpush1.msra.mxu0 0.0
    %314 = vmatprep.subr.mxu0 0.0
    %315 = vmatpush1.msra.mxu0 0.0
    %316 = vmatprep.subr.mxu0 0.0
    %317 = vmatpush1.msra.mxu0 0.0
    %318 = vmatprep.subr.mxu0 0.0
    %319 = vmatpush1.msra.mxu0 0.0
    %320 = vmatprep.subr.mxu0 0.0
    %321 = vmatpush1.msra.mxu0 0.0
    %322 = vmatprep.subr.mxu0 0.0
    %323 = vmatpush1.msra.mxu0 0.0
    %324 = vmatprep.subr.mxu0 0.0
    %325 = vmatpush1.msra.mxu0 0.0
    %326 = vmatprep.subr.mxu0 0.0
    %327 = vmatpush1.msra.mxu0 0.0
    %328 = vmatprep.subr.mxu0 0.0
    %329 = vmatpush1.msra.mxu0 0.0
    %330 = vmatprep.subr.mxu0 0.0
    %331 = vmatpush1.msra.mxu0 0.0
    %332 = vmatprep.subr.mxu0 %v294
    %333 = vmatpush1.msra.mxu0 %v291
    %334 = vmatprep.subr.mxu0 0.0
    %335 = vmatpush2.msra.mxu0 0.0
    %336 = vmatprep.subr.mxu0 0.0
    %337 = vmatpush2.msra.mxu0 0.0
    %338 = vmatprep.subr.mxu0 0.0
    %339 = vmatpush2.msra.mxu0 0.0
    %340 = vmatprep.subr.mxu0 0.0
    %341 = vmatpush2.msra.mxu0 0.0
    %342 = vmatprep.subr.mxu0 0.0
    %343 = vmatpush2.msra.mxu0 0.0
    %344 = vmatprep.subr.mxu0 0.0
    %345 = vmatpush2.msra.mxu0 0.0
    %346 = vmatprep.subr.mxu0 0.0
    %347 = vmatpush2.msra.mxu0 0.0
    %348 = vmatprep.subr.mxu0 0.0
    %349 = vmatpush2.msra.mxu0 0.0
    %350 = vmatprep.subr.mxu0 0.0
    %351 = vmatpush2.msra.mxu0 0.0
    %352 = vmatprep.subr.mxu0 0.0
    %353 = vmatpush2.msra.mxu0 0.0
    %354 = vmatprep.subr.mxu0 0.0
    %355 = vmatpush2.msra.mxu0 0.0
    %356 = vmatprep.subr.mxu0 0.0
    %357 = vmatpush2.msra.mxu0 0.0
    %358 = vmatprep.subr.mxu0 0.0
    %359 = vmatpush2.msra.mxu0 0.0
    %360 = vmatprep.subr.mxu0 0.0
    %361 = vmatpush2.msra.mxu0 0.0
    %362 = vmatprep.subr.mxu0 0.0
    %363 = vmatpush2.msra.mxu0 0.0
    %364 = vmatprep.subr.mxu0 0.0
    %365 = vmatpush2.msra.mxu0 0.0
    %366 = vmatprep.mubr.f32.mxu0 0.0
    %367 = vmatmul.mubr.f32.gmra.mxu0 %v288
    %v368 = vpop.f32.mrf.mxu0
    %v369 = vadd.f32 %v212, %v368
    %v370 = vpop.f32.mrf.mxu0
    %v371 = vadd.f32 %v214, %v370
    %372 = vdwg.mxu0
    %373 = vmatprep.subr.mxu0 0.0
    %374 = vmatpush1.msra.mxu0 0.0
    %375 = vmatprep.subr.mxu0 0.0
    %376 = vmatpush1.msra.mxu0 0.0
    %377 = vmatprep.subr.mxu0 0.0
    %378 = vmatpush1.msra.mxu0 0.0
    %379 = vmatprep.subr.mxu0 0.0
    %380 = vmatpush1.msra.mxu0 0.0
    %381 = vmatprep.subr.mxu0 0.0
    %382 = vmatpush1.msra.mxu0 0.0
    %383 = vmatprep.subr.mxu0 0.0
    %384 = vmatpush1.msra.mxu0 0.0
    %385 = vmatprep.subr.mxu0 0.0
    %386 = vmatpush1.msra.mxu0 0.0
    %387 = vmatprep.subr.mxu0 0.0
    %388 = vmatpush1.msra.mxu0 0.0
    %389 = vmatprep.subr.mxu0 0.0
    %390 = vmatpush1.msra.mxu0 0.0
    %391 = vmatprep.subr.mxu0 0.0
    %392 = vmatpush1.msra.mxu0 0.0
    %393 = vmatprep.subr.mxu0 0.0
    %394 = vmatpush1.msra.mxu0 0.0
    %395 = vmatprep.subr.mxu0 0.0
    %396 = vmatpush1.msra.mxu0 0.0
    %397 = vmatprep.subr.mxu0 0.0
    %398 = vmatpush1.msra.mxu0 0.0
    %399 = vmatprep.subr.mxu0 0.0
    %400 = vmatpush1.msra.mxu0 0.0
    %401 = vmatprep.subr.mxu0 0.0
    %402 = vmatpush1.msra.mxu0 0.0
    %403 = vmatprep.subr.mxu0 %v300
    %404 = vmatpush1.msra.mxu0 %v297
    %405 = vmatprep.subr.mxu0 0.0
    %406 = vmatpush2.msra.mxu0 0.0
    %407 = vmatprep.subr.mxu0 0.0
    %408 = vmatpush2.msra.mxu0 0.0
    %409 = vmatprep.subr.mxu0 0.0
    %410 = vmatpush2.msra.mxu0 0.0
    %411 = vmatprep.subr.mxu0 0.0
    %412 = vmatpush2.msra.mxu0 0.0
    %413 = vmatprep.subr.mxu0 0.0
    %414 = vmatpush2.msra.mxu0 0.0
    %415 = vmatprep.subr.mxu0 0.0
    %416 = vmatpush2.msra.mxu0 0.0
    %417 = vmatprep.subr.mxu0 0.0
    %418 = vmatpush2.msra.mxu0 0.0
    %419 = vmatprep.subr.mxu0 0.0
    %420 = vmatpush2.msra.mxu0 0.0
    %421 = vmatprep.subr.mxu0 0.0
    %422 = vmatpush2.msra.mxu0 0.0
    %423 = vmatprep.subr.mxu0 0.0
    %424 = vmatpush2.msra.mxu0 0.0
    %425 = vmatprep.subr.mxu0 0.0
    %426 = vmatpush2.msra.mxu0 0.0
    %427 = vmatprep.subr.mxu0 0.0
    %428 = vmatpush2.msra.mxu0 0.0
    %429 = vmatprep.subr.mxu0 0.0
    %430 = vmatpush2.msra.mxu0 0.0
    %431 = vmatprep.subr.mxu0 0.0
    %432 = vmatpush2.msra.mxu0 0.0
    %433 = vmatprep.subr.mxu0 0.0
    %434 = vmatpush2.msra.mxu0 0.0
    %435 = vmatprep.subr.mxu0 0.0
    %436 = vmatpush2.msra.mxu0 0.0
    %437 = vmatprep.mubr.f32.mxu0 0.0
    %438 = vmatmul.mubr.f32.gmra.mxu0 %v288
    %v439 = vpop.f32.mrf.mxu0
    %v440 = vadd.f32 %v283, %v439
    %v441 = vpop.f32.mrf.mxu0
    %v442 = vadd.f32 %v285, %v441
    %443 = vdwg.mxu0
    %444 = vrot.lane.b32.xlu0 %v63, 15
    %v445 = vpop.permute.xlu0 %444
    %446 = vrot.lane.b32.xlu0 %v67, 15
    %v447 = vpop.permute.xlu0 %446
    %448 = vrot.lane.b32.xlu0 %v65, 15
    %v449 = vpop.permute.xlu0 %448
    %450 = vrot.lane.b32.xlu0 %v70, 15
    %v451 = vpop.permute.xlu0 %450
    %vm452 = vcmp.lt.s32.totalorder %v81, 15
    %v453 = vsel %vm452, %v449, %v451
    %v454 = vsel %vm452, %v447, %v449
    %v455 = vsel %vm452, %v445, %v447
    %v456 = vsel %vm452, %v451, %v445
    %s457 = scalar_lea.vmem %s3, 32
    %v458 = vld [vmem:[%s457] sm:$0xff]
    %v459 = vld [vmem:[%s457 + $0x8] sm:$0xff]
    %v462 = vcombine.high %v458, %v458
    %v463 = vcombine.high %v459, %v459
    %v466 = vmul.f32 %v456, %v458
    %v467 = vmul.f32 %v455, %v462
    %v468 = vmul.f32 %v454, %v459
    %v469 = vmul.f32 %v453, %v463
    %s470 = scalar_lea.vmem [#allocation2], 16
    %v471 = vld [vmem:[%s470] sm:$0xff]
    %v473 = vsel %vm128, %v471, 0
    %v476 = vsel %vm132, %v466, 0
    %v479 = vsel %vm132, %v467, 0
    %v482 = vsel %vm132, %v468, 0
    %v485 = vsel %vm132, %v469, 0
    %487 = vmatprep.subr.mxu0 0.0
    %488 = vmatpush1.msra.mxu0 0.0
    %489 = vmatprep.subr.mxu0 0.0
    %490 = vmatpush1.msra.mxu0 0.0
    %491 = vmatprep.subr.mxu0 0.0
    %492 = vmatpush1.msra.mxu0 0.0
    %493 = vmatprep.subr.mxu0 0.0
    %494 = vmatpush1.msra.mxu0 0.0
    %495 = vmatprep.subr.mxu0 0.0
    %496 = vmatpush1.msra.mxu0 0.0
    %497 = vmatprep.subr.mxu0 0.0
    %498 = vmatpush1.msra.mxu0 0.0
    %499 = vmatprep.subr.mxu0 0.0
    %500 = vmatpush1.msra.mxu0 0.0
    %501 = vmatprep.subr.mxu0 0.0
    %502 = vmatpush1.msra.mxu0 0.0
    %503 = vmatprep.subr.mxu0 0.0
    %504 = vmatpush1.msra.mxu0 0.0
    %505 = vmatprep.subr.mxu0 0.0
    %506 = vmatpush1.msra.mxu0 0.0
    %507 = vmatprep.subr.mxu0 0.0
    %508 = vmatpush1.msra.mxu0 0.0
    %509 = vmatprep.subr.mxu0 0.0
    %510 = vmatpush1.msra.mxu0 0.0
    %511 = vmatprep.subr.mxu0 0.0
    %512 = vmatpush1.msra.mxu0 0.0
    %513 = vmatprep.subr.mxu0 0.0
    %514 = vmatpush1.msra.mxu0 0.0
    %515 = vmatprep.subr.mxu0 0.0
    %516 = vmatpush1.msra.mxu0 0.0
    %517 = vmatprep.subr.mxu0 %v479
    %518 = vmatpush1.msra.mxu0 %v476
    %519 = vmatprep.subr.mxu0 0.0
    %520 = vmatpush2.msra.mxu0 0.0
    %521 = vmatprep.subr.mxu0 0.0
    %522 = vmatpush2.msra.mxu0 0.0
    %523 = vmatprep.subr.mxu0 0.0
    %524 = vmatpush2.msra.mxu0 0.0
    %525 = vmatprep.subr.mxu0 0.0
    %526 = vmatpush2.msra.mxu0 0.0
    %527 = vmatprep.subr.mxu0 0.0
    %528 = vmatpush2.msra.mxu0 0.0
    %529 = vmatprep.subr.mxu0 0.0
    %530 = vmatpush2.msra.mxu0 0.0
    %531 = vmatprep.subr.mxu0 0.0
    %532 = vmatpush2.msra.mxu0 0.0
    %533 = vmatprep.subr.mxu0 0.0
    %534 = vmatpush2.msra.mxu0 0.0
    %535 = vmatprep.subr.mxu0 0.0
    %536 = vmatpush2.msra.mxu0 0.0
    %537 = vmatprep.subr.mxu0 0.0
    %538 = vmatpush2.msra.mxu0 0.0
    %539 = vmatprep.subr.mxu0 0.0
    %540 = vmatpush2.msra.mxu0 0.0
    %541 = vmatprep.subr.mxu0 0.0
    %542 = vmatpush2.msra.mxu0 0.0
    %543 = vmatprep.subr.mxu0 0.0
    %544 = vmatpush2.msra.mxu0 0.0
    %545 = vmatprep.subr.mxu0 0.0
    %546 = vmatpush2.msra.mxu0 0.0
    %547 = vmatprep.subr.mxu0 0.0
    %548 = vmatpush2.msra.mxu0 0.0
    %549 = vmatprep.subr.mxu0 0.0
    %550 = vmatpush2.msra.mxu0 0.0
    %551 = vmatprep.mubr.f32.mxu0 0.0
    %552 = vmatmul.mubr.f32.gmra.mxu0 %v473
    %v553 = vpop.f32.mrf.mxu0
    %v554 = vadd.f32 0.0, %v553
    %v555 = vpop.f32.mrf.mxu0
    %v556 = vadd.f32 0.0, %v555
    %557 = vdwg.mxu0
    %558 = vmatprep.subr.mxu0 0.0
    %559 = vmatpush1.msra.mxu0 0.0
    %560 = vmatprep.subr.mxu0 0.0
    %561 = vmatpush1.msra.mxu0 0.0
    %562 = vmatprep.subr.mxu0 0.0
    %563 = vmatpush1.msra.mxu0 0.0
    %564 = vmatprep.subr.mxu0 0.0
    %565 = vmatpush1.msra.mxu0 0.0
    %566 = vmatprep.subr.mxu0 0.0
    %567 = vmatpush1.msra.mxu0 0.0
    %568 = vmatprep.subr.mxu0 0.0
    %569 = vmatpush1.msra.mxu0 0.0
    %570 = vmatprep.subr.mxu0 0.0
    %571 = vmatpush1.msra.mxu0 0.0
    %572 = vmatprep.subr.mxu0 0.0
    %573 = vmatpush1.msra.mxu0 0.0
    %574 = vmatprep.subr.mxu0 0.0
    %575 = vmatpush1.msra.mxu0 0.0
    %576 = vmatprep.subr.mxu0 0.0
    %577 = vmatpush1.msra.mxu0 0.0
    %578 = vmatprep.subr.mxu0 0.0
    %579 = vmatpush1.msra.mxu0 0.0
    %580 = vmatprep.subr.mxu0 0.0
    %581 = vmatpush1.msra.mxu0 0.0
    %582 = vmatprep.subr.mxu0 0.0
    %583 = vmatpush1.msra.mxu0 0.0
    %584 = vmatprep.subr.mxu0 0.0
    %585 = vmatpush1.msra.mxu0 0.0
    %586 = vmatprep.subr.mxu0 0.0
    %587 = vmatpush1.msra.mxu0 0.0
    %588 = vmatprep.subr.mxu0 %v485
    %589 = vmatpush1.msra.mxu0 %v482
    %590 = vmatprep.subr.mxu0 0.0
    %591 = vmatpush2.msra.mxu0 0.0
    %592 = vmatprep.subr.mxu0 0.0
    %593 = vmatpush2.msra.mxu0 0.0
    %594 = vmatprep.subr.mxu0 0.0
    %595 = vmatpush2.msra.mxu0 0.0
    %596 = vmatprep.subr.mxu0 0.0
    %597 = vmatpush2.msra.mxu0 0.0
    %598 = vmatprep.subr.mxu0 0.0
    %599 = vmatpush2.msra.mxu0 0.0
    %600 = vmatprep.subr.mxu0 0.0
    %601 = vmatpush2.msra.mxu0 0.0
    %602 = vmatprep.subr.mxu0 0.0
    %603 = vmatpush2.msra.mxu0 0.0
    %604 = vmatprep.subr.mxu0 0.0
    %605 = vmatpush2.msra.mxu0 0.0
    %606 = vmatprep.subr.mxu0 0.0
    %607 = vmatpush2.msra.mxu0 0.0
    %608 = vmatprep.subr.mxu0 0.0
    %609 = vmatpush2.msra.mxu0 0.0
    %610 = vmatprep.subr.mxu0 0.0
    %611 = vmatpush2.msra.mxu0 0.0
    %612 = vmatprep.subr.mxu0 0.0
    %613 = vmatpush2.msra.mxu0 0.0
    %614 = vmatprep.subr.mxu0 0.0
    %615 = vmatpush2.msra.mxu0 0.0
    %616 = vmatprep.subr.mxu0 0.0
    %617 = vmatpush2.msra.mxu0 0.0
    %618 = vmatprep.subr.mxu0 0.0
    %619 = vmatpush2.msra.mxu0 0.0
    %620 = vmatprep.subr.mxu0 0.0
    %621 = vmatpush2.msra.mxu0 0.0
    %622 = vmatprep.mubr.f32.mxu0 0.0
    %623 = vmatmul.mubr.f32.gmra.mxu0 %v473
    %v624 = vpop.f32.mrf.mxu0
    %v625 = vadd.f32 0.0, %v624
    %v626 = vpop.f32.mrf.mxu0
    %v627 = vadd.f32 0.0, %v626
    %628 = vdwg.mxu0
    %v629 = vadd.f32 %v369, %v554
    %v630 = vadd.f32 %v371, %v556
    %v631 = vadd.f32 %v440, %v625
    %v632 = vadd.f32 %v442, %v627
    %633 = vrot.lane.b32.xlu0 %v63, 1
    %v634 = vpop.permute.xlu0 %633
    %635 = vrot.lane.b32.xlu0 %v67, 1
    %v636 = vpop.permute.xlu0 %635
    %637 = vrot.lane.b32.xlu0 %v65, 1
    %v638 = vpop.permute.xlu0 %637
    %639 = vrot.lane.b32.xlu0 %v70, 1
    %v640 = vpop.permute.xlu0 %639
    %vm641 = vcmp.lt.s32.totalorder %v81, 1
    %v642 = vsel %vm641, %v638, %v640
    %v643 = vsel %vm641, %v636, %v638
    %v644 = vsel %vm641, %v634, %v636
    %v645 = vsel %vm641, %v640, %v634
    %s646 = scalar_lea.vmem %s3, 48
    %v647 = vld [vmem:[%s646] sm:$0xff]
    %v648 = vld [vmem:[%s646 + $0x8] sm:$0xff]
    %v651 = vcombine.high %v647, %v647
    %v652 = vcombine.high %v648, %v648
    %v655 = vmul.f32 %v645, %v647
    %v656 = vmul.f32 %v644, %v651
    %v657 = vmul.f32 %v643, %v648
    %v658 = vmul.f32 %v642, %v652
    %s659 = scalar_lea.vmem [#allocation2], 24
    %v660 = vld [vmem:[%s659] sm:$0xff]
    %v662 = vsel %vm128, %v660, 0
    %v665 = vsel %vm132, %v655, 0
    %v668 = vsel %vm132, %v656, 0
    %v671 = vsel %vm132, %v657, 0
    %v674 = vsel %vm132, %v658, 0
    %676 = vmatprep.subr.mxu0 0.0
    %677 = vmatpush1.msra.mxu0 0.0
    %678 = vmatprep.subr.mxu0 0.0
    %679 = vmatpush1.msra.mxu0 0.0
    %680 = vmatprep.subr.mxu0 0.0
    %681 = vmatpush1.msra.mxu0 0.0
    %682 = vmatprep.subr.mxu0 0.0
    %683 = vmatpush1.msra.mxu0 0.0
    %684 = vmatprep.subr.mxu0 0.0
    %685 = vmatpush1.msra.mxu0 0.0
    %686 = vmatprep.subr.mxu0 0.0
    %687 = vmatpush1.msra.mxu0 0.0
    %688 = vmatprep.subr.mxu0 0.0
    %689 = vmatpush1.msra.mxu0 0.0
    %690 = vmatprep.subr.mxu0 0.0
    %691 = vmatpush1.msra.mxu0 0.0
    %692 = vmatprep.subr.mxu0 0.0
    %693 = vmatpush1.msra.mxu0 0.0
    %694 = vmatprep.subr.mxu0 0.0
    %695 = vmatpush1.msra.mxu0 0.0
    %696 = vmatprep.subr.mxu0 0.0
    %697 = vmatpush1.msra.mxu0 0.0
    %698 = vmatprep.subr.mxu0 0.0
    %699 = vmatpush1.msra.mxu0 0.0
    %700 = vmatprep.subr.mxu0 0.0
    %701 = vmatpush1.msra.mxu0 0.0
    %702 = vmatprep.subr.mxu0 0.0
    %703 = vmatpush1.msra.mxu0 0.0
    %704 = vmatprep.subr.mxu0 0.0
    %705 = vmatpush1.msra.mxu0 0.0
    %706 = vmatprep.subr.mxu0 %v668
    %707 = vmatpush1.msra.mxu0 %v665
    %708 = vmatprep.subr.mxu0 0.0
    %709 = vmatpush2.msra.mxu0 0.0
    %710 = vmatprep.subr.mxu0 0.0
    %711 = vmatpush2.msra.mxu0 0.0
    %712 = vmatprep.subr.mxu0 0.0
    %713 = vmatpush2.msra.mxu0 0.0
    %714 = vmatprep.subr.mxu0 0.0
    %715 = vmatpush2.msra.mxu0 0.0
    %716 = vmatprep.subr.mxu0 0.0
    %717 = vmatpush2.msra.mxu0 0.0
    %718 = vmatprep.subr.mxu0 0.0
    %719 = vmatpush2.msra.mxu0 0.0
    %720 = vmatprep.subr.mxu0 0.0
    %721 = vmatpush2.msra.mxu0 0.0
    %722 = vmatprep.subr.mxu0 0.0
    %723 = vmatpush2.msra.mxu0 0.0
    %724 = vmatprep.subr.mxu0 0.0
    %725 = vmatpush2.msra.mxu0 0.0
    %726 = vmatprep.subr.mxu0 0.0
    %727 = vmatpush2.msra.mxu0 0.0
    %728 = vmatprep.subr.mxu0 0.0
    %729 = vmatpush2.msra.mxu0 0.0
    %730 = vmatprep.subr.mxu0 0.0
    %731 = vmatpush2.msra.mxu0 0.0
    %732 = vmatprep.subr.mxu0 0.0
    %733 = vmatpush2.msra.mxu0 0.0
    %734 = vmatprep.subr.mxu0 0.0
    %735 = vmatpush2.msra.mxu0 0.0
    %736 = vmatprep.subr.mxu0 0.0
    %737 = vmatpush2.msra.mxu0 0.0
    %738 = vmatprep.subr.mxu0 0.0
    %739 = vmatpush2.msra.mxu0 0.0
    %740 = vmatprep.mubr.f32.mxu0 0.0
    %741 = vmatmul.mubr.f32.gmra.mxu0 %v662
    %v742 = vpop.f32.mrf.mxu0
    %v743 = vadd.f32 0.0, %v742
    %v744 = vpop.f32.mrf.mxu0
    %v745 = vadd.f32 0.0, %v744
    %746 = vdwg.mxu0
    %747 = vmatprep.subr.mxu0 0.0
    %748 = vmatpush1.msra.mxu0 0.0
    %749 = vmatprep.subr.mxu0 0.0
    %750 = vmatpush1.msra.mxu0 0.0
    %751 = vmatprep.subr.mxu0 0.0
    %752 = vmatpush1.msra.mxu0 0.0
    %753 = vmatprep.subr.mxu0 0.0
    %754 = vmatpush1.msra.mxu0 0.0
    %755 = vmatprep.subr.mxu0 0.0
    %756 = vmatpush1.msra.mxu0 0.0
    %757 = vmatprep.subr.mxu0 0.0
    %758 = vmatpush1.msra.mxu0 0.0
    %759 = vmatprep.subr.mxu0 0.0
    %760 = vmatpush1.msra.mxu0 0.0
    %761 = vmatprep.subr.mxu0 0.0
    %762 = vmatpush1.msra.mxu0 0.0
    %763 = vmatprep.subr.mxu0 0.0
    %764 = vmatpush1.msra.mxu0 0.0
    %765 = vmatprep.subr.mxu0 0.0
    %766 = vmatpush1.msra.mxu0 0.0
    %767 = vmatprep.subr.mxu0 0.0
    %768 = vmatpush1.msra.mxu0 0.0
    %769 = vmatprep.subr.mxu0 0.0
    %770 = vmatpush1.msra.mxu0 0.0
    %771 = vmatprep.subr.mxu0 0.0
    %772 = vmatpush1.msra.mxu0 0.0
    %773 = vmatprep.subr.mxu0 0.0
    %774 = vmatpush1.msra.mxu0 0.0
    %775 = vmatprep.subr.mxu0 0.0
    %776 = vmatpush1.msra.mxu0 0.0
    %777 = vmatprep.subr.mxu0 %v674
    %778 = vmatpush1.msra.mxu0 %v671
    %779 = vmatprep.subr.mxu0 0.0
    %780 = vmatpush2.msra.mxu0 0.0
    %781 = vmatprep.subr.mxu0 0.0
    %782 = vmatpush2.msra.mxu0 0.0
    %783 = vmatprep.subr.mxu0 0.0
    %784 = vmatpush2.msra.mxu0 0.0
    %785 = vmatprep.subr.mxu0 0.0
    %786 = vmatpush2.msra.mxu0 0.0
    %787 = vmatprep.subr.mxu0 0.0
    %788 = vmatpush2.msra.mxu0 0.0
    %789 = vmatprep.subr.mxu0 0.0
    %790 = vmatpush2.msra.mxu0 0.0
    %791 = vmatprep.subr.mxu0 0.0
    %792 = vmatpush2.msra.mxu0 0.0
    %793 = vmatprep.subr.mxu0 0.0
    %794 = vmatpush2.msra.mxu0 0.0
    %795 = vmatprep.subr.mxu0 0.0
    %796 = vmatpush2.msra.mxu0 0.0
    %797 = vmatprep.subr.mxu0 0.0
    %798 = vmatpush2.msra.mxu0 0.0
    %799 = vmatprep.subr.mxu0 0.0
    %800 = vmatpush2.msra.mxu0 0.0
    %801 = vmatprep.subr.mxu0 0.0
    %802 = vmatpush2.msra.mxu0 0.0
    %803 = vmatprep.subr.mxu0 0.0
    %804 = vmatpush2.msra.mxu0 0.0
    %805 = vmatprep.subr.mxu0 0.0
    %806 = vmatpush2.msra.mxu0 0.0
    %807 = vmatprep.subr.mxu0 0.0
    %808 = vmatpush2.msra.mxu0 0.0
    %809 = vmatprep.subr.mxu0 0.0
    %810 = vmatpush2.msra.mxu0 0.0
    %811 = vmatprep.mubr.f32.mxu0 0.0
    %812 = vmatmul.mubr.f32.gmra.mxu0 %v662
    %v813 = vpop.f32.mrf.mxu0
    %v814 = vadd.f32 0.0, %v813
    %v815 = vpop.f32.mrf.mxu0
    %v816 = vadd.f32 0.0, %v815
    %817 = vdwg.mxu0
    %v818 = vadd.f32 %v629, %v743
    %v819 = vadd.f32 %v630, %v745
    %v820 = vadd.f32 %v631, %v814
    %v821 = vadd.f32 %v632, %v816
    %s822 = scalar_lea.vmem %s3, 64
    %v823 = vld [vmem:[%s822] sm:$0xff]
    %v824 = vld [vmem:[%s822 + $0x8] sm:$0xff]
    %v827 = vcombine.high %v823, %v823
    %v828 = vcombine.high %v824, %v824
    %v831 = vmul.f32 %v63, %v823
    %v832 = vmul.f32 %v67, %v827
    %v833 = vmul.f32 %v65, %v824
    %v834 = vmul.f32 %v70, %v828
    %s835 = scalar_lea.vmem [#allocation2], 32
    %v836 = vld [vmem:[%s835] sm:$0xff]
    %v838 = vsel %vm128, %v836, 0
    %v841 = vsel %vm132, %v831, 0
    %v844 = vsel %vm132, %v832, 0
    %v847 = vsel %vm132, %v833, 0
    %v850 = vsel %vm132, %v834, 0
    %852 = vmatprep.subr.mxu0 0.0
    %853 = vmatpush1.msra.mxu0 0.0
    %854 = vmatprep.subr.mxu0 0.0
    %855 = vmatpush1.msra.mxu0 0.0
    %856 = vmatprep.subr.mxu0 0.0
    %857 = vmatpush1.msra.mxu0 0.0
    %858 = vmatprep.subr.mxu0 0.0
    %859 = vmatpush1.msra.mxu0 0.0
    %860 = vmatprep.subr.mxu0 0.0
    %861 = vmatpush1.msra.mxu0 0.0
    %862 = vmatprep.subr.mxu0 0.0
    %863 = vmatpush1.msra.mxu0 0.0
    %864 = vmatprep.subr.mxu0 0.0
    %865 = vmatpush1.msra.mxu0 0.0
    %866 = vmatprep.subr.mxu0 0.0
    %867 = vmatpush1.msra.mxu0 0.0
    %868 = vmatprep.subr.mxu0 0.0
    %869 = vmatpush1.msra.mxu0 0.0
    %870 = vmatprep.subr.mxu0 0.0
    %871 = vmatpush1.msra.mxu0 0.0
    %872 = vmatprep.subr.mxu0 0.0
    %873 = vmatpush1.msra.mxu0 0.0
    %874 = vmatprep.subr.mxu0 0.0
    %875 = vmatpush1.msra.mxu0 0.0
    %876 = vmatprep.subr.mxu0 0.0
    %877 = vmatpush1.msra.mxu0 0.0
    %878 = vmatprep.subr.mxu0 0.0
    %879 = vmatpush1.msra.mxu0 0.0
    %880 = vmatprep.subr.mxu0 0.0
    %881 = vmatpush1.msra.mxu0 0.0
    %882 = vmatprep.subr.mxu0 %v844
    %883 = vmatpush1.msra.mxu0 %v841
    %884 = vmatprep.subr.mxu0 0.0
    %885 = vmatpush2.msra.mxu0 0.0
    %886 = vmatprep.subr.mxu0 0.0
    %887 = vmatpush2.msra.mxu0 0.0
    %888 = vmatprep.subr.mxu0 0.0
    %889 = vmatpush2.msra.mxu0 0.0
    %890 = vmatprep.subr.mxu0 0.0
    %891 = vmatpush2.msra.mxu0 0.0
    %892 = vmatprep.subr.mxu0 0.0
    %893 = vmatpush2.msra.mxu0 0.0
    %894 = vmatprep.subr.mxu0 0.0
    %895 = vmatpush2.msra.mxu0 0.0
    %896 = vmatprep.subr.mxu0 0.0
    %897 = vmatpush2.msra.mxu0 0.0
    %898 = vmatprep.subr.mxu0 0.0
    %899 = vmatpush2.msra.mxu0 0.0
    %900 = vmatprep.subr.mxu0 0.0
    %901 = vmatpush2.msra.mxu0 0.0
    %902 = vmatprep.subr.mxu0 0.0
    %903 = vmatpush2.msra.mxu0 0.0
    %904 = vmatprep.subr.mxu0 0.0
    %905 = vmatpush2.msra.mxu0 0.0
    %906 = vmatprep.subr.mxu0 0.0
    %907 = vmatpush2.msra.mxu0 0.0
    %908 = vmatprep.subr.mxu0 0.0
    %909 = vmatpush2.msra.mxu0 0.0
    %910 = vmatprep.subr.mxu0 0.0
    %911 = vmatpush2.msra.mxu0 0.0
    %912 = vmatprep.subr.mxu0 0.0
    %913 = vmatpush2.msra.mxu0 0.0
    %914 = vmatprep.subr.mxu0 0.0
    %915 = vmatpush2.msra.mxu0 0.0
    %916 = vmatprep.mubr.f32.mxu0 0.0
    %917 = vmatmul.mubr.f32.gmra.mxu0 %v838
    %v918 = vpop.f32.mrf.mxu0
    %v919 = vadd.f32 0.0, %v918
    %v920 = vpop.f32.mrf.mxu0
    %v921 = vadd.f32 0.0, %v920
    %922 = vdwg.mxu0
    %923 = vmatprep.subr.mxu0 0.0
    %924 = vmatpush1.msra.mxu0 0.0
    %925 = vmatprep.subr.mxu0 0.0
    %926 = vmatpush1.msra.mxu0 0.0
    %927 = vmatprep.subr.mxu0 0.0
    %928 = vmatpush1.msra.mxu0 0.0
    %929 = vmatprep.subr.mxu0 0.0
    %930 = vmatpush1.msra.mxu0 0.0
    %931 = vmatprep.subr.mxu0 0.0
    %932 = vmatpush1.msra.mxu0 0.0
    %933 = vmatprep.subr.mxu0 0.0
    %934 = vmatpush1.msra.mxu0 0.0
    %935 = vmatprep.subr.mxu0 0.0
    %936 = vmatpush1.msra.mxu0 0.0
    %937 = vmatprep.subr.mxu0 0.0
    %938 = vmatpush1.msra.mxu0 0.0
    %939 = vmatprep.subr.mxu0 0.0
    %940 = vmatpush1.msra.mxu0 0.0
    %941 = vmatprep.subr.mxu0 0.0
    %942 = vmatpush1.msra.mxu0 0.0
    %943 = vmatprep.subr.mxu0 0.0
    %944 = vmatpush1.msra.mxu0 0.0
    %945 = vmatprep.subr.mxu0 0.0
    %946 = vmatpush1.msra.mxu0 0.0
    %947 = vmatprep.subr.mxu0 0.0
    %948 = vmatpush1.msra.mxu0 0.0
    %949 = vmatprep.subr.mxu0 0.0
    %950 = vmatpush1.msra.mxu0 0.0
    %951 = vmatprep.subr.mxu0 0.0
    %952 = vmatpush1.msra.mxu0 0.0
    %953 = vmatprep.subr.mxu0 %v850
    %954 = vmatpush1.msra.mxu0 %v847
    %955 = vmatprep.subr.mxu0 0.0
    %956 = vmatpush2.msra.mxu0 0.0
    %957 = vmatprep.subr.mxu0 0.0
    %958 = vmatpush2.msra.mxu0 0.0
    %959 = vmatprep.subr.mxu0 0.0
    %960 = vmatpush2.msra.mxu0 0.0
    %961 = vmatprep.subr.mxu0 0.0
    %962 = vmatpush2.msra.mxu0 0.0
    %963 = vmatprep.subr.mxu0 0.0
    %964 = vmatpush2.msra.mxu0 0.0
    %965 = vmatprep.subr.mxu0 0.0
    %966 = vmatpush2.msra.mxu0 0.0
    %967 = vmatprep.subr.mxu0 0.0
    %968 = vmatpush2.msra.mxu0 0.0
    %969 = vmatprep.subr.mxu0 0.0
    %970 = vmatpush2.msra.mxu0 0.0
    %971 = vmatprep.subr.mxu0 0.0
    %972 = vmatpush2.msra.mxu0 0.0
    %973 = vmatprep.subr.mxu0 0.0
    %974 = vmatpush2.msra.mxu0 0.0
    %975 = vmatprep.subr.mxu0 0.0
    %976 = vmatpush2.msra.mxu0 0.0
    %977 = vmatprep.subr.mxu0 0.0
    %978 = vmatpush2.msra.mxu0 0.0
    %979 = vmatprep.subr.mxu0 0.0
    %980 = vmatpush2.msra.mxu0 0.0
    %981 = vmatprep.subr.mxu0 0.0
    %982 = vmatpush2.msra.mxu0 0.0
    %983 = vmatprep.subr.mxu0 0.0
    %984 = vmatpush2.msra.mxu0 0.0
    %985 = vmatprep.subr.mxu0 0.0
    %986 = vmatpush2.msra.mxu0 0.0
    %987 = vmatprep.mubr.f32.mxu0 0.0
    %988 = vmatmul.mubr.f32.gmra.mxu0 %v838
    %v989 = vpop.f32.mrf.mxu0
    %v990 = vadd.f32 0.0, %v989
    %v991 = vpop.f32.mrf.mxu0
    %v992 = vadd.f32 0.0, %v991
    %993 = vdwg.mxu0
    %v994 = vadd.f32 %v818, %v919
    %v995 = vadd.f32 %v819, %v921
    %v996 = vadd.f32 %v820, %v990
    %v997 = vadd.f32 %v821, %v992
    %998 = vrot.lane.b32.xlu0 %v63, 127
    %v999 = vpop.permute.xlu0 %998
    %1000 = vrot.lane.b32.xlu0 %v67, 127
    %v1001 = vpop.permute.xlu0 %1000
    %1002 = vrot.lane.b32.xlu0 %v65, 127
    %v1003 = vpop.permute.xlu0 %1002
    %1004 = vrot.lane.b32.xlu0 %v70, 127
    %v1005 = vpop.permute.xlu0 %1004
    %vm1006 = vcmp.lt.s32.totalorder %v81, 127
    %v1007 = vsel %vm1006, %v1003, %v1005
    %v1008 = vsel %vm1006, %v1001, %v1003
    %v1009 = vsel %vm1006, %v999, %v1001
    %v1010 = vsel %vm1006, %v1005, %v999
    %s1011 = scalar_lea.vmem %s3, 80
    %v1012 = vld [vmem:[%s1011] sm:$0xff]
    %v1013 = vld [vmem:[%s1011 + $0x8] sm:$0xff]
    %v1016 = vcombine.high %v1012, %v1012
    %v1017 = vcombine.high %v1013, %v1013
    %v1020 = vmul.f32 %v1009, %v1012
    %v1021 = vmul.f32 %v1008, %v1016
    %v1022 = vmul.f32 %v1007, %v1013
    %v1023 = vmul.f32 %v1010, %v1017
    %s1024 = scalar_lea.vmem [#allocation2], 40
    %v1025 = vld [vmem:[%s1024] sm:$0xff]
    %v1027 = vsel %vm128, %v1025, 0
    %v1030 = vsel %vm132, %v1020, 0
    %v1033 = vsel %vm132, %v1021, 0
    %v1036 = vsel %vm132, %v1022, 0
    %v1039 = vsel %vm132, %v1023, 0
    %1041 = vmatprep.subr.mxu0 0.0
    %1042 = vmatpush1.msra.mxu0 0.0
    %1043 = vmatprep.subr.mxu0 0.0
    %1044 = vmatpush1.msra.mxu0 0.0
    %1045 = vmatprep.subr.mxu0 0.0
    %1046 = vmatpush1.msra.mxu0 0.0
    %1047 = vmatprep.subr.mxu0 0.0
    %1048 = vmatpush1.msra.mxu0 0.0
    %1049 = vmatprep.subr.mxu0 0.0
    %1050 = vmatpush1.msra.mxu0 0.0
    %1051 = vmatprep.subr.mxu0 0.0
    %1052 = vmatpush1.msra.mxu0 0.0
    %1053 = vmatprep.subr.mxu0 0.0
    %1054 = vmatpush1.msra.mxu0 0.0
    %1055 = vmatprep.subr.mxu0 0.0
    %1056 = vmatpush1.msra.mxu0 0.0
    %1057 = vmatprep.subr.mxu0 0.0
    %1058 = vmatpush1.msra.mxu0 0.0
    %1059 = vmatprep.subr.mxu0 0.0
    %1060 = vmatpush1.msra.mxu0 0.0
    %1061 = vmatprep.subr.mxu0 0.0
    %1062 = vmatpush1.msra.mxu0 0.0
    %1063 = vmatprep.subr.mxu0 0.0
    %1064 = vmatpush1.msra.mxu0 0.0
    %1065 = vmatprep.subr.mxu0 0.0
    %1066 = vmatpush1.msra.mxu0 0.0
    %1067 = vmatprep.subr.mxu0 0.0
    %1068 = vmatpush1.msra.mxu0 0.0
    %1069 = vmatprep.subr.mxu0 0.0
    %1070 = vmatpush1.msra.mxu0 0.0
    %1071 = vmatprep.subr.mxu0 %v1033
    %1072 = vmatpush1.msra.mxu0 %v1030
    %1073 = vmatprep.subr.mxu0 0.0
    %1074 = vmatpush2.msra.mxu0 0.0
    %1075 = vmatprep.subr.mxu0 0.0
    %1076 = vmatpush2.msra.mxu0 0.0
    %1077 = vmatprep.subr.mxu0 0.0
    %1078 = vmatpush2.msra.mxu0 0.0
    %1079 = vmatprep.subr.mxu0 0.0
    %1080 = vmatpush2.msra.mxu0 0.0
    %1081 = vmatprep.subr.mxu0 0.0
    %1082 = vmatpush2.msra.mxu0 0.0
    %1083 = vmatprep.subr.mxu0 0.0
    %1084 = vmatpush2.msra.mxu0 0.0
    %1085 = vmatprep.subr.mxu0 0.0
    %1086 = vmatpush2.msra.mxu0 0.0
    %1087 = vmatprep.subr.mxu0 0.0
    %1088 = vmatpush2.msra.mxu0 0.0
    %1089 = vmatprep.subr.mxu0 0.0
    %1090 = vmatpush2.msra.mxu0 0.0
    %1091 = vmatprep.subr.mxu0 0.0
    %1092 = vmatpush2.msra.mxu0 0.0
    %1093 = vmatprep.subr.mxu0 0.0
    %1094 = vmatpush2.msra.mxu0 0.0
    %1095 = vmatprep.subr.mxu0 0.0
    %1096 = vmatpush2.msra.mxu0 0.0
    %1097 = vmatprep.subr.mxu0 0.0
    %1098 = vmatpush2.msra.mxu0 0.0
    %1099 = vmatprep.subr.mxu0 0.0
    %1100 = vmatpush2.msra.mxu0 0.0
    %1101 = vmatprep.subr.mxu0 0.0
    %1102 = vmatpush2.msra.mxu0 0.0
    %1103 = vmatprep.subr.mxu0 0.0
    %1104 = vmatpush2.msra.mxu0 0.0
    %1105 = vmatprep.mubr.f32.mxu0 0.0
    %1106 = vmatmul.mubr.f32.gmra.mxu0 %v1027
    %v1107 = vpop.f32.mrf.mxu0
    %v1108 = vadd.f32 0.0, %v1107
    %v1109 = vpop.f32.mrf.mxu0
    %v1110 = vadd.f32 0.0, %v1109
    %1111 = vdwg.mxu0
    %1112 = vmatprep.subr.mxu0 0.0
    %1113 = vmatpush1.msra.mxu0 0.0
    %1114 = vmatprep.subr.mxu0 0.0
    %1115 = vmatpush1.msra.mxu0 0.0
    %1116 = vmatprep.subr.mxu0 0.0
    %1117 = vmatpush1.msra.mxu0 0.0
    %1118 = vmatprep.subr.mxu0 0.0
    %1119 = vmatpush1.msra.mxu0 0.0
    %1120 = vmatprep.subr.mxu0 0.0
    %1121 = vmatpush1.msra.mxu0 0.0
    %1122 = vmatprep.subr.mxu0 0.0
    %1123 = vmatpush1.msra.mxu0 0.0
    %1124 = vmatprep.subr.mxu0 0.0
    %1125 = vmatpush1.msra.mxu0 0.0
    %1126 = vmatprep.subr.mxu0 0.0
    %1127 = vmatpush1.msra.mxu0 0.0
    %1128 = vmatprep.subr.mxu0 0.0
    %1129 = vmatpush1.msra.mxu0 0.0
    %1130 = vmatprep.subr.mxu0 0.0
    %1131 = vmatpush1.msra.mxu0 0.0
    %1132 = vmatprep.subr.mxu0 0.0
    %1133 = vmatpush1.msra.mxu0 0.0
    %1134 = vmatprep.subr.mxu0 0.0
    %1135 = vmatpush1.msra.mxu0 0.0
    %1136 = vmatprep.subr.mxu0 0.0
    %1137 = vmatpush1.msra.mxu0 0.0
    %1138 = vmatprep.subr.mxu0 0.0
    %1139 = vmatpush1.msra.mxu0 0.0
    %1140 = vmatprep.subr.mxu0 0.0
    %1141 = vmatpush1.msra.mxu0 0.0
    %1142 = vmatprep.subr.mxu0 %v1039
    %1143 = vmatpush1.msra.mxu0 %v1036
    %1144 = vmatprep.subr.mxu0 0.0
    %1145 = vmatpush2.msra.mxu0 0.0
    %1146 = vmatprep.subr.mxu0 0.0
    %1147 = vmatpush2.msra.mxu0 0.0
    %1148 = vmatprep.subr.mxu0 0.0
    %1149 = vmatpush2.msra.mxu0 0.0
    %1150 = vmatprep.subr.mxu0 0.0
    %1151 = vmatpush2.msra.mxu0 0.0
    %1152 = vmatprep.subr.mxu0 0.0
    %1153 = vmatpush2.msra.mxu0 0.0
    %1154 = vmatprep.subr.mxu0 0.0
    %1155 = vmatpush2.msra.mxu0 0.0
    %1156 = vmatprep.subr.mxu0 0.0
    %1157 = vmatpush2.msra.mxu0 0.0
    %1158 = vmatprep.subr.mxu0 0.0
    %1159 = vmatpush2.msra.mxu0 0.0
    %1160 = vmatprep.subr.mxu0 0.0
    %1161 = vmatpush2.msra.mxu0 0.0
    %1162 = vmatprep.subr.mxu0 0.0
    %1163 = vmatpush2.msra.mxu0 0.0
    %1164 = vmatprep.subr.mxu0 0.0
    %1165 = vmatpush2.msra.mxu0 0.0
    %1166 = vmatprep.subr.mxu0 0.0
    %1167 = vmatpush2.msra.mxu0 0.0
    %1168 = vmatprep.subr.mxu0 0.0
    %1169 = vmatpush2.msra.mxu0 0.0
    %1170 = vmatprep.subr.mxu0 0.0
    %1171 = vmatpush2.msra.mxu0 0.0
    %1172 = vmatprep.subr.mxu0 0.0
    %1173 = vmatpush2.msra.mxu0 0.0
    %1174 = vmatprep.subr.mxu0 0.0
    %1175 = vmatpush2.msra.mxu0 0.0
    %1176 = vmatprep.mubr.f32.mxu0 0.0
    %1177 = vmatmul.mubr.f32.gmra.mxu0 %v1027
    %v1178 = vpop.f32.mrf.mxu0
    %v1179 = vadd.f32 0.0, %v1178
    %v1180 = vpop.f32.mrf.mxu0
    %v1181 = vadd.f32 0.0, %v1180
    %1182 = vdwg.mxu0
    %v1183 = vadd.f32 %v994, %v1108
    %v1184 = vadd.f32 %v995, %v1110
    %v1185 = vadd.f32 %v996, %v1179
    %v1186 = vadd.f32 %v997, %v1181
    %1187 = vrot.lane.b32.xlu0 %v63, 113
    %v1188 = vpop.permute.xlu0 %1187
    %1189 = vrot.lane.b32.xlu0 %v67, 113
    %v1190 = vpop.permute.xlu0 %1189
    %1191 = vrot.lane.b32.xlu0 %v65, 113
    %v1192 = vpop.permute.xlu0 %1191
    %1193 = vrot.lane.b32.xlu0 %v70, 113
    %v1194 = vpop.permute.xlu0 %1193
    %vm1195 = vcmp.lt.s32.totalorder %v81, 113
    %v1196 = vsel %vm1195, %v1192, %v1194
    %v1197 = vsel %vm1195, %v1190, %v1192
    %v1198 = vsel %vm1195, %v1188, %v1190
    %v1199 = vsel %vm1195, %v1194, %v1188
    %s1200 = scalar_lea.vmem %s3, 96
    %v1201 = vld [vmem:[%s1200] sm:$0xff]
    %v1202 = vld [vmem:[%s1200 + $0x8] sm:$0xff]
    %v1205 = vcombine.high %v1201, %v1201
    %v1206 = vcombine.high %v1202, %v1202
    %v1209 = vmul.f32 %v1198, %v1201
    %v1210 = vmul.f32 %v1197, %v1205
    %v1211 = vmul.f32 %v1196, %v1202
    %v1212 = vmul.f32 %v1199, %v1206
    %s1213 = scalar_lea.vmem [#allocation2], 48
    %v1214 = vld [vmem:[%s1213] sm:$0xff]
    %v1216 = vsel %vm128, %v1214, 0
    %v1219 = vsel %vm132, %v1209, 0
    %v1222 = vsel %vm132, %v1210, 0
    %v1225 = vsel %vm132, %v1211, 0
    %v1228 = vsel %vm132, %v1212, 0
    %1230 = vmatprep.subr.mxu0 0.0
    %1231 = vmatpush1.msra.mxu0 0.0
    %1232 = vmatprep.subr.mxu0 0.0
    %1233 = vmatpush1.msra.mxu0 0.0
    %1234 = vmatprep.subr.mxu0 0.0
    %1235 = vmatpush1.msra.mxu0 0.0
    %1236 = vmatprep.subr.mxu0 0.0
    %1237 = vmatpush1.msra.mxu0 0.0
    %1238 = vmatprep.subr.mxu0 0.0
    %1239 = vmatpush1.msra.mxu0 0.0
    %1240 = vmatprep.subr.mxu0 0.0
    %1241 = vmatpush1.msra.mxu0 0.0
    %1242 = vmatprep.subr.mxu0 0.0
    %1243 = vmatpush1.msra.mxu0 0.0
    %1244 = vmatprep.subr.mxu0 0.0
    %1245 = vmatpush1.msra.mxu0 0.0
    %1246 = vmatprep.subr.mxu0 0.0
    %1247 = vmatpush1.msra.mxu0 0.0
    %1248 = vmatprep.subr.mxu0 0.0
    %1249 = vmatpush1.msra.mxu0 0.0
    %1250 = vmatprep.subr.mxu0 0.0
    %1251 = vmatpush1.msra.mxu0 0.0
    %1252 = vmatprep.subr.mxu0 0.0
    %1253 = vmatpush1.msra.mxu0 0.0
    %1254 = vmatprep.subr.mxu0 0.0
    %1255 = vmatpush1.msra.mxu0 0.0
    %1256 = vmatprep.subr.mxu0 0.0
    %1257 = vmatpush1.msra.mxu0 0.0
    %1258 = vmatprep.subr.mxu0 0.0
    %1259 = vmatpush1.msra.mxu0 0.0
    %1260 = vmatprep.subr.mxu0 %v1222
    %1261 = vmatpush1.msra.mxu0 %v1219
    %1262 = vmatprep.subr.mxu0 0.0
    %1263 = vmatpush2.msra.mxu0 0.0
    %1264 = vmatprep.subr.mxu0 0.0
    %1265 = vmatpush2.msra.mxu0 0.0
    %1266 = vmatprep.subr.mxu0 0.0
    %1267 = vmatpush2.msra.mxu0 0.0
    %1268 = vmatprep.subr.mxu0 0.0
    %1269 = vmatpush2.msra.mxu0 0.0
    %1270 = vmatprep.subr.mxu0 0.0
    %1271 = vmatpush2.msra.mxu0 0.0
    %1272 = vmatprep.subr.mxu0 0.0
    %1273 = vmatpush2.msra.mxu0 0.0
    %1274 = vmatprep.subr.mxu0 0.0
    %1275 = vmatpush2.msra.mxu0 0.0
    %1276 = vmatprep.subr.mxu0 0.0
    %1277 = vmatpush2.msra.mxu0 0.0
    %1278 = vmatprep.subr.mxu0 0.0
    %1279 = vmatpush2.msra.mxu0 0.0
    %1280 = vmatprep.subr.mxu0 0.0
    %1281 = vmatpush2.msra.mxu0 0.0
    %1282 = vmatprep.subr.mxu0 0.0
    %1283 = vmatpush2.msra.mxu0 0.0
    %1284 = vmatprep.subr.mxu0 0.0
    %1285 = vmatpush2.msra.mxu0 0.0
    %1286 = vmatprep.subr.mxu0 0.0
    %1287 = vmatpush2.msra.mxu0 0.0
    %1288 = vmatprep.subr.mxu0 0.0
    %1289 = vmatpush2.msra.mxu0 0.0
    %1290 = vmatprep.subr.mxu0 0.0
    %1291 = vmatpush2.msra.mxu0 0.0
    %1292 = vmatprep.subr.mxu0 0.0
    %1293 = vmatpush2.msra.mxu0 0.0
    %1294 = vmatprep.mubr.f32.mxu0 0.0
    %1295 = vmatmul.mubr.f32.gmra.mxu0 %v1216
    %v1296 = vpop.f32.mrf.mxu0
    %v1297 = vadd.f32 0.0, %v1296
    %v1298 = vpop.f32.mrf.mxu0
    %v1299 = vadd.f32 0.0, %v1298
    %1300 = vdwg.mxu0
    %1301 = vmatprep.subr.mxu0 0.0
    %1302 = vmatpush1.msra.mxu0 0.0
    %1303 = vmatprep.subr.mxu0 0.0
    %1304 = vmatpush1.msra.mxu0 0.0
    %1305 = vmatprep.subr.mxu0 0.0
    %1306 = vmatpush1.msra.mxu0 0.0
    %1307 = vmatprep.subr.mxu0 0.0
    %1308 = vmatpush1.msra.mxu0 0.0
    %1309 = vmatprep.subr.mxu0 0.0
    %1310 = vmatpush1.msra.mxu0 0.0
    %1311 = vmatprep.subr.mxu0 0.0
    %1312 = vmatpush1.msra.mxu0 0.0
    %1313 = vmatprep.subr.mxu0 0.0
    %1314 = vmatpush1.msra.mxu0 0.0
    %1315 = vmatprep.subr.mxu0 0.0
    %1316 = vmatpush1.msra.mxu0 0.0
    %1317 = vmatprep.subr.mxu0 0.0
    %1318 = vmatpush1.msra.mxu0 0.0
    %1319 = vmatprep.subr.mxu0 0.0
    %1320 = vmatpush1.msra.mxu0 0.0
    %1321 = vmatprep.subr.mxu0 0.0
    %1322 = vmatpush1.msra.mxu0 0.0
    %1323 = vmatprep.subr.mxu0 0.0
    %1324 = vmatpush1.msra.mxu0 0.0
    %1325 = vmatprep.subr.mxu0 0.0
    %1326 = vmatpush1.msra.mxu0 0.0
    %1327 = vmatprep.subr.mxu0 0.0
    %1328 = vmatpush1.msra.mxu0 0.0
    %1329 = vmatprep.subr.mxu0 0.0
    %1330 = vmatpush1.msra.mxu0 0.0
    %1331 = vmatprep.subr.mxu0 %v1228
    %1332 = vmatpush1.msra.mxu0 %v1225
    %1333 = vmatprep.subr.mxu0 0.0
    %1334 = vmatpush2.msra.mxu0 0.0
    %1335 = vmatprep.subr.mxu0 0.0
    %1336 = vmatpush2.msra.mxu0 0.0
    %1337 = vmatprep.subr.mxu0 0.0
    %1338 = vmatpush2.msra.mxu0 0.0
    %1339 = vmatprep.subr.mxu0 0.0
    %1340 = vmatpush2.msra.mxu0 0.0
    %1341 = vmatprep.subr.mxu0 0.0
    %1342 = vmatpush2.msra.mxu0 0.0
    %1343 = vmatprep.subr.mxu0 0.0
    %1344 = vmatpush2.msra.mxu0 0.0
    %1345 = vmatprep.subr.mxu0 0.0
    %1346 = vmatpush2.msra.mxu0 0.0
    %1347 = vmatprep.subr.mxu0 0.0
    %1348 = vmatpush2.msra.mxu0 0.0
    %1349 = vmatprep.subr.mxu0 0.0
    %1350 = vmatpush2.msra.mxu0 0.0
    %1351 = vmatprep.subr.mxu0 0.0
    %1352 = vmatpush2.msra.mxu0 0.0
    %1353 = vmatprep.subr.mxu0 0.0
    %1354 = vmatpush2.msra.mxu0 0.0
    %1355 = vmatprep.subr.mxu0 0.0
    %1356 = vmatpush2.msra.mxu0 0.0
    %1357 = vmatprep.subr.mxu0 0.0
    %1358 = vmatpush2.msra.mxu0 0.0
    %1359 = vmatprep.subr.mxu0 0.0
    %1360 = vmatpush2.msra.mxu0 0.0
    %1361 = vmatprep.subr.mxu0 0.0
    %1362 = vmatpush2.msra.mxu0 0.0
    %1363 = vmatprep.subr.mxu0 0.0
    %1364 = vmatpush2.msra.mxu0 0.0
    %1365 = vmatprep.mubr.f32.mxu0 0.0
    %1366 = vmatmul.mubr.f32.gmra.mxu0 %v1216
    %v1367 = vpop.f32.mrf.mxu0
    %v1368 = vadd.f32 0.0, %v1367
    %v1369 = vpop.f32.mrf.mxu0
    %v1370 = vadd.f32 0.0, %v1369
    %1371 = vdwg.mxu0
    %v1372 = vadd.f32 %v1183, %v1297
    %v1373 = vadd.f32 %v1184, %v1299
    %v1374 = vadd.f32 %v1185, %v1368
    %v1375 = vadd.f32 %v1186, %v1370
    %1376 = vrot.lane.b32.xlu0 %v63, 112
    %v1377 = vpop.permute.xlu0 %1376
    %1378 = vrot.lane.b32.xlu0 %v67, 112
    %v1379 = vpop.permute.xlu0 %1378
    %1380 = vrot.lane.b32.xlu0 %v65, 112
    %v1381 = vpop.permute.xlu0 %1380
    %1382 = vrot.lane.b32.xlu0 %v70, 112
    %v1383 = vpop.permute.xlu0 %1382
    %vm1384 = vcmp.lt.s32.totalorder %v81, 112
    %v1385 = vsel %vm1384, %v1381, %v1383
    %v1386 = vsel %vm1384, %v1379, %v1381
    %v1387 = vsel %vm1384, %v1377, %v1379
    %v1388 = vsel %vm1384, %v1383, %v1377
    %s1389 = scalar_lea.vmem %s3, 112
    %v1390 = vld [vmem:[%s1389] sm:$0xff]
    %v1391 = vld [vmem:[%s1389 + $0x8] sm:$0xff]
    %v1394 = vcombine.high %v1390, %v1390
    %v1395 = vcombine.high %v1391, %v1391
    %v1398 = vmul.f32 %v1387, %v1390
    %v1399 = vmul.f32 %v1386, %v1394
    %v1400 = vmul.f32 %v1385, %v1391
    %v1401 = vmul.f32 %v1388, %v1395
    %s1402 = scalar_lea.vmem [#allocation2], 56
    %v1403 = vld [vmem:[%s1402] sm:$0xff]
    %v1405 = vsel %vm128, %v1403, 0
    %v1408 = vsel %vm132, %v1398, 0
    %v1411 = vsel %vm132, %v1399, 0
    %v1414 = vsel %vm132, %v1400, 0
    %v1417 = vsel %vm132, %v1401, 0
    %1419 = vmatprep.subr.mxu0 0.0
    %1420 = vmatpush1.msra.mxu0 0.0
    %1421 = vmatprep.subr.mxu0 0.0
    %1422 = vmatpush1.msra.mxu0 0.0
    %1423 = vmatprep.subr.mxu0 0.0
    %1424 = vmatpush1.msra.mxu0 0.0
    %1425 = vmatprep.subr.mxu0 0.0
    %1426 = vmatpush1.msra.mxu0 0.0
    %1427 = vmatprep.subr.mxu0 0.0
    %1428 = vmatpush1.msra.mxu0 0.0
    %1429 = vmatprep.subr.mxu0 0.0
    %1430 = vmatpush1.msra.mxu0 0.0
    %1431 = vmatprep.subr.mxu0 0.0
    %1432 = vmatpush1.msra.mxu0 0.0
    %1433 = vmatprep.subr.mxu0 0.0
    %1434 = vmatpush1.msra.mxu0 0.0
    %1435 = vmatprep.subr.mxu0 0.0
    %1436 = vmatpush1.msra.mxu0 0.0
    %1437 = vmatprep.subr.mxu0 0.0
    %1438 = vmatpush1.msra.mxu0 0.0
    %1439 = vmatprep.subr.mxu0 0.0
    %1440 = vmatpush1.msra.mxu0 0.0
    %1441 = vmatprep.subr.mxu0 0.0
    %1442 = vmatpush1.msra.mxu0 0.0
    %1443 = vmatprep.subr.mxu0 0.0
    %1444 = vmatpush1.msra.mxu0 0.0
    %1445 = vmatprep.subr.mxu0 0.0
    %1446 = vmatpush1.msra.mxu0 0.0
    %1447 = vmatprep.subr.mxu0 0.0
    %1448 = vmatpush1.msra.mxu0 0.0
    %1449 = vmatprep.subr.mxu0 %v1411
    %1450 = vmatpush1.msra.mxu0 %v1408
    %1451 = vmatprep.subr.mxu0 0.0
    %1452 = vmatpush2.msra.mxu0 0.0
    %1453 = vmatprep.subr.mxu0 0.0
    %1454 = vmatpush2.msra.mxu0 0.0
    %1455 = vmatprep.subr.mxu0 0.0
    %1456 = vmatpush2.msra.mxu0 0.0
    %1457 = vmatprep.subr.mxu0 0.0
    %1458 = vmatpush2.msra.mxu0 0.0
    %1459 = vmatprep.subr.mxu0 0.0
    %1460 = vmatpush2.msra.mxu0 0.0
    %1461 = vmatprep.subr.mxu0 0.0
    %1462 = vmatpush2.msra.mxu0 0.0
    %1463 = vmatprep.subr.mxu0 0.0
    %1464 = vmatpush2.msra.mxu0 0.0
    %1465 = vmatprep.subr.mxu0 0.0
    %1466 = vmatpush2.msra.mxu0 0.0
    %1467 = vmatprep.subr.mxu0 0.0
    %1468 = vmatpush2.msra.mxu0 0.0
    %1469 = vmatprep.subr.mxu0 0.0
    %1470 = vmatpush2.msra.mxu0 0.0
    %1471 = vmatprep.subr.mxu0 0.0
    %1472 = vmatpush2.msra.mxu0 0.0
    %1473 = vmatprep.subr.mxu0 0.0
    %1474 = vmatpush2.msra.mxu0 0.0
    %1475 = vmatprep.subr.mxu0 0.0
    %1476 = vmatpush2.msra.mxu0 0.0
    %1477 = vmatprep.subr.mxu0 0.0
    %1478 = vmatpush2.msra.mxu0 0.0
    %1479 = vmatprep.subr.mxu0 0.0
    %1480 = vmatpush2.msra.mxu0 0.0
    %1481 = vmatprep.subr.mxu0 0.0
    %1482 = vmatpush2.msra.mxu0 0.0
    %1483 = vmatprep.mubr.f32.mxu0 0.0
    %1484 = vmatmul.mubr.f32.gmra.mxu0 %v1405
    %v1485 = vpop.f32.mrf.mxu0
    %v1486 = vadd.f32 0.0, %v1485
    %v1487 = vpop.f32.mrf.mxu0
    %v1488 = vadd.f32 0.0, %v1487
    %1489 = vdwg.mxu0
    %1490 = vmatprep.subr.mxu0 0.0
    %1491 = vmatpush1.msra.mxu0 0.0
    %1492 = vmatprep.subr.mxu0 0.0
    %1493 = vmatpush1.msra.mxu0 0.0
    %1494 = vmatprep.subr.mxu0 0.0
    %1495 = vmatpush1.msra.mxu0 0.0
    %1496 = vmatprep.subr.mxu0 0.0
    %1497 = vmatpush1.msra.mxu0 0.0
    %1498 = vmatprep.subr.mxu0 0.0
    %1499 = vmatpush1.msra.mxu0 0.0
    %1500 = vmatprep.subr.mxu0 0.0
    %1501 = vmatpush1.msra.mxu0 0.0
    %1502 = vmatprep.subr.mxu0 0.0
    %1503 = vmatpush1.msra.mxu0 0.0
    %1504 = vmatprep.subr.mxu0 0.0
    %1505 = vmatpush1.msra.mxu0 0.0
    %1506 = vmatprep.subr.mxu0 0.0
    %1507 = vmatpush1.msra.mxu0 0.0
    %1508 = vmatprep.subr.mxu0 0.0
    %1509 = vmatpush1.msra.mxu0 0.0
    %1510 = vmatprep.subr.mxu0 0.0
    %1511 = vmatpush1.msra.mxu0 0.0
    %1512 = vmatprep.subr.mxu0 0.0
    %1513 = vmatpush1.msra.mxu0 0.0
    %1514 = vmatprep.subr.mxu0 0.0
    %1515 = vmatpush1.msra.mxu0 0.0
    %1516 = vmatprep.subr.mxu0 0.0
    %1517 = vmatpush1.msra.mxu0 0.0
    %1518 = vmatprep.subr.mxu0 0.0
    %1519 = vmatpush1.msra.mxu0 0.0
    %1520 = vmatprep.subr.mxu0 %v1417
    %1521 = vmatpush1.msra.mxu0 %v1414
    %1522 = vmatprep.subr.mxu0 0.0
    %1523 = vmatpush2.msra.mxu0 0.0
    %1524 = vmatprep.subr.mxu0 0.0
    %1525 = vmatpush2.msra.mxu0 0.0
    %1526 = vmatprep.subr.mxu0 0.0
    %1527 = vmatpush2.msra.mxu0 0.0
    %1528 = vmatprep.subr.mxu0 0.0
    %1529 = vmatpush2.msra.mxu0 0.0
    %1530 = vmatprep.subr.mxu0 0.0
    %1531 = vmatpush2.msra.mxu0 0.0
    %1532 = vmatprep.subr.mxu0 0.0
    %1533 = vmatpush2.msra.mxu0 0.0
    %1534 = vmatprep.subr.mxu0 0.0
    %1535 = vmatpush2.msra.mxu0 0.0
    %1536 = vmatprep.subr.mxu0 0.0
    %1537 = vmatpush2.msra.mxu0 0.0
    %1538 = vmatprep.subr.mxu0 0.0
    %1539 = vmatpush2.msra.mxu0 0.0
    %1540 = vmatprep.subr.mxu0 0.0
    %1541 = vmatpush2.msra.mxu0 0.0
    %1542 = vmatprep.subr.mxu0 0.0
    %1543 = vmatpush2.msra.mxu0 0.0
    %1544 = vmatprep.subr.mxu0 0.0
    %1545 = vmatpush2.msra.mxu0 0.0
    %1546 = vmatprep.subr.mxu0 0.0
    %1547 = vmatpush2.msra.mxu0 0.0
    %1548 = vmatprep.subr.mxu0 0.0
    %1549 = vmatpush2.msra.mxu0 0.0
    %1550 = vmatprep.subr.mxu0 0.0
    %1551 = vmatpush2.msra.mxu0 0.0
    %1552 = vmatprep.subr.mxu0 0.0
    %1553 = vmatpush2.msra.mxu0 0.0
    %1554 = vmatprep.mubr.f32.mxu0 0.0
    %1555 = vmatmul.mubr.f32.gmra.mxu0 %v1405
    %v1556 = vpop.f32.mrf.mxu0
    %v1557 = vadd.f32 0.0, %v1556
    %v1558 = vpop.f32.mrf.mxu0
    %v1559 = vadd.f32 0.0, %v1558
    %1560 = vdwg.mxu0
    %v1561 = vadd.f32 %v1372, %v1486
    %v1562 = vadd.f32 %v1373, %v1488
    %v1563 = vadd.f32 %v1374, %v1557
    %v1564 = vadd.f32 %v1375, %v1559
    %1565 = vrot.lane.b32.xlu0 %v63, 111
    %v1566 = vpop.permute.xlu0 %1565
    %1567 = vrot.lane.b32.xlu0 %v67, 111
    %v1568 = vpop.permute.xlu0 %1567
    %1569 = vrot.lane.b32.xlu0 %v65, 111
    %v1570 = vpop.permute.xlu0 %1569
    %1571 = vrot.lane.b32.xlu0 %v70, 111
    %v1572 = vpop.permute.xlu0 %1571
    %vm1573 = vcmp.lt.s32.totalorder %v81, 111
    %v1574 = vsel %vm1573, %v1570, %v1572
    %v1575 = vsel %vm1573, %v1568, %v1570
    %v1576 = vsel %vm1573, %v1566, %v1568
    %v1577 = vsel %vm1573, %v1572, %v1566
    %s1578 = scalar_lea.vmem %s3, 128
    %v1579 = vld [vmem:[%s1578] sm:$0xff]
    %v1580 = vld [vmem:[%s1578 + $0x8] sm:$0xff]
    %v1583 = vcombine.high %v1579, %v1579
    %v1584 = vcombine.high %v1580, %v1580
    %v1587 = vmul.f32 %v1576, %v1579
    %v1588 = vmul.f32 %v1575, %v1583
    %v1589 = vmul.f32 %v1574, %v1580
    %v1590 = vmul.f32 %v1577, %v1584
    %s1591 = scalar_lea.vmem [#allocation2], 64
    %v1592 = vld [vmem:[%s1591] sm:$0xff]
    %v1594 = vsel %vm128, %v1592, 0
    %v1597 = vsel %vm132, %v1587, 0
    %v1600 = vsel %vm132, %v1588, 0
    %v1603 = vsel %vm132, %v1589, 0
    %v1606 = vsel %vm132, %v1590, 0
    %1608 = vmatprep.subr.mxu0 0.0
    %1609 = vmatpush1.msra.mxu0 0.0
    %1610 = vmatprep.subr.mxu0 0.0
    %1611 = vmatpush1.msra.mxu0 0.0
    %1612 = vmatprep.subr.mxu0 0.0
    %1613 = vmatpush1.msra.mxu0 0.0
    %1614 = vmatprep.subr.mxu0 0.0
    %1615 = vmatpush1.msra.mxu0 0.0
    %1616 = vmatprep.subr.mxu0 0.0
    %1617 = vmatpush1.msra.mxu0 0.0
    %1618 = vmatprep.subr.mxu0 0.0
    %1619 = vmatpush1.msra.mxu0 0.0
    %1620 = vmatprep.subr.mxu0 0.0
    %1621 = vmatpush1.msra.mxu0 0.0
    %1622 = vmatprep.subr.mxu0 0.0
    %1623 = vmatpush1.msra.mxu0 0.0
    %1624 = vmatprep.subr.mxu0 0.0
    %1625 = vmatpush1.msra.mxu0 0.0
    %1626 = vmatprep.subr.mxu0 0.0
    %1627 = vmatpush1.msra.mxu0 0.0
    %1628 = vmatprep.subr.mxu0 0.0
    %1629 = vmatpush1.msra.mxu0 0.0
    %1630 = vmatprep.subr.mxu0 0.0
    %1631 = vmatpush1.msra.mxu0 0.0
    %1632 = vmatprep.subr.mxu0 0.0
    %1633 = vmatpush1.msra.mxu0 0.0
    %1634 = vmatprep.subr.mxu0 0.0
    %1635 = vmatpush1.msra.mxu0 0.0
    %1636 = vmatprep.subr.mxu0 0.0
    %1637 = vmatpush1.msra.mxu0 0.0
    %1638 = vmatprep.subr.mxu0 %v1600
    %1639 = vmatpush1.msra.mxu0 %v1597
    %1640 = vmatprep.subr.mxu0 0.0
    %1641 = vmatpush2.msra.mxu0 0.0
    %1642 = vmatprep.subr.mxu0 0.0
    %1643 = vmatpush2.msra.mxu0 0.0
    %1644 = vmatprep.subr.mxu0 0.0
    %1645 = vmatpush2.msra.mxu0 0.0
    %1646 = vmatprep.subr.mxu0 0.0
    %1647 = vmatpush2.msra.mxu0 0.0
    %1648 = vmatprep.subr.mxu0 0.0
    %1649 = vmatpush2.msra.mxu0 0.0
    %1650 = vmatprep.subr.mxu0 0.0
    %1651 = vmatpush2.msra.mxu0 0.0
    %1652 = vmatprep.subr.mxu0 0.0
    %1653 = vmatpush2.msra.mxu0 0.0
    %1654 = vmatprep.subr.mxu0 0.0
    %1655 = vmatpush2.msra.mxu0 0.0
    %1656 = vmatprep.subr.mxu0 0.0
    %1657 = vmatpush2.msra.mxu0 0.0
    %1658 = vmatprep.subr.mxu0 0.0
    %1659 = vmatpush2.msra.mxu0 0.0
    %1660 = vmatprep.subr.mxu0 0.0
    %1661 = vmatpush2.msra.mxu0 0.0
    %1662 = vmatprep.subr.mxu0 0.0
    %1663 = vmatpush2.msra.mxu0 0.0
    %1664 = vmatprep.subr.mxu0 0.0
    %1665 = vmatpush2.msra.mxu0 0.0
    %1666 = vmatprep.subr.mxu0 0.0
    %1667 = vmatpush2.msra.mxu0 0.0
    %1668 = vmatprep.subr.mxu0 0.0
    %1669 = vmatpush2.msra.mxu0 0.0
    %1670 = vmatprep.subr.mxu0 0.0
    %1671 = vmatpush2.msra.mxu0 0.0
    %1672 = vmatprep.mubr.f32.mxu0 0.0
    %1673 = vmatmul.mubr.f32.gmra.mxu0 %v1594
    %v1674 = vpop.f32.mrf.mxu0
    %v1675 = vadd.f32 0.0, %v1674
    %v1676 = vpop.f32.mrf.mxu0
    %v1677 = vadd.f32 0.0, %v1676
    %1678 = vdwg.mxu0
    %1679 = vmatprep.subr.mxu0 0.0
    %1680 = vmatpush1.msra.mxu0 0.0
    %1681 = vmatprep.subr.mxu0 0.0
    %1682 = vmatpush1.msra.mxu0 0.0
    %1683 = vmatprep.subr.mxu0 0.0
    %1684 = vmatpush1.msra.mxu0 0.0
    %1685 = vmatprep.subr.mxu0 0.0
    %1686 = vmatpush1.msra.mxu0 0.0
    %1687 = vmatprep.subr.mxu0 0.0
    %1688 = vmatpush1.msra.mxu0 0.0
    %1689 = vmatprep.subr.mxu0 0.0
    %1690 = vmatpush1.msra.mxu0 0.0
    %1691 = vmatprep.subr.mxu0 0.0
    %1692 = vmatpush1.msra.mxu0 0.0
    %1693 = vmatprep.subr.mxu0 0.0
    %1694 = vmatpush1.msra.mxu0 0.0
    %1695 = vmatprep.subr.mxu0 0.0
    %1696 = vmatpush1.msra.mxu0 0.0
    %1697 = vmatprep.subr.mxu0 0.0
    %1698 = vmatpush1.msra.mxu0 0.0
    %1699 = vmatprep.subr.mxu0 0.0
    %1700 = vmatpush1.msra.mxu0 0.0
    %1701 = vmatprep.subr.mxu0 0.0
    %1702 = vmatpush1.msra.mxu0 0.0
    %1703 = vmatprep.subr.mxu0 0.0
    %1704 = vmatpush1.msra.mxu0 0.0
    %1705 = vmatprep.subr.mxu0 0.0
    %1706 = vmatpush1.msra.mxu0 0.0
    %1707 = vmatprep.subr.mxu0 0.0
    %1708 = vmatpush1.msra.mxu0 0.0
    %1709 = vmatprep.subr.mxu0 %v1606
    %1710 = vmatpush1.msra.mxu0 %v1603
    %1711 = vmatprep.subr.mxu0 0.0
    %1712 = vmatpush2.msra.mxu0 0.0
    %1713 = vmatprep.subr.mxu0 0.0
    %1714 = vmatpush2.msra.mxu0 0.0
    %1715 = vmatprep.subr.mxu0 0.0
    %1716 = vmatpush2.msra.mxu0 0.0
    %1717 = vmatprep.subr.mxu0 0.0
    %1718 = vmatpush2.msra.mxu0 0.0
    %1719 = vmatprep.subr.mxu0 0.0
    %1720 = vmatpush2.msra.mxu0 0.0
    %1721 = vmatprep.subr.mxu0 0.0
    %1722 = vmatpush2.msra.mxu0 0.0
    %1723 = vmatprep.subr.mxu0 0.0
    %1724 = vmatpush2.msra.mxu0 0.0
    %1725 = vmatprep.subr.mxu0 0.0
    %1726 = vmatpush2.msra.mxu0 0.0
    %1727 = vmatprep.subr.mxu0 0.0
    %1728 = vmatpush2.msra.mxu0 0.0
    %1729 = vmatprep.subr.mxu0 0.0
    %1730 = vmatpush2.msra.mxu0 0.0
    %1731 = vmatprep.subr.mxu0 0.0
    %1732 = vmatpush2.msra.mxu0 0.0
    %1733 = vmatprep.subr.mxu0 0.0
    %1734 = vmatpush2.msra.mxu0 0.0
    %1735 = vmatprep.subr.mxu0 0.0
    %1736 = vmatpush2.msra.mxu0 0.0
    %1737 = vmatprep.subr.mxu0 0.0
    %1738 = vmatpush2.msra.mxu0 0.0
    %1739 = vmatprep.subr.mxu0 0.0
    %1740 = vmatpush2.msra.mxu0 0.0
    %1741 = vmatprep.subr.mxu0 0.0
    %1742 = vmatpush2.msra.mxu0 0.0
    %1743 = vmatprep.mubr.f32.mxu0 0.0
    %1744 = vmatmul.mubr.f32.gmra.mxu0 %v1594
    %v1745 = vpop.f32.mrf.mxu0
    %v1746 = vadd.f32 0.0, %v1745
    %v1747 = vpop.f32.mrf.mxu0
    %v1748 = vadd.f32 0.0, %v1747
    %1749 = vdwg.mxu0
    %v1750 = vadd.f32 %v1561, %v1675
    %v1751 = vadd.f32 %v1562, %v1677
    %v1752 = vadd.f32 %v1563, %v1746
    %v1753 = vadd.f32 %v1564, %v1748
    %v1754 = vld [vmem:[#allocation5] sm:$0xff]
    %1756 = vset.pattern.permute.xlu0 0
    %1757 = vperm.xlu0 %1756, %v1754
    %v1758 = vpop.permute.xlu0 %1757
    %v1760 = vadd.f32 %v1750, %v1758
    %v1761 = vadd.f32 %v1751, %v1758
    %v1762 = vadd.f32 %v1752, %v1758
    %v1763 = vadd.f32 %v1753, %v1758
    %v1764 = vmax.f32 %v1760, 0.0
    %v1765 = vmax.f32 %v1761, 0.0
    %v1766 = vmax.f32 %v1762, 0.0
    %v1767 = vmax.f32 %v1763, 0.0
    %v1768 = vld [vmem:[%s5] sm:$0x1]
    %v1769 = vld [vmem:[#allocation7] sm:$0xff]
    %v1770 = vld [vmem:[#allocation7 + $0x8] sm:$0xff]
    %v1771 = vld [vmem:[#allocation7 + $0x10] sm:$0xff]
    %v1772 = vld [vmem:[#allocation7 + $0x18] sm:$0xff]
    %v1773 = vld [vmem:[#allocation7 + $0x20] sm:$0xff]
    %v1774 = vld [vmem:[#allocation7 + $0x28] sm:$0xff]
    %v1775 = vld [vmem:[#allocation7 + $0x30] sm:$0xff]
    %v1776 = vld [vmem:[#allocation7 + $0x38] sm:$0xff]
    %v1777 = vld [vmem:[#allocation7 + $0x40] sm:$0xff]
    %v1778 = vld [vmem:[#allocation7 + $0x48] sm:$0xff]
    %v1779 = vld [vmem:[#allocation7 + $0x50] sm:$0xff]
    %v1780 = vld [vmem:[#allocation7 + $0x58] sm:$0xff]
    %v1781 = vld [vmem:[#allocation7 + $0x60] sm:$0xff]
    %v1782 = vld [vmem:[#allocation7 + $0x68] sm:$0xff]
    %v1783 = vld [vmem:[#allocation7 + $0x70] sm:$0xff]
    %v1784 = vld [vmem:[#allocation7 + $0x78] sm:$0xff]
    %v1785 = vld [vmem:[#allocation7 + $0x80] sm:$0xff]
    %v1786 = vld [vmem:[#allocation7 + $0x88] sm:$0xff]
    %v1787 = vld [vmem:[#allocation7 + $0x90] sm:$0xff]
    %v1788 = vld [vmem:[#allocation7 + $0x98] sm:$0xff]
    %v1789 = vld [vmem:[#allocation7 + $0xa0] sm:$0xff]
    %v1790 = vld [vmem:[#allocation7 + $0xa8] sm:$0xff]
    %v1791 = vld [vmem:[#allocation7 + $0xb0] sm:$0xff]
    %v1792 = vld [vmem:[#allocation7 + $0xb8] sm:$0xff]
    %v1793 = vld [vmem:[#allocation7 + $0xc0] sm:$0xff]
    %v1794 = vld [vmem:[#allocation7 + $0xc8] sm:$0xff]
    %v1795 = vld [vmem:[#allocation7 + $0xd0] sm:$0xff]
    %v1796 = vld [vmem:[#allocation7 + $0xd8] sm:$0xff]
    %v1797 = vld [vmem:[#allocation7 + $0xe0] sm:$0xff]
    %v1798 = vld [vmem:[#allocation7 + $0xe8] sm:$0xff]
    %v1799 = vld [vmem:[#allocation7 + $0xf0] sm:$0xff]
    %v1800 = vld [vmem:[#allocation7 + $0xf8] sm:$0xff]
    %1801 = vmatprep.subr.mxu0 0.0
    %1802 = vmatpush1.msra.mxu0 %v1784
    %1803 = vmatprep.subr.mxu0 0.0
    %1804 = vmatpush1.msra.mxu0 %v1783
    %1805 = vmatprep.subr.mxu0 0.0
    %1806 = vmatpush1.msra.mxu0 %v1782
    %1807 = vmatprep.subr.mxu0 0.0
    %1808 = vmatpush1.msra.mxu0 %v1781
    %1809 = vmatprep.subr.mxu0 0.0
    %1810 = vmatpush1.msra.mxu0 %v1780
    %1811 = vmatprep.subr.mxu0 0.0
    %1812 = vmatpush1.msra.mxu0 %v1779
    %1813 = vmatprep.subr.mxu0 0.0
    %1814 = vmatpush1.msra.mxu0 %v1778
    %1815 = vmatprep.subr.mxu0 0.0
    %1816 = vmatpush1.msra.mxu0 %v1777
    %1817 = vmatprep.subr.mxu0 0.0
    %1818 = vmatpush1.msra.mxu0 %v1776
    %1819 = vmatprep.subr.mxu0 0.0
    %1820 = vmatpush1.msra.mxu0 %v1775
    %1821 = vmatprep.subr.mxu0 0.0
    %1822 = vmatpush1.msra.mxu0 %v1774
    %1823 = vmatprep.subr.mxu0 0.0
    %1824 = vmatpush1.msra.mxu0 %v1773
    %1825 = vmatprep.subr.mxu0 0.0
    %1826 = vmatpush1.msra.mxu0 %v1772
    %1827 = vmatprep.subr.mxu0 0.0
    %1828 = vmatpush1.msra.mxu0 %v1771
    %1829 = vmatprep.subr.mxu0 0.0
    %1830 = vmatpush1.msra.mxu0 %v1770
    %1831 = vmatprep.subr.mxu0 0.0
    %1832 = vmatpush1.msra.mxu0 %v1769
    %1833 = vmatprep.subr.mxu0 0.0
    %1834 = vmatpush2.msra.mxu0 %v1800
    %1835 = vmatprep.subr.mxu0 0.0
    %1836 = vmatpush2.msra.mxu0 %v1799
    %1837 = vmatprep.subr.mxu0 0.0
    %1838 = vmatpush2.msra.mxu0 %v1798
    %1839 = vmatprep.subr.mxu0 0.0
    %1840 = vmatpush2.msra.mxu0 %v1797
    %1841 = vmatprep.subr.mxu0 0.0
    %1842 = vmatpush2.msra.mxu0 %v1796
    %1843 = vmatprep.subr.mxu0 0.0
    %1844 = vmatpush2.msra.mxu0 %v1795
    %1845 = vmatprep.subr.mxu0 0.0
    %1846 = vmatpush2.msra.mxu0 %v1794
    %1847 = vmatprep.subr.mxu0 0.0
    %1848 = vmatpush2.msra.mxu0 %v1793
    %1849 = vmatprep.subr.mxu0 0.0
    %1850 = vmatpush2.msra.mxu0 %v1792
    %1851 = vmatprep.subr.mxu0 0.0
    %1852 = vmatpush2.msra.mxu0 %v1791
    %1853 = vmatprep.subr.mxu0 0.0
    %1854 = vmatpush2.msra.mxu0 %v1790
    %1855 = vmatprep.subr.mxu0 0.0
    %1856 = vmatpush2.msra.mxu0 %v1789
    %1857 = vmatprep.subr.mxu0 0.0
    %1858 = vmatpush2.msra.mxu0 %v1788
    %1859 = vmatprep.subr.mxu0 0.0
    %1860 = vmatpush2.msra.mxu0 %v1787
    %1861 = vmatprep.subr.mxu0 0.0
    %1862 = vmatpush2.msra.mxu0 %v1786
    %1863 = vmatprep.subr.mxu0 0.0
    %1864 = vmatpush2.msra.mxu0 %v1785
    %1865 = vmatprep.mubr.f32.mxu0 %v1765
    %1866 = vmatmul.mubr.f32.gmra.mxu0 %v1764
    %v1867 = vpop.f32.mrf.mxu0
    %v1868 = vadd.f32 0.0, %v1867
    %v1869 = vpop.f32.mrf.mxu0
    %1870 = vdwg.mxu0
    %v1871 = vadd.f32 %v1768, %v1868
    %s1872 = scalar_lea.vmem [#allocation7], 256
    %v1873 = vld [vmem:[%s1872] sm:$0xff]
    %v1874 = vld [vmem:[%s1872 + $0x8] sm:$0xff]
    %v1875 = vld [vmem:[%s1872 + $0x10] sm:$0xff]
    %v1876 = vld [vmem:[%s1872 + $0x18] sm:$0xff]
    %v1877 = vld [vmem:[%s1872 + $0x20] sm:$0xff]
    %v1878 = vld [vmem:[%s1872 + $0x28] sm:$0xff]
    %v1879 = vld [vmem:[%s1872 + $0x30] sm:$0xff]
    %v1880 = vld [vmem:[%s1872 + $0x38] sm:$0xff]
    %v1881 = vld [vmem:[%s1872 + $0x40] sm:$0xff]
    %v1882 = vld [vmem:[%s1872 + $0x48] sm:$0xff]
    %v1883 = vld [vmem:[%s1872 + $0x50] sm:$0xff]
    %v1884 = vld [vmem:[%s1872 + $0x58] sm:$0xff]
    %v1885 = vld [vmem:[%s1872 + $0x60] sm:$0xff]
    %v1886 = vld [vmem:[%s1872 + $0x68] sm:$0xff]
    %v1887 = vld [vmem:[%s1872 + $0x70] sm:$0xff]
    %v1888 = vld [vmem:[%s1872 + $0x78] sm:$0xff]
    %v1889 = vld [vmem:[%s1872 + $0x80] sm:$0xff]
    %v1890 = vld [vmem:[%s1872 + $0x88] sm:$0xff]
    %v1891 = vld [vmem:[%s1872 + $0x90] sm:$0xff]
    %v1892 = vld [vmem:[%s1872 + $0x98] sm:$0xff]
    %v1893 = vld [vmem:[%s1872 + $0xa0] sm:$0xff]
    %v1894 = vld [vmem:[%s1872 + $0xa8] sm:$0xff]
    %v1895 = vld [vmem:[%s1872 + $0xb0] sm:$0xff]
    %v1896 = vld [vmem:[%s1872 + $0xb8] sm:$0xff]
    %v1897 = vld [vmem:[%s1872 + $0xc0] sm:$0xff]
    %v1898 = vld [vmem:[%s1872 + $0xc8] sm:$0xff]
    %v1899 = vld [vmem:[%s1872 + $0xd0] sm:$0xff]
    %v1900 = vld [vmem:[%s1872 + $0xd8] sm:$0xff]
    %v1901 = vld [vmem:[%s1872 + $0xe0] sm:$0xff]
    %v1902 = vld [vmem:[%s1872 + $0xe8] sm:$0xff]
    %v1903 = vld [vmem:[%s1872 + $0xf0] sm:$0xff]
    %v1904 = vld [vmem:[%s1872 + $0xf8] sm:$0xff]
    %v1907 = vrot.slane %v1764, 1
    %v1908 = vrot.slane %v1765, 1
    %1911 = vmatprep.subr.mxu0 0.0
    %1912 = vmatpush1.msra.mxu0 %v1888
    %1913 = vmatprep.subr.mxu0 0.0
    %1914 = vmatpush1.msra.mxu0 %v1887
    %1915 = vmatprep.subr.mxu0 0.0
    %1916 = vmatpush1.msra.mxu0 %v1886
    %1917 = vmatprep.subr.mxu0 0.0
    %1918 = vmatpush1.msra.mxu0 %v1885
    %1919 = vmatprep.subr.mxu0 0.0
    %1920 = vmatpush1.msra.mxu0 %v1884
    %1921 = vmatprep.subr.mxu0 0.0
    %1922 = vmatpush1.msra.mxu0 %v1883
    %1923 = vmatprep.subr.mxu0 0.0
    %1924 = vmatpush1.msra.mxu0 %v1882
    %1925 = vmatprep.subr.mxu0 0.0
    %1926 = vmatpush1.msra.mxu0 %v1881
    %1927 = vmatprep.subr.mxu0 0.0
    %1928 = vmatpush1.msra.mxu0 %v1880
    %1929 = vmatprep.subr.mxu0 0.0
    %1930 = vmatpush1.msra.mxu0 %v1879
    %1931 = vmatprep.subr.mxu0 0.0
    %1932 = vmatpush1.msra.mxu0 %v1878
    %1933 = vmatprep.subr.mxu0 0.0
    %1934 = vmatpush1.msra.mxu0 %v1877
    %1935 = vmatprep.subr.mxu0 0.0
    %1936 = vmatpush1.msra.mxu0 %v1876
    %1937 = vmatprep.subr.mxu0 0.0
    %1938 = vmatpush1.msra.mxu0 %v1875
    %1939 = vmatprep.subr.mxu0 0.0
    %1940 = vmatpush1.msra.mxu0 %v1874
    %1941 = vmatprep.subr.mxu0 0.0
    %1942 = vmatpush1.msra.mxu0 %v1873
    %1943 = vmatprep.subr.mxu0 0.0
    %1944 = vmatpush2.msra.mxu0 %v1904
    %1945 = vmatprep.subr.mxu0 0.0
    %1946 = vmatpush2.msra.mxu0 %v1903
    %1947 = vmatprep.subr.mxu0 0.0
    %1948 = vmatpush2.msra.mxu0 %v1902
    %1949 = vmatprep.subr.mxu0 0.0
    %1950 = vmatpush2.msra.mxu0 %v1901
    %1951 = vmatprep.subr.mxu0 0.0
    %1952 = vmatpush2.msra.mxu0 %v1900
    %1953 = vmatprep.subr.mxu0 0.0
    %1954 = vmatpush2.msra.mxu0 %v1899
    %1955 = vmatprep.subr.mxu0 0.0
    %1956 = vmatpush2.msra.mxu0 %v1898
    %1957 = vmatprep.subr.mxu0 0.0
    %1958 = vmatpush2.msra.mxu0 %v1897
    %1959 = vmatprep.subr.mxu0 0.0
    %1960 = vmatpush2.msra.mxu0 %v1896
    %1961 = vmatprep.subr.mxu0 0.0
    %1962 = vmatpush2.msra.mxu0 %v1895
    %1963 = vmatprep.subr.mxu0 0.0
    %1964 = vmatpush2.msra.mxu0 %v1894
    %1965 = vmatprep.subr.mxu0 0.0
    %1966 = vmatpush2.msra.mxu0 %v1893
    %1967 = vmatprep.subr.mxu0 0.0
    %1968 = vmatpush2.msra.mxu0 %v1892
    %1969 = vmatprep.subr.mxu0 0.0
    %1970 = vmatpush2.msra.mxu0 %v1891
    %1971 = vmatprep.subr.mxu0 0.0
    %1972 = vmatpush2.msra.mxu0 %v1890
    %1973 = vmatprep.subr.mxu0 0.0
    %1974 = vmatpush2.msra.mxu0 %v1889
    %1975 = vmatprep.mubr.f32.mxu0 %v1908
    %1976 = vmatmul.mubr.f32.gmra.mxu0 %v1907
    %v1977 = vpop.f32.mrf.mxu0
    %v1978 = vadd.f32 0.0, %v1977
    %v1979 = vpop.f32.mrf.mxu0
    %1980 = vdwg.mxu0
    %v1981 = vadd.f32 %v1871, %v1978
    %s1982 = scalar_lea.vmem [#allocation7], 512
    %v1983 = vld [vmem:[%s1982] sm:$0xff]
    %v1984 = vld [vmem:[%s1982 + $0x8] sm:$0xff]
    %v1985 = vld [vmem:[%s1982 + $0x10] sm:$0xff]
    %v1986 = vld [vmem:[%s1982 + $0x18] sm:$0xff]
    %v1987 = vld [vmem:[%s1982 + $0x20] sm:$0xff]
    %v1988 = vld [vmem:[%s1982 + $0x28] sm:$0xff]
    %v1989 = vld [vmem:[%s1982 + $0x30] sm:$0xff]
    %v1990 = vld [vmem:[%s1982 + $0x38] sm:$0xff]
    %v1991 = vld [vmem:[%s1982 + $0x40] sm:$0xff]
    %v1992 = vld [vmem:[%s1982 + $0x48] sm:$0xff]
    %v1993 = vld [vmem:[%s1982 + $0x50] sm:$0xff]
    %v1994 = vld [vmem:[%s1982 + $0x58] sm:$0xff]
    %v1995 = vld [vmem:[%s1982 + $0x60] sm:$0xff]
    %v1996 = vld [vmem:[%s1982 + $0x68] sm:$0xff]
    %v1997 = vld [vmem:[%s1982 + $0x70] sm:$0xff]
    %v1998 = vld [vmem:[%s1982 + $0x78] sm:$0xff]
    %v1999 = vld [vmem:[%s1982 + $0x80] sm:$0xff]
    %v2000 = vld [vmem:[%s1982 + $0x88] sm:$0xff]
    %v2001 = vld [vmem:[%s1982 + $0x90] sm:$0xff]
    %v2002 = vld [vmem:[%s1982 + $0x98] sm:$0xff]
    %v2003 = vld [vmem:[%s1982 + $0xa0] sm:$0xff]
    %v2004 = vld [vmem:[%s1982 + $0xa8] sm:$0xff]
    %v2005 = vld [vmem:[%s1982 + $0xb0] sm:$0xff]
    %v2006 = vld [vmem:[%s1982 + $0xb8] sm:$0xff]
    %v2007 = vld [vmem:[%s1982 + $0xc0] sm:$0xff]
    %v2008 = vld [vmem:[%s1982 + $0xc8] sm:$0xff]
    %v2009 = vld [vmem:[%s1982 + $0xd0] sm:$0xff]
    %v2010 = vld [vmem:[%s1982 + $0xd8] sm:$0xff]
    %v2011 = vld [vmem:[%s1982 + $0xe0] sm:$0xff]
    %v2012 = vld [vmem:[%s1982 + $0xe8] sm:$0xff]
    %v2013 = vld [vmem:[%s1982 + $0xf0] sm:$0xff]
    %v2014 = vld [vmem:[%s1982 + $0xf8] sm:$0xff]
    %v2015 = vrot.slane %v1764, 2
    %v2016 = vrot.slane %v1765, 2
    %2019 = vmatprep.subr.mxu0 0.0
    %2020 = vmatpush1.msra.mxu0 %v1998
    %2021 = vmatprep.subr.mxu0 0.0
    %2022 = vmatpush1.msra.mxu0 %v1997
    %2023 = vmatprep.subr.mxu0 0.0
    %2024 = vmatpush1.msra.mxu0 %v1996
    %2025 = vmatprep.subr.mxu0 0.0
    %2026 = vmatpush1.msra.mxu0 %v1995
    %2027 = vmatprep.subr.mxu0 0.0
    %2028 = vmatpush1.msra.mxu0 %v1994
    %2029 = vmatprep.subr.mxu0 0.0
    %2030 = vmatpush1.msra.mxu0 %v1993
    %2031 = vmatprep.subr.mxu0 0.0
    %2032 = vmatpush1.msra.mxu0 %v1992
    %2033 = vmatprep.subr.mxu0 0.0
    %2034 = vmatpush1.msra.mxu0 %v1991
    %2035 = vmatprep.subr.mxu0 0.0
    %2036 = vmatpush1.msra.mxu0 %v1990
    %2037 = vmatprep.subr.mxu0 0.0
    %2038 = vmatpush1.msra.mxu0 %v1989
    %2039 = vmatprep.subr.mxu0 0.0
    %2040 = vmatpush1.msra.mxu0 %v1988
    %2041 = vmatprep.subr.mxu0 0.0
    %2042 = vmatpush1.msra.mxu0 %v1987
    %2043 = vmatprep.subr.mxu0 0.0
    %2044 = vmatpush1.msra.mxu0 %v1986
    %2045 = vmatprep.subr.mxu0 0.0
    %2046 = vmatpush1.msra.mxu0 %v1985
    %2047 = vmatprep.subr.mxu0 0.0
    %2048 = vmatpush1.msra.mxu0 %v1984
    %2049 = vmatprep.subr.mxu0 0.0
    %2050 = vmatpush1.msra.mxu0 %v1983
    %2051 = vmatprep.subr.mxu0 0.0
    %2052 = vmatpush2.msra.mxu0 %v2014
    %2053 = vmatprep.subr.mxu0 0.0
    %2054 = vmatpush2.msra.mxu0 %v2013
    %2055 = vmatprep.subr.mxu0 0.0
    %2056 = vmatpush2.msra.mxu0 %v2012
    %2057 = vmatprep.subr.mxu0 0.0
    %2058 = vmatpush2.msra.mxu0 %v2011
    %2059 = vmatprep.subr.mxu0 0.0
    %2060 = vmatpush2.msra.mxu0 %v2010
    %2061 = vmatprep.subr.mxu0 0.0
    %2062 = vmatpush2.msra.mxu0 %v2009
    %2063 = vmatprep.subr.mxu0 0.0
    %2064 = vmatpush2.msra.mxu0 %v2008
    %2065 = vmatprep.subr.mxu0 0.0
    %2066 = vmatpush2.msra.mxu0 %v2007
    %2067 = vmatprep.subr.mxu0 0.0
    %2068 = vmatpush2.msra.mxu0 %v2006
    %2069 = vmatprep.subr.mxu0 0.0
    %2070 = vmatpush2.msra.mxu0 %v2005
    %2071 = vmatprep.subr.mxu0 0.0
    %2072 = vmatpush2.msra.mxu0 %v2004
    %2073 = vmatprep.subr.mxu0 0.0
    %2074 = vmatpush2.msra.mxu0 %v2003
    %2075 = vmatprep.subr.mxu0 0.0
    %2076 = vmatpush2.msra.mxu0 %v2002
    %2077 = vmatprep.subr.mxu0 0.0
    %2078 = vmatpush2.msra.mxu0 %v2001
    %2079 = vmatprep.subr.mxu0 0.0
    %2080 = vmatpush2.msra.mxu0 %v2000
    %2081 = vmatprep.subr.mxu0 0.0
    %2082 = vmatpush2.msra.mxu0 %v1999
    %2083 = vmatprep.mubr.f32.mxu0 %v2016
    %2084 = vmatmul.mubr.f32.gmra.mxu0 %v2015
    %v2085 = vpop.f32.mrf.mxu0
    %v2086 = vadd.f32 0.0, %v2085
    %v2087 = vpop.f32.mrf.mxu0
    %2088 = vdwg.mxu0
    %v2089 = vadd.f32 %v1981, %v2086
    %s2090 = scalar_lea.vmem [#allocation7], 768
    %v2091 = vld [vmem:[%s2090] sm:$0xff]
    %v2092 = vld [vmem:[%s2090 + $0x8] sm:$0xff]
    %v2093 = vld [vmem:[%s2090 + $0x10] sm:$0xff]
    %v2094 = vld [vmem:[%s2090 + $0x18] sm:$0xff]
    %v2095 = vld [vmem:[%s2090 + $0x20] sm:$0xff]
    %v2096 = vld [vmem:[%s2090 + $0x28] sm:$0xff]
    %v2097 = vld [vmem:[%s2090 + $0x30] sm:$0xff]
    %v2098 = vld [vmem:[%s2090 + $0x38] sm:$0xff]
    %v2099 = vld [vmem:[%s2090 + $0x40] sm:$0xff]
    %v2100 = vld [vmem:[%s2090 + $0x48] sm:$0xff]
    %v2101 = vld [vmem:[%s2090 + $0x50] sm:$0xff]
    %v2102 = vld [vmem:[%s2090 + $0x58] sm:$0xff]
    %v2103 = vld [vmem:[%s2090 + $0x60] sm:$0xff]
    %v2104 = vld [vmem:[%s2090 + $0x68] sm:$0xff]
    %v2105 = vld [vmem:[%s2090 + $0x70] sm:$0xff]
    %v2106 = vld [vmem:[%s2090 + $0x78] sm:$0xff]
    %v2107 = vld [vmem:[%s2090 + $0x80] sm:$0xff]
    %v2108 = vld [vmem:[%s2090 + $0x88] sm:$0xff]
    %v2109 = vld [vmem:[%s2090 + $0x90] sm:$0xff]
    %v2110 = vld [vmem:[%s2090 + $0x98] sm:$0xff]
    %v2111 = vld [vmem:[%s2090 + $0xa0] sm:$0xff]
    %v2112 = vld [vmem:[%s2090 + $0xa8] sm:$0xff]
    %v2113 = vld [vmem:[%s2090 + $0xb0] sm:$0xff]
    %v2114 = vld [vmem:[%s2090 + $0xb8] sm:$0xff]
    %v2115 = vld [vmem:[%s2090 + $0xc0] sm:$0xff]
    %v2116 = vld [vmem:[%s2090 + $0xc8] sm:$0xff]
    %v2117 = vld [vmem:[%s2090 + $0xd0] sm:$0xff]
    %v2118 = vld [vmem:[%s2090 + $0xd8] sm:$0xff]
    %v2119 = vld [vmem:[%s2090 + $0xe0] sm:$0xff]
    %v2120 = vld [vmem:[%s2090 + $0xe8] sm:$0xff]
    %v2121 = vld [vmem:[%s2090 + $0xf0] sm:$0xff]
    %v2122 = vld [vmem:[%s2090 + $0xf8] sm:$0xff]
    %v2123 = vrot.slane %v1764, 3
    %v2124 = vrot.slane %v1765, 3
    %2127 = vmatprep.subr.mxu0 0.0
    %2128 = vmatpush1.msra.mxu0 %v2106
    %2129 = vmatprep.subr.mxu0 0.0
    %2130 = vmatpush1.msra.mxu0 %v2105
    %2131 = vmatprep.subr.mxu0 0.0
    %2132 = vmatpush1.msra.mxu0 %v2104
    %2133 = vmatprep.subr.mxu0 0.0
    %2134 = vmatpush1.msra.mxu0 %v2103
    %2135 = vmatprep.subr.mxu0 0.0
    %2136 = vmatpush1.msra.mxu0 %v2102
    %2137 = vmatprep.subr.mxu0 0.0
    %2138 = vmatpush1.msra.mxu0 %v2101
    %2139 = vmatprep.subr.mxu0 0.0
    %2140 = vmatpush1.msra.mxu0 %v2100
    %2141 = vmatprep.subr.mxu0 0.0
    %2142 = vmatpush1.msra.mxu0 %v2099
    %2143 = vmatprep.subr.mxu0 0.0
    %2144 = vmatpush1.msra.mxu0 %v2098
    %2145 = vmatprep.subr.mxu0 0.0
    %2146 = vmatpush1.msra.mxu0 %v2097
    %2147 = vmatprep.subr.mxu0 0.0
    %2148 = vmatpush1.msra.mxu0 %v2096
    %2149 = vmatprep.subr.mxu0 0.0
    %2150 = vmatpush1.msra.mxu0 %v2095
    %2151 = vmatprep.subr.mxu0 0.0
    %2152 = vmatpush1.msra.mxu0 %v2094
    %2153 = vmatprep.subr.mxu0 0.0
    %2154 = vmatpush1.msra.mxu0 %v2093
    %2155 = vmatprep.subr.mxu0 0.0
    %2156 = vmatpush1.msra.mxu0 %v2092
    %2157 = vmatprep.subr.mxu0 0.0
    %2158 = vmatpush1.msra.mxu0 %v2091
    %2159 = vmatprep.subr.mxu0 0.0
    %2160 = vmatpush2.msra.mxu0 %v2122
    %2161 = vmatprep.subr.mxu0 0.0
    %2162 = vmatpush2.msra.mxu0 %v2121
    %2163 = vmatprep.subr.mxu0 0.0
    %2164 = vmatpush2.msra.mxu0 %v2120
    %2165 = vmatprep.subr.mxu0 0.0
    %2166 = vmatpush2.msra.mxu0 %v2119
    %2167 = vmatprep.subr.mxu0 0.0
    %2168 = vmatpush2.msra.mxu0 %v2118
    %2169 = vmatprep.subr.mxu0 0.0
    %2170 = vmatpush2.msra.mxu0 %v2117
    %2171 = vmatprep.subr.mxu0 0.0
    %2172 = vmatpush2.msra.mxu0 %v2116
    %2173 = vmatprep.subr.mxu0 0.0
    %2174 = vmatpush2.msra.mxu0 %v2115
    %2175 = vmatprep.subr.mxu0 0.0
    %2176 = vmatpush2.msra.mxu0 %v2114
    %2177 = vmatprep.subr.mxu0 0.0
    %2178 = vmatpush2.msra.mxu0 %v2113
    %2179 = vmatprep.subr.mxu0 0.0
    %2180 = vmatpush2.msra.mxu0 %v2112
    %2181 = vmatprep.subr.mxu0 0.0
    %2182 = vmatpush2.msra.mxu0 %v2111
    %2183 = vmatprep.subr.mxu0 0.0
    %2184 = vmatpush2.msra.mxu0 %v2110
    %2185 = vmatprep.subr.mxu0 0.0
    %2186 = vmatpush2.msra.mxu0 %v2109
    %2187 = vmatprep.subr.mxu0 0.0
    %2188 = vmatpush2.msra.mxu0 %v2108
    %2189 = vmatprep.subr.mxu0 0.0
    %2190 = vmatpush2.msra.mxu0 %v2107
    %2191 = vmatprep.mubr.f32.mxu0 %v2124
    %2192 = vmatmul.mubr.f32.gmra.mxu0 %v2123
    %v2193 = vpop.f32.mrf.mxu0
    %v2194 = vadd.f32 0.0, %v2193
    %v2195 = vpop.f32.mrf.mxu0
    %2196 = vdwg.mxu0
    %v2197 = vadd.f32 %v2089, %v2194
    %s2198 = scalar_lea.vmem [#allocation7], 1024
    %v2199 = vld [vmem:[%s2198] sm:$0xff]
    %v2200 = vld [vmem:[%s2198 + $0x8] sm:$0xff]
    %v2201 = vld [vmem:[%s2198 + $0x10] sm:$0xff]
    %v2202 = vld [vmem:[%s2198 + $0x18] sm:$0xff]
    %v2203 = vld [vmem:[%s2198 + $0x20] sm:$0xff]
    %v2204 = vld [vmem:[%s2198 + $0x28] sm:$0xff]
    %v2205 = vld [vmem:[%s2198 + $0x30] sm:$0xff]
    %v2206 = vld [vmem:[%s2198 + $0x38] sm:$0xff]
    %v2207 = vld [vmem:[%s2198 + $0x40] sm:$0xff]
    %v2208 = vld [vmem:[%s2198 + $0x48] sm:$0xff]
    %v2209 = vld [vmem:[%s2198 + $0x50] sm:$0xff]
    %v2210 = vld [vmem:[%s2198 + $0x58] sm:$0xff]
    %v2211 = vld [vmem:[%s2198 + $0x60] sm:$0xff]
    %v2212 = vld [vmem:[%s2198 + $0x68] sm:$0xff]
    %v2213 = vld [vmem:[%s2198 + $0x70] sm:$0xff]
    %v2214 = vld [vmem:[%s2198 + $0x78] sm:$0xff]
    %v2215 = vld [vmem:[%s2198 + $0x80] sm:$0xff]
    %v2216 = vld [vmem:[%s2198 + $0x88] sm:$0xff]
    %v2217 = vld [vmem:[%s2198 + $0x90] sm:$0xff]
    %v2218 = vld [vmem:[%s2198 + $0x98] sm:$0xff]
    %v2219 = vld [vmem:[%s2198 + $0xa0] sm:$0xff]
    %v2220 = vld [vmem:[%s2198 + $0xa8] sm:$0xff]
    %v2221 = vld [vmem:[%s2198 + $0xb0] sm:$0xff]
    %v2222 = vld [vmem:[%s2198 + $0xb8] sm:$0xff]
    %v2223 = vld [vmem:[%s2198 + $0xc0] sm:$0xff]
    %v2224 = vld [vmem:[%s2198 + $0xc8] sm:$0xff]
    %v2225 = vld [vmem:[%s2198 + $0xd0] sm:$0xff]
    %v2226 = vld [vmem:[%s2198 + $0xd8] sm:$0xff]
    %v2227 = vld [vmem:[%s2198 + $0xe0] sm:$0xff]
    %v2228 = vld [vmem:[%s2198 + $0xe8] sm:$0xff]
    %v2229 = vld [vmem:[%s2198 + $0xf0] sm:$0xff]
    %v2230 = vld [vmem:[%s2198 + $0xf8] sm:$0xff]
    %v2231 = vrot.slane %v1764, 4
    %v2232 = vrot.slane %v1765, 4
    %2235 = vmatprep.subr.mxu0 0.0
    %2236 = vmatpush1.msra.mxu0 %v2214
    %2237 = vmatprep.subr.mxu0 0.0
    %2238 = vmatpush1.msra.mxu0 %v2213
    %2239 = vmatprep.subr.mxu0 0.0
    %2240 = vmatpush1.msra.mxu0 %v2212
    %2241 = vmatprep.subr.mxu0 0.0
    %2242 = vmatpush1.msra.mxu0 %v2211
    %2243 = vmatprep.subr.mxu0 0.0
    %2244 = vmatpush1.msra.mxu0 %v2210
    %2245 = vmatprep.subr.mxu0 0.0
    %2246 = vmatpush1.msra.mxu0 %v2209
    %2247 = vmatprep.subr.mxu0 0.0
    %2248 = vmatpush1.msra.mxu0 %v2208
    %2249 = vmatprep.subr.mxu0 0.0
    %2250 = vmatpush1.msra.mxu0 %v2207
    %2251 = vmatprep.subr.mxu0 0.0
    %2252 = vmatpush1.msra.mxu0 %v2206
    %2253 = vmatprep.subr.mxu0 0.0
    %2254 = vmatpush1.msra.mxu0 %v2205
    %2255 = vmatprep.subr.mxu0 0.0
    %2256 = vmatpush1.msra.mxu0 %v2204
    %2257 = vmatprep.subr.mxu0 0.0
    %2258 = vmatpush1.msra.mxu0 %v2203
    %2259 = vmatprep.subr.mxu0 0.0
    %2260 = vmatpush1.msra.mxu0 %v2202
    %2261 = vmatprep.subr.mxu0 0.0
    %2262 = vmatpush1.msra.mxu0 %v2201
    %2263 = vmatprep.subr.mxu0 0.0
    %2264 = vmatpush1.msra.mxu0 %v2200
    %2265 = vmatprep.subr.mxu0 0.0
    %2266 = vmatpush1.msra.mxu0 %v2199
    %2267 = vmatprep.subr.mxu0 0.0
    %2268 = vmatpush2.msra.mxu0 %v2230
    %2269 = vmatprep.subr.mxu0 0.0
    %2270 = vmatpush2.msra.mxu0 %v2229
    %2271 = vmatprep.subr.mxu0 0.0
    %2272 = vmatpush2.msra.mxu0 %v2228
    %2273 = vmatprep.subr.mxu0 0.0
    %2274 = vmatpush2.msra.mxu0 %v2227
    %2275 = vmatprep.subr.mxu0 0.0
    %2276 = vmatpush2.msra.mxu0 %v2226
    %2277 = vmatprep.subr.mxu0 0.0
    %2278 = vmatpush2.msra.mxu0 %v2225
    %2279 = vmatprep.subr.mxu0 0.0
    %2280 = vmatpush2.msra.mxu0 %v2224
    %2281 = vmatprep.subr.mxu0 0.0
    %2282 = vmatpush2.msra.mxu0 %v2223
    %2283 = vmatprep.subr.mxu0 0.0
    %2284 = vmatpush2.msra.mxu0 %v2222
    %2285 = vmatprep.subr.mxu0 0.0
    %2286 = vmatpush2.msra.mxu0 %v2221
    %2287 = vmatprep.subr.mxu0 0.0
    %2288 = vmatpush2.msra.mxu0 %v2220
    %2289 = vmatprep.subr.mxu0 0.0
    %2290 = vmatpush2.msra.mxu0 %v2219
    %2291 = vmatprep.subr.mxu0 0.0
    %2292 = vmatpush2.msra.mxu0 %v2218
    %2293 = vmatprep.subr.mxu0 0.0
    %2294 = vmatpush2.msra.mxu0 %v2217
    %2295 = vmatprep.subr.mxu0 0.0
    %2296 = vmatpush2.msra.mxu0 %v2216
    %2297 = vmatprep.subr.mxu0 0.0
    %2298 = vmatpush2.msra.mxu0 %v2215
    %2299 = vmatprep.mubr.f32.mxu0 %v2232
    %2300 = vmatmul.mubr.f32.gmra.mxu0 %v2231
    %v2301 = vpop.f32.mrf.mxu0
    %v2302 = vadd.f32 0.0, %v2301
    %v2303 = vpop.f32.mrf.mxu0
    %2304 = vdwg.mxu0
    %v2305 = vadd.f32 %v2197, %v2302
    %s2306 = scalar_lea.vmem [#allocation7], 1280
    %v2307 = vld [vmem:[%s2306] sm:$0xff]
    %v2308 = vld [vmem:[%s2306 + $0x8] sm:$0xff]
    %v2309 = vld [vmem:[%s2306 + $0x10] sm:$0xff]
    %v2310 = vld [vmem:[%s2306 + $0x18] sm:$0xff]
    %v2311 = vld [vmem:[%s2306 + $0x20] sm:$0xff]
    %v2312 = vld [vmem:[%s2306 + $0x28] sm:$0xff]
    %v2313 = vld [vmem:[%s2306 + $0x30] sm:$0xff]
    %v2314 = vld [vmem:[%s2306 + $0x38] sm:$0xff]
    %v2315 = vld [vmem:[%s2306 + $0x40] sm:$0xff]
    %v2316 = vld [vmem:[%s2306 + $0x48] sm:$0xff]
    %v2317 = vld [vmem:[%s2306 + $0x50] sm:$0xff]
    %v2318 = vld [vmem:[%s2306 + $0x58] sm:$0xff]
    %v2319 = vld [vmem:[%s2306 + $0x60] sm:$0xff]
    %v2320 = vld [vmem:[%s2306 + $0x68] sm:$0xff]
    %v2321 = vld [vmem:[%s2306 + $0x70] sm:$0xff]
    %v2322 = vld [vmem:[%s2306 + $0x78] sm:$0xff]
    %v2323 = vld [vmem:[%s2306 + $0x80] sm:$0xff]
    %v2324 = vld [vmem:[%s2306 + $0x88] sm:$0xff]
    %v2325 = vld [vmem:[%s2306 + $0x90] sm:$0xff]
    %v2326 = vld [vmem:[%s2306 + $0x98] sm:$0xff]
    %v2327 = vld [vmem:[%s2306 + $0xa0] sm:$0xff]
    %v2328 = vld [vmem:[%s2306 + $0xa8] sm:$0xff]
    %v2329 = vld [vmem:[%s2306 + $0xb0] sm:$0xff]
    %v2330 = vld [vmem:[%s2306 + $0xb8] sm:$0xff]
    %v2331 = vld [vmem:[%s2306 + $0xc0] sm:$0xff]
    %v2332 = vld [vmem:[%s2306 + $0xc8] sm:$0xff]
    %v2333 = vld [vmem:[%s2306 + $0xd0] sm:$0xff]
    %v2334 = vld [vmem:[%s2306 + $0xd8] sm:$0xff]
    %v2335 = vld [vmem:[%s2306 + $0xe0] sm:$0xff]
    %v2336 = vld [vmem:[%s2306 + $0xe8] sm:$0xff]
    %v2337 = vld [vmem:[%s2306 + $0xf0] sm:$0xff]
    %v2338 = vld [vmem:[%s2306 + $0xf8] sm:$0xff]
    %v2339 = vrot.slane %v1764, 5
    %v2340 = vrot.slane %v1765, 5
    %2343 = vmatprep.subr.mxu0 0.0
    %2344 = vmatpush1.msra.mxu0 %v2322
    %2345 = vmatprep.subr.mxu0 0.0
    %2346 = vmatpush1.msra.mxu0 %v2321
    %2347 = vmatprep.subr.mxu0 0.0
    %2348 = vmatpush1.msra.mxu0 %v2320
    %2349 = vmatprep.subr.mxu0 0.0
    %2350 = vmatpush1.msra.mxu0 %v2319
    %2351 = vmatprep.subr.mxu0 0.0
    %2352 = vmatpush1.msra.mxu0 %v2318
    %2353 = vmatprep.subr.mxu0 0.0
    %2354 = vmatpush1.msra.mxu0 %v2317
    %2355 = vmatprep.subr.mxu0 0.0
    %2356 = vmatpush1.msra.mxu0 %v2316
    %2357 = vmatprep.subr.mxu0 0.0
    %2358 = vmatpush1.msra.mxu0 %v2315
    %2359 = vmatprep.subr.mxu0 0.0
    %2360 = vmatpush1.msra.mxu0 %v2314
    %2361 = vmatprep.subr.mxu0 0.0
    %2362 = vmatpush1.msra.mxu0 %v2313
    %2363 = vmatprep.subr.mxu0 0.0
    %2364 = vmatpush1.msra.mxu0 %v2312
    %2365 = vmatprep.subr.mxu0 0.0
    %2366 = vmatpush1.msra.mxu0 %v2311
    %2367 = vmatprep.subr.mxu0 0.0
    %2368 = vmatpush1.msra.mxu0 %v2310
    %2369 = vmatprep.subr.mxu0 0.0
    %2370 = vmatpush1.msra.mxu0 %v2309
    %2371 = vmatprep.subr.mxu0 0.0
    %2372 = vmatpush1.msra.mxu0 %v2308
    %2373 = vmatprep.subr.mxu0 0.0
    %2374 = vmatpush1.msra.mxu0 %v2307
    %2375 = vmatprep.subr.mxu0 0.0
    %2376 = vmatpush2.msra.mxu0 %v2338
    %2377 = vmatprep.subr.mxu0 0.0
    %2378 = vmatpush2.msra.mxu0 %v2337
    %2379 = vmatprep.subr.mxu0 0.0
    %2380 = vmatpush2.msra.mxu0 %v2336
    %2381 = vmatprep.subr.mxu0 0.0
    %2382 = vmatpush2.msra.mxu0 %v2335
    %2383 = vmatprep.subr.mxu0 0.0
    %2384 = vmatpush2.msra.mxu0 %v2334
    %2385 = vmatprep.subr.mxu0 0.0
    %2386 = vmatpush2.msra.mxu0 %v2333
    %2387 = vmatprep.subr.mxu0 0.0
    %2388 = vmatpush2.msra.mxu0 %v2332
    %2389 = vmatprep.subr.mxu0 0.0
    %2390 = vmatpush2.msra.mxu0 %v2331
    %2391 = vmatprep.subr.mxu0 0.0
    %2392 = vmatpush2.msra.mxu0 %v2330
    %2393 = vmatprep.subr.mxu0 0.0
    %2394 = vmatpush2.msra.mxu0 %v2329
    %2395 = vmatprep.subr.mxu0 0.0
    %2396 = vmatpush2.msra.mxu0 %v2328
    %2397 = vmatprep.subr.mxu0 0.0
    %2398 = vmatpush2.msra.mxu0 %v2327
    %2399 = vmatprep.subr.mxu0 0.0
    %2400 = vmatpush2.msra.mxu0 %v2326
    %2401 = vmatprep.subr.mxu0 0.0
    %2402 = vmatpush2.msra.mxu0 %v2325
    %2403 = vmatprep.subr.mxu0 0.0
    %2404 = vmatpush2.msra.mxu0 %v2324
    %2405 = vmatprep.subr.mxu0 0.0
    %2406 = vmatpush2.msra.mxu0 %v2323
    %2407 = vmatprep.mubr.f32.mxu0 %v2340
    %2408 = vmatmul.mubr.f32.gmra.mxu0 %v2339
    %v2409 = vpop.f32.mrf.mxu0
    %v2410 = vadd.f32 0.0, %v2409
    %v2411 = vpop.f32.mrf.mxu0
    %2412 = vdwg.mxu0
    %v2413 = vadd.f32 %v2305, %v2410
    %s2414 = scalar_lea.vmem [#allocation7], 1536
    %v2415 = vld [vmem:[%s2414] sm:$0xff]
    %v2416 = vld [vmem:[%s2414 + $0x8] sm:$0xff]
    %v2417 = vld [vmem:[%s2414 + $0x10] sm:$0xff]
    %v2418 = vld [vmem:[%s2414 + $0x18] sm:$0xff]
    %v2419 = vld [vmem:[%s2414 + $0x20] sm:$0xff]
    %v2420 = vld [vmem:[%s2414 + $0x28] sm:$0xff]
    %v2421 = vld [vmem:[%s2414 + $0x30] sm:$0xff]
    %v2422 = vld [vmem:[%s2414 + $0x38] sm:$0xff]
    %v2423 = vld [vmem:[%s2414 + $0x40] sm:$0xff]
    %v2424 = vld [vmem:[%s2414 + $0x48] sm:$0xff]
    %v2425 = vld [vmem:[%s2414 + $0x50] sm:$0xff]
    %v2426 = vld [vmem:[%s2414 + $0x58] sm:$0xff]
    %v2427 = vld [vmem:[%s2414 + $0x60] sm:$0xff]
    %v2428 = vld [vmem:[%s2414 + $0x68] sm:$0xff]
    %v2429 = vld [vmem:[%s2414 + $0x70] sm:$0xff]
    %v2430 = vld [vmem:[%s2414 + $0x78] sm:$0xff]
    %v2431 = vld [vmem:[%s2414 + $0x80] sm:$0xff]
    %v2432 = vld [vmem:[%s2414 + $0x88] sm:$0xff]
    %v2433 = vld [vmem:[%s2414 + $0x90] sm:$0xff]
    %v2434 = vld [vmem:[%s2414 + $0x98] sm:$0xff]
    %v2435 = vld [vmem:[%s2414 + $0xa0] sm:$0xff]
    %v2436 = vld [vmem:[%s2414 + $0xa8] sm:$0xff]
    %v2437 = vld [vmem:[%s2414 + $0xb0] sm:$0xff]
    %v2438 = vld [vmem:[%s2414 + $0xb8] sm:$0xff]
    %v2439 = vld [vmem:[%s2414 + $0xc0] sm:$0xff]
    %v2440 = vld [vmem:[%s2414 + $0xc8] sm:$0xff]
    %v2441 = vld [vmem:[%s2414 + $0xd0] sm:$0xff]
    %v2442 = vld [vmem:[%s2414 + $0xd8] sm:$0xff]
    %v2443 = vld [vmem:[%s2414 + $0xe0] sm:$0xff]
    %v2444 = vld [vmem:[%s2414 + $0xe8] sm:$0xff]
    %v2445 = vld [vmem:[%s2414 + $0xf0] sm:$0xff]
    %v2446 = vld [vmem:[%s2414 + $0xf8] sm:$0xff]
    %v2447 = vrot.slane %v1764, 6
    %v2448 = vrot.slane %v1765, 6
    %2451 = vmatprep.subr.mxu0 0.0
    %2452 = vmatpush1.msra.mxu0 %v2430
    %2453 = vmatprep.subr.mxu0 0.0
    %2454 = vmatpush1.msra.mxu0 %v2429
    %2455 = vmatprep.subr.mxu0 0.0
    %2456 = vmatpush1.msra.mxu0 %v2428
    %2457 = vmatprep.subr.mxu0 0.0
    %2458 = vmatpush1.msra.mxu0 %v2427
    %2459 = vmatprep.subr.mxu0 0.0
    %2460 = vmatpush1.msra.mxu0 %v2426
    %2461 = vmatprep.subr.mxu0 0.0
    %2462 = vmatpush1.msra.mxu0 %v2425
    %2463 = vmatprep.subr.mxu0 0.0
    %2464 = vmatpush1.msra.mxu0 %v2424
    %2465 = vmatprep.subr.mxu0 0.0
    %2466 = vmatpush1.msra.mxu0 %v2423
    %2467 = vmatprep.subr.mxu0 0.0
    %2468 = vmatpush1.msra.mxu0 %v2422
    %2469 = vmatprep.subr.mxu0 0.0
    %2470 = vmatpush1.msra.mxu0 %v2421
    %2471 = vmatprep.subr.mxu0 0.0
    %2472 = vmatpush1.msra.mxu0 %v2420
    %2473 = vmatprep.subr.mxu0 0.0
    %2474 = vmatpush1.msra.mxu0 %v2419
    %2475 = vmatprep.subr.mxu0 0.0
    %2476 = vmatpush1.msra.mxu0 %v2418
    %2477 = vmatprep.subr.mxu0 0.0
    %2478 = vmatpush1.msra.mxu0 %v2417
    %2479 = vmatprep.subr.mxu0 0.0
    %2480 = vmatpush1.msra.mxu0 %v2416
    %2481 = vmatprep.subr.mxu0 0.0
    %2482 = vmatpush1.msra.mxu0 %v2415
    %2483 = vmatprep.subr.mxu0 0.0
    %2484 = vmatpush2.msra.mxu0 %v2446
    %2485 = vmatprep.subr.mxu0 0.0
    %2486 = vmatpush2.msra.mxu0 %v2445
    %2487 = vmatprep.subr.mxu0 0.0
    %2488 = vmatpush2.msra.mxu0 %v2444
    %2489 = vmatprep.subr.mxu0 0.0
    %2490 = vmatpush2.msra.mxu0 %v2443
    %2491 = vmatprep.subr.mxu0 0.0
    %2492 = vmatpush2.msra.mxu0 %v2442
    %2493 = vmatprep.subr.mxu0 0.0
    %2494 = vmatpush2.msra.mxu0 %v2441
    %2495 = vmatprep.subr.mxu0 0.0
    %2496 = vmatpush2.msra.mxu0 %v2440
    %2497 = vmatprep.subr.mxu0 0.0
    %2498 = vmatpush2.msra.mxu0 %v2439
    %2499 = vmatprep.subr.mxu0 0.0
    %2500 = vmatpush2.msra.mxu0 %v2438
    %2501 = vmatprep.subr.mxu0 0.0
    %2502 = vmatpush2.msra.mxu0 %v2437
    %2503 = vmatprep.subr.mxu0 0.0
    %2504 = vmatpush2.msra.mxu0 %v2436
    %2505 = vmatprep.subr.mxu0 0.0
    %2506 = vmatpush2.msra.mxu0 %v2435
    %2507 = vmatprep.subr.mxu0 0.0
    %2508 = vmatpush2.msra.mxu0 %v2434
    %2509 = vmatprep.subr.mxu0 0.0
    %2510 = vmatpush2.msra.mxu0 %v2433
    %2511 = vmatprep.subr.mxu0 0.0
    %2512 = vmatpush2.msra.mxu0 %v2432
    %2513 = vmatprep.subr.mxu0 0.0
    %2514 = vmatpush2.msra.mxu0 %v2431
    %2515 = vmatprep.mubr.f32.mxu0 %v2448
    %2516 = vmatmul.mubr.f32.gmra.mxu0 %v2447
    %v2517 = vpop.f32.mrf.mxu0
    %v2518 = vadd.f32 0.0, %v2517
    %v2519 = vpop.f32.mrf.mxu0
    %2520 = vdwg.mxu0
    %v2521 = vadd.f32 %v2413, %v2518
    %s2522 = scalar_lea.vmem [#allocation7], 1792
    %v2523 = vld [vmem:[%s2522] sm:$0xff]
    %v2524 = vld [vmem:[%s2522 + $0x8] sm:$0xff]
    %v2525 = vld [vmem:[%s2522 + $0x10] sm:$0xff]
    %v2526 = vld [vmem:[%s2522 + $0x18] sm:$0xff]
    %v2527 = vld [vmem:[%s2522 + $0x20] sm:$0xff]
    %v2528 = vld [vmem:[%s2522 + $0x28] sm:$0xff]
    %v2529 = vld [vmem:[%s2522 + $0x30] sm:$0xff]
    %v2530 = vld [vmem:[%s2522 + $0x38] sm:$0xff]
    %v2531 = vld [vmem:[%s2522 + $0x40] sm:$0xff]
    %v2532 = vld [vmem:[%s2522 + $0x48] sm:$0xff]
    %v2533 = vld [vmem:[%s2522 + $0x50] sm:$0xff]
    %v2534 = vld [vmem:[%s2522 + $0x58] sm:$0xff]
    %v2535 = vld [vmem:[%s2522 + $0x60] sm:$0xff]
    %v2536 = vld [vmem:[%s2522 + $0x68] sm:$0xff]
    %v2537 = vld [vmem:[%s2522 + $0x70] sm:$0xff]
    %v2538 = vld [vmem:[%s2522 + $0x78] sm:$0xff]
    %v2539 = vld [vmem:[%s2522 + $0x80] sm:$0xff]
    %v2540 = vld [vmem:[%s2522 + $0x88] sm:$0xff]
    %v2541 = vld [vmem:[%s2522 + $0x90] sm:$0xff]
    %v2542 = vld [vmem:[%s2522 + $0x98] sm:$0xff]
    %v2543 = vld [vmem:[%s2522 + $0xa0] sm:$0xff]
    %v2544 = vld [vmem:[%s2522 + $0xa8] sm:$0xff]
    %v2545 = vld [vmem:[%s2522 + $0xb0] sm:$0xff]
    %v2546 = vld [vmem:[%s2522 + $0xb8] sm:$0xff]
    %v2547 = vld [vmem:[%s2522 + $0xc0] sm:$0xff]
    %v2548 = vld [vmem:[%s2522 + $0xc8] sm:$0xff]
    %v2549 = vld [vmem:[%s2522 + $0xd0] sm:$0xff]
    %v2550 = vld [vmem:[%s2522 + $0xd8] sm:$0xff]
    %v2551 = vld [vmem:[%s2522 + $0xe0] sm:$0xff]
    %v2552 = vld [vmem:[%s2522 + $0xe8] sm:$0xff]
    %v2553 = vld [vmem:[%s2522 + $0xf0] sm:$0xff]
    %v2554 = vld [vmem:[%s2522 + $0xf8] sm:$0xff]
    %v2555 = vrot.slane %v1764, 7
    %v2556 = vrot.slane %v1765, 7
    %2559 = vmatprep.subr.mxu0 0.0
    %2560 = vmatpush1.msra.mxu0 %v2538
    %2561 = vmatprep.subr.mxu0 0.0
    %2562 = vmatpush1.msra.mxu0 %v2537
    %2563 = vmatprep.subr.mxu0 0.0
    %2564 = vmatpush1.msra.mxu0 %v2536
    %2565 = vmatprep.subr.mxu0 0.0
    %2566 = vmatpush1.msra.mxu0 %v2535
    %2567 = vmatprep.subr.mxu0 0.0
    %2568 = vmatpush1.msra.mxu0 %v2534
    %2569 = vmatprep.subr.mxu0 0.0
    %2570 = vmatpush1.msra.mxu0 %v2533
    %2571 = vmatprep.subr.mxu0 0.0
    %2572 = vmatpush1.msra.mxu0 %v2532
    %2573 = vmatprep.subr.mxu0 0.0
    %2574 = vmatpush1.msra.mxu0 %v2531
    %2575 = vmatprep.subr.mxu0 0.0
    %2576 = vmatpush1.msra.mxu0 %v2530
    %2577 = vmatprep.subr.mxu0 0.0
    %2578 = vmatpush1.msra.mxu0 %v2529
    %2579 = vmatprep.subr.mxu0 0.0
    %2580 = vmatpush1.msra.mxu0 %v2528
    %2581 = vmatprep.subr.mxu0 0.0
    %2582 = vmatpush1.msra.mxu0 %v2527
    %2583 = vmatprep.subr.mxu0 0.0
    %2584 = vmatpush1.msra.mxu0 %v2526
    %2585 = vmatprep.subr.mxu0 0.0
    %2586 = vmatpush1.msra.mxu0 %v2525
    %2587 = vmatprep.subr.mxu0 0.0
    %2588 = vmatpush1.msra.mxu0 %v2524
    %2589 = vmatprep.subr.mxu0 0.0
    %2590 = vmatpush1.msra.mxu0 %v2523
    %2591 = vmatprep.subr.mxu0 0.0
    %2592 = vmatpush2.msra.mxu0 %v2554
    %2593 = vmatprep.subr.mxu0 0.0
    %2594 = vmatpush2.msra.mxu0 %v2553
    %2595 = vmatprep.subr.mxu0 0.0
    %2596 = vmatpush2.msra.mxu0 %v2552
    %2597 = vmatprep.subr.mxu0 0.0
    %2598 = vmatpush2.msra.mxu0 %v2551
    %2599 = vmatprep.subr.mxu0 0.0
    %2600 = vmatpush2.msra.mxu0 %v2550
    %2601 = vmatprep.subr.mxu0 0.0
    %2602 = vmatpush2.msra.mxu0 %v2549
    %2603 = vmatprep.subr.mxu0 0.0
    %2604 = vmatpush2.msra.mxu0 %v2548
    %2605 = vmatprep.subr.mxu0 0.0
    %2606 = vmatpush2.msra.mxu0 %v2547
    %2607 = vmatprep.subr.mxu0 0.0
    %2608 = vmatpush2.msra.mxu0 %v2546
    %2609 = vmatprep.subr.mxu0 0.0
    %2610 = vmatpush2.msra.mxu0 %v2545
    %2611 = vmatprep.subr.mxu0 0.0
    %2612 = vmatpush2.msra.mxu0 %v2544
    %2613 = vmatprep.subr.mxu0 0.0
    %2614 = vmatpush2.msra.mxu0 %v2543
    %2615 = vmatprep.subr.mxu0 0.0
    %2616 = vmatpush2.msra.mxu0 %v2542
    %2617 = vmatprep.subr.mxu0 0.0
    %2618 = vmatpush2.msra.mxu0 %v2541
    %2619 = vmatprep.subr.mxu0 0.0
    %2620 = vmatpush2.msra.mxu0 %v2540
    %2621 = vmatprep.subr.mxu0 0.0
    %2622 = vmatpush2.msra.mxu0 %v2539
    %2623 = vmatprep.mubr.f32.mxu0 %v2556
    %2624 = vmatmul.mubr.f32.gmra.mxu0 %v2555
    %v2625 = vpop.f32.mrf.mxu0
    %v2626 = vadd.f32 0.0, %v2625
    %v2627 = vpop.f32.mrf.mxu0
    %2628 = vdwg.mxu0
    %v2629 = vadd.f32 %v2521, %v2626
    %vm2630 = vcmask 40960
    %2631 = vst.msk [vmem:[#allocation8] sm:$0x1] %vm2630, %v2629
    %v2632 = vld [vmem:[%s5] sm:$0x1]
    %v2633 = vld [vmem:[#allocation7] sm:$0xff]
    %v2634 = vld [vmem:[#allocation7 + $0x8] sm:$0xff]
    %v2635 = vld [vmem:[#allocation7 + $0x10] sm:$0xff]
    %v2636 = vld [vmem:[#allocation7 + $0x18] sm:$0xff]
    %v2637 = vld [vmem:[#allocation7 + $0x20] sm:$0xff]
    %v2638 = vld [vmem:[#allocation7 + $0x28] sm:$0xff]
    %v2639 = vld [vmem:[#allocation7 + $0x30] sm:$0xff]
    %v2640 = vld [vmem:[#allocation7 + $0x38] sm:$0xff]
    %v2641 = vld [vmem:[#allocation7 + $0x40] sm:$0xff]
    %v2642 = vld [vmem:[#allocation7 + $0x48] sm:$0xff]
    %v2643 = vld [vmem:[#allocation7 + $0x50] sm:$0xff]
    %v2644 = vld [vmem:[#allocation7 + $0x58] sm:$0xff]
    %v2645 = vld [vmem:[#allocation7 + $0x60] sm:$0xff]
    %v2646 = vld [vmem:[#allocation7 + $0x68] sm:$0xff]
    %v2647 = vld [vmem:[#allocation7 + $0x70] sm:$0xff]
    %v2648 = vld [vmem:[#allocation7 + $0x78] sm:$0xff]
    %v2649 = vld [vmem:[#allocation7 + $0x80] sm:$0xff]
    %v2650 = vld [vmem:[#allocation7 + $0x88] sm:$0xff]
    %v2651 = vld [vmem:[#allocation7 + $0x90] sm:$0xff]
    %v2652 = vld [vmem:[#allocation7 + $0x98] sm:$0xff]
    %v2653 = vld [vmem:[#allocation7 + $0xa0] sm:$0xff]
    %v2654 = vld [vmem:[#allocation7 + $0xa8] sm:$0xff]
    %v2655 = vld [vmem:[#allocation7 + $0xb0] sm:$0xff]
    %v2656 = vld [vmem:[#allocation7 + $0xb8] sm:$0xff]
    %v2657 = vld [vmem:[#allocation7 + $0xc0] sm:$0xff]
    %v2658 = vld [vmem:[#allocation7 + $0xc8] sm:$0xff]
    %v2659 = vld [vmem:[#allocation7 + $0xd0] sm:$0xff]
    %v2660 = vld [vmem:[#allocation7 + $0xd8] sm:$0xff]
    %v2661 = vld [vmem:[#allocation7 + $0xe0] sm:$0xff]
    %v2662 = vld [vmem:[#allocation7 + $0xe8] sm:$0xff]
    %v2663 = vld [vmem:[#allocation7 + $0xf0] sm:$0xff]
    %v2664 = vld [vmem:[#allocation7 + $0xf8] sm:$0xff]
    %2665 = vmatprep.subr.mxu0 0.0
    %2666 = vmatpush1.msra.mxu0 %v2648
    %2667 = vmatprep.subr.mxu0 0.0
    %2668 = vmatpush1.msra.mxu0 %v2647
    %2669 = vmatprep.subr.mxu0 0.0
    %2670 = vmatpush1.msra.mxu0 %v2646
    %2671 = vmatprep.subr.mxu0 0.0
    %2672 = vmatpush1.msra.mxu0 %v2645
    %2673 = vmatprep.subr.mxu0 0.0
    %2674 = vmatpush1.msra.mxu0 %v2644
    %2675 = vmatprep.subr.mxu0 0.0
    %2676 = vmatpush1.msra.mxu0 %v2643
    %2677 = vmatprep.subr.mxu0 0.0
    %2678 = vmatpush1.msra.mxu0 %v2642
    %2679 = vmatprep.subr.mxu0 0.0
    %2680 = vmatpush1.msra.mxu0 %v2641
    %2681 = vmatprep.subr.mxu0 0.0
    %2682 = vmatpush1.msra.mxu0 %v2640
    %2683 = vmatprep.subr.mxu0 0.0
    %2684 = vmatpush1.msra.mxu0 %v2639
    %2685 = vmatprep.subr.mxu0 0.0
    %2686 = vmatpush1.msra.mxu0 %v2638
    %2687 = vmatprep.subr.mxu0 0.0
    %2688 = vmatpush1.msra.mxu0 %v2637
    %2689 = vmatprep.subr.mxu0 0.0
    %2690 = vmatpush1.msra.mxu0 %v2636
    %2691 = vmatprep.subr.mxu0 0.0
    %2692 = vmatpush1.msra.mxu0 %v2635
    %2693 = vmatprep.subr.mxu0 0.0
    %2694 = vmatpush1.msra.mxu0 %v2634
    %2695 = vmatprep.subr.mxu0 0.0
    %2696 = vmatpush1.msra.mxu0 %v2633
    %2697 = vmatprep.subr.mxu0 0.0
    %2698 = vmatpush2.msra.mxu0 %v2664
    %2699 = vmatprep.subr.mxu0 0.0
    %2700 = vmatpush2.msra.mxu0 %v2663
    %2701 = vmatprep.subr.mxu0 0.0
    %2702 = vmatpush2.msra.mxu0 %v2662
    %2703 = vmatprep.subr.mxu0 0.0
    %2704 = vmatpush2.msra.mxu0 %v2661
    %2705 = vmatprep.subr.mxu0 0.0
    %2706 = vmatpush2.msra.mxu0 %v2660
    %2707 = vmatprep.subr.mxu0 0.0
    %2708 = vmatpush2.msra.mxu0 %v2659
    %2709 = vmatprep.subr.mxu0 0.0
    %2710 = vmatpush2.msra.mxu0 %v2658
    %2711 = vmatprep.subr.mxu0 0.0
    %2712 = vmatpush2.msra.mxu0 %v2657
    %2713 = vmatprep.subr.mxu0 0.0
    %2714 = vmatpush2.msra.mxu0 %v2656
    %2715 = vmatprep.subr.mxu0 0.0
    %2716 = vmatpush2.msra.mxu0 %v2655
    %2717 = vmatprep.subr.mxu0 0.0
    %2718 = vmatpush2.msra.mxu0 %v2654
    %2719 = vmatprep.subr.mxu0 0.0
    %2720 = vmatpush2.msra.mxu0 %v2653
    %2721 = vmatprep.subr.mxu0 0.0
    %2722 = vmatpush2.msra.mxu0 %v2652
    %2723 = vmatprep.subr.mxu0 0.0
    %2724 = vmatpush2.msra.mxu0 %v2651
    %2725 = vmatprep.subr.mxu0 0.0
    %2726 = vmatpush2.msra.mxu0 %v2650
    %2727 = vmatprep.subr.mxu0 0.0
    %2728 = vmatpush2.msra.mxu0 %v2649
    %2729 = vmatprep.mubr.f32.mxu0 %v1767
    %2730 = vmatmul.mubr.f32.gmra.mxu0 %v1766
    %v2731 = vpop.f32.mrf.mxu0
    %v2732 = vadd.f32 0.0, %v2731
    %v2733 = vpop.f32.mrf.mxu0
    %2734 = vdwg.mxu0
    %v2735 = vadd.f32 %v2632, %v2732
    %v2736 = vld [vmem:[%s1872] sm:$0xff]
    %v2737 = vld [vmem:[%s1872 + $0x8] sm:$0xff]
    %v2738 = vld [vmem:[%s1872 + $0x10] sm:$0xff]
    %v2739 = vld [vmem:[%s1872 + $0x18] sm:$0xff]
    %v2740 = vld [vmem:[%s1872 + $0x20] sm:$0xff]
    %v2741 = vld [vmem:[%s1872 + $0x28] sm:$0xff]
    %v2742 = vld [vmem:[%s1872 + $0x30] sm:$0xff]
    %v2743 = vld [vmem:[%s1872 + $0x38] sm:$0xff]
    %v2744 = vld [vmem:[%s1872 + $0x40] sm:$0xff]
    %v2745 = vld [vmem:[%s1872 + $0x48] sm:$0xff]
    %v2746 = vld [vmem:[%s1872 + $0x50] sm:$0xff]
    %v2747 = vld [vmem:[%s1872 + $0x58] sm:$0xff]
    %v2748 = vld [vmem:[%s1872 + $0x60] sm:$0xff]
    %v2749 = vld [vmem:[%s1872 + $0x68] sm:$0xff]
    %v2750 = vld [vmem:[%s1872 + $0x70] sm:$0xff]
    %v2751 = vld [vmem:[%s1872 + $0x78] sm:$0xff]
    %v2752 = vld [vmem:[%s1872 + $0x80] sm:$0xff]
    %v2753 = vld [vmem:[%s1872 + $0x88] sm:$0xff]
    %v2754 = vld [vmem:[%s1872 + $0x90] sm:$0xff]
    %v2755 = vld [vmem:[%s1872 + $0x98] sm:$0xff]
    %v2756 = vld [vmem:[%s1872 + $0xa0] sm:$0xff]
    %v2757 = vld [vmem:[%s1872 + $0xa8] sm:$0xff]
    %v2758 = vld [vmem:[%s1872 + $0xb0] sm:$0xff]
    %v2759 = vld [vmem:[%s1872 + $0xb8] sm:$0xff]
    %v2760 = vld [vmem:[%s1872 + $0xc0] sm:$0xff]
    %v2761 = vld [vmem:[%s1872 + $0xc8] sm:$0xff]
    %v2762 = vld [vmem:[%s1872 + $0xd0] sm:$0xff]
    %v2763 = vld [vmem:[%s1872 + $0xd8] sm:$0xff]
    %v2764 = vld [vmem:[%s1872 + $0xe0] sm:$0xff]
    %v2765 = vld [vmem:[%s1872 + $0xe8] sm:$0xff]
    %v2766 = vld [vmem:[%s1872 + $0xf0] sm:$0xff]
    %v2767 = vld [vmem:[%s1872 + $0xf8] sm:$0xff]
    %v2770 = vrot.slane %v1766, 1
    %v2771 = vrot.slane %v1767, 1
    %2774 = vmatprep.subr.mxu0 0.0
    %2775 = vmatpush1.msra.mxu0 %v2751
    %2776 = vmatprep.subr.mxu0 0.0
    %2777 = vmatpush1.msra.mxu0 %v2750
    %2778 = vmatprep.subr.mxu0 0.0
    %2779 = vmatpush1.msra.mxu0 %v2749
    %2780 = vmatprep.subr.mxu0 0.0
    %2781 = vmatpush1.msra.mxu0 %v2748
    %2782 = vmatprep.subr.mxu0 0.0
    %2783 = vmatpush1.msra.mxu0 %v2747
    %2784 = vmatprep.subr.mxu0 0.0
    %2785 = vmatpush1.msra.mxu0 %v2746
    %2786 = vmatprep.subr.mxu0 0.0
    %2787 = vmatpush1.msra.mxu0 %v2745
    %2788 = vmatprep.subr.mxu0 0.0
    %2789 = vmatpush1.msra.mxu0 %v2744
    %2790 = vmatprep.subr.mxu0 0.0
    %2791 = vmatpush1.msra.mxu0 %v2743
    %2792 = vmatprep.subr.mxu0 0.0
    %2793 = vmatpush1.msra.mxu0 %v2742
    %2794 = vmatprep.subr.mxu0 0.0
    %2795 = vmatpush1.msra.mxu0 %v2741
    %2796 = vmatprep.subr.mxu0 0.0
    %2797 = vmatpush1.msra.mxu0 %v2740
    %2798 = vmatprep.subr.mxu0 0.0
    %2799 = vmatpush1.msra.mxu0 %v2739
    %2800 = vmatprep.subr.mxu0 0.0
    %2801 = vmatpush1.msra.mxu0 %v2738
    %2802 = vmatprep.subr.mxu0 0.0
    %2803 = vmatpush1.msra.mxu0 %v2737
    %2804 = vmatprep.subr.mxu0 0.0
    %2805 = vmatpush1.msra.mxu0 %v2736
    %2806 = vmatprep.subr.mxu0 0.0
    %2807 = vmatpush2.msra.mxu0 %v2767
    %2808 = vmatprep.subr.mxu0 0.0
    %2809 = vmatpush2.msra.mxu0 %v2766
    %2810 = vmatprep.subr.mxu0 0.0
    %2811 = vmatpush2.msra.mxu0 %v2765
    %2812 = vmatprep.subr.mxu0 0.0
    %2813 = vmatpush2.msra.mxu0 %v2764
    %2814 = vmatprep.subr.mxu0 0.0
    %2815 = vmatpush2.msra.mxu0 %v2763
    %2816 = vmatprep.subr.mxu0 0.0
    %2817 = vmatpush2.msra.mxu0 %v2762
    %2818 = vmatprep.subr.mxu0 0.0
    %2819 = vmatpush2.msra.mxu0 %v2761
    %2820 = vmatprep.subr.mxu0 0.0
    %2821 = vmatpush2.msra.mxu0 %v2760
    %2822 = vmatprep.subr.mxu0 0.0
    %2823 = vmatpush2.msra.mxu0 %v2759
    %2824 = vmatprep.subr.mxu0 0.0
    %2825 = vmatpush2.msra.mxu0 %v2758
    %2826 = vmatprep.subr.mxu0 0.0
    %2827 = vmatpush2.msra.mxu0 %v2757
    %2828 = vmatprep.subr.mxu0 0.0
    %2829 = vmatpush2.msra.mxu0 %v2756
    %2830 = vmatprep.subr.mxu0 0.0
    %2831 = vmatpush2.msra.mxu0 %v2755
    %2832 = vmatprep.subr.mxu0 0.0
    %2833 = vmatpush2.msra.mxu0 %v2754
    %2834 = vmatprep.subr.mxu0 0.0
    %2835 = vmatpush2.msra.mxu0 %v2753
    %2836 = vmatprep.subr.mxu0 0.0
    %2837 = vmatpush2.msra.mxu0 %v2752
    %2838 = vmatprep.mubr.f32.mxu0 %v2771
    %2839 = vmatmul.mubr.f32.gmra.mxu0 %v2770
    %v2840 = vpop.f32.mrf.mxu0
    %v2841 = vadd.f32 0.0, %v2840
    %v2842 = vpop.f32.mrf.mxu0
    %2843 = vdwg.mxu0
    %v2844 = vadd.f32 %v2735, %v2841
    %v2845 = vld [vmem:[%s1982] sm:$0xff]
    %v2846 = vld [vmem:[%s1982 + $0x8] sm:$0xff]
    %v2847 = vld [vmem:[%s1982 + $0x10] sm:$0xff]
    %v2848 = vld [vmem:[%s1982 + $0x18] sm:$0xff]
    %v2849 = vld [vmem:[%s1982 + $0x20] sm:$0xff]
    %v2850 = vld [vmem:[%s1982 + $0x28] sm:$0xff]
    %v2851 = vld [vmem:[%s1982 + $0x30] sm:$0xff]
    %v2852 = vld [vmem:[%s1982 + $0x38] sm:$0xff]
    %v2853 = vld [vmem:[%s1982 + $0x40] sm:$0xff]
    %v2854 = vld [vmem:[%s1982 + $0x48] sm:$0xff]
    %v2855 = vld [vmem:[%s1982 + $0x50] sm:$0xff]
    %v2856 = vld [vmem:[%s1982 + $0x58] sm:$0xff]
    %v2857 = vld [vmem:[%s1982 + $0x60] sm:$0xff]
    %v2858 = vld [vmem:[%s1982 + $0x68] sm:$0xff]
    %v2859 = vld [vmem:[%s1982 + $0x70] sm:$0xff]
    %v2860 = vld [vmem:[%s1982 + $0x78] sm:$0xff]
    %v2861 = vld [vmem:[%s1982 + $0x80] sm:$0xff]
    %v2862 = vld [vmem:[%s1982 + $0x88] sm:$0xff]
    %v2863 = vld [vmem:[%s1982 + $0x90] sm:$0xff]
    %v2864 = vld [vmem:[%s1982 + $0x98] sm:$0xff]
    %v2865 = vld [vmem:[%s1982 + $0xa0] sm:$0xff]
    %v2866 = vld [vmem:[%s1982 + $0xa8] sm:$0xff]
    %v2867 = vld [vmem:[%s1982 + $0xb0] sm:$0xff]
    %v2868 = vld [vmem:[%s1982 + $0xb8] sm:$0xff]
    %v2869 = vld [vmem:[%s1982 + $0xc0] sm:$0xff]
    %v2870 = vld [vmem:[%s1982 + $0xc8] sm:$0xff]
    %v2871 = vld [vmem:[%s1982 + $0xd0] sm:$0xff]
    %v2872 = vld [vmem:[%s1982 + $0xd8] sm:$0xff]
    %v2873 = vld [vmem:[%s1982 + $0xe0] sm:$0xff]
    %v2874 = vld [vmem:[%s1982 + $0xe8] sm:$0xff]
    %v2875 = vld [vmem:[%s1982 + $0xf0] sm:$0xff]
    %v2876 = vld [vmem:[%s1982 + $0xf8] sm:$0xff]
    %v2877 = vrot.slane %v1766, 2
    %v2878 = vrot.slane %v1767, 2
    %2881 = vmatprep.subr.mxu0 0.0
    %2882 = vmatpush1.msra.mxu0 %v2860
    %2883 = vmatprep.subr.mxu0 0.0
    %2884 = vmatpush1.msra.mxu0 %v2859
    %2885 = vmatprep.subr.mxu0 0.0
    %2886 = vmatpush1.msra.mxu0 %v2858
    %2887 = vmatprep.subr.mxu0 0.0
    %2888 = vmatpush1.msra.mxu0 %v2857
    %2889 = vmatprep.subr.mxu0 0.0
    %2890 = vmatpush1.msra.mxu0 %v2856
    %2891 = vmatprep.subr.mxu0 0.0
    %2892 = vmatpush1.msra.mxu0 %v2855
    %2893 = vmatprep.subr.mxu0 0.0
    %2894 = vmatpush1.msra.mxu0 %v2854
    %2895 = vmatprep.subr.mxu0 0.0
    %2896 = vmatpush1.msra.mxu0 %v2853
    %2897 = vmatprep.subr.mxu0 0.0
    %2898 = vmatpush1.msra.mxu0 %v2852
    %2899 = vmatprep.subr.mxu0 0.0
    %2900 = vmatpush1.msra.mxu0 %v2851
    %2901 = vmatprep.subr.mxu0 0.0
    %2902 = vmatpush1.msra.mxu0 %v2850
    %2903 = vmatprep.subr.mxu0 0.0
    %2904 = vmatpush1.msra.mxu0 %v2849
    %2905 = vmatprep.subr.mxu0 0.0
    %2906 = vmatpush1.msra.mxu0 %v2848
    %2907 = vmatprep.subr.mxu0 0.0
    %2908 = vmatpush1.msra.mxu0 %v2847
    %2909 = vmatprep.subr.mxu0 0.0
    %2910 = vmatpush1.msra.mxu0 %v2846
    %2911 = vmatprep.subr.mxu0 0.0
    %2912 = vmatpush1.msra.mxu0 %v2845
    %2913 = vmatprep.subr.mxu0 0.0
    %2914 = vmatpush2.msra.mxu0 %v2876
    %2915 = vmatprep.subr.mxu0 0.0
    %2916 = vmatpush2.msra.mxu0 %v2875
    %2917 = vmatprep.subr.mxu0 0.0
    %2918 = vmatpush2.msra.mxu0 %v2874
    %2919 = vmatprep.subr.mxu0 0.0
    %2920 = vmatpush2.msra.mxu0 %v2873
    %2921 = vmatprep.subr.mxu0 0.0
    %2922 = vmatpush2.msra.mxu0 %v2872
    %2923 = vmatprep.subr.mxu0 0.0
    %2924 = vmatpush2.msra.mxu0 %v2871
    %2925 = vmatprep.subr.mxu0 0.0
    %2926 = vmatpush2.msra.mxu0 %v2870
    %2927 = vmatprep.subr.mxu0 0.0
    %2928 = vmatpush2.msra.mxu0 %v2869
    %2929 = vmatprep.subr.mxu0 0.0
    %2930 = vmatpush2.msra.mxu0 %v2868
    %2931 = vmatprep.subr.mxu0 0.0
    %2932 = vmatpush2.msra.mxu0 %v2867
    %2933 = vmatprep.subr.mxu0 0.0
    %2934 = vmatpush2.msra.mxu0 %v2866
    %2935 = vmatprep.subr.mxu0 0.0
    %2936 = vmatpush2.msra.mxu0 %v2865
    %2937 = vmatprep.subr.mxu0 0.0
    %2938 = vmatpush2.msra.mxu0 %v2864
    %2939 = vmatprep.subr.mxu0 0.0
    %2940 = vmatpush2.msra.mxu0 %v2863
    %2941 = vmatprep.subr.mxu0 0.0
    %2942 = vmatpush2.msra.mxu0 %v2862
    %2943 = vmatprep.subr.mxu0 0.0
    %2944 = vmatpush2.msra.mxu0 %v2861
    %2945 = vmatprep.mubr.f32.mxu0 %v2878
    %2946 = vmatmul.mubr.f32.gmra.mxu0 %v2877
    %v2947 = vpop.f32.mrf.mxu0
    %v2948 = vadd.f32 0.0, %v2947
    %v2949 = vpop.f32.mrf.mxu0
    %2950 = vdwg.mxu0
    %v2951 = vadd.f32 %v2844, %v2948
    %v2952 = vld [vmem:[%s2090] sm:$0xff]
    %v2953 = vld [vmem:[%s2090 + $0x8] sm:$0xff]
    %v2954 = vld [vmem:[%s2090 + $0x10] sm:$0xff]
    %v2955 = vld [vmem:[%s2090 + $0x18] sm:$0xff]
    %v2956 = vld [vmem:[%s2090 + $0x20] sm:$0xff]
    %v2957 = vld [vmem:[%s2090 + $0x28] sm:$0xff]
    %v2958 = vld [vmem:[%s2090 + $0x30] sm:$0xff]
    %v2959 = vld [vmem:[%s2090 + $0x38] sm:$0xff]
    %v2960 = vld [vmem:[%s2090 + $0x40] sm:$0xff]
    %v2961 = vld [vmem:[%s2090 + $0x48] sm:$0xff]
    %v2962 = vld [vmem:[%s2090 + $0x50] sm:$0xff]
    %v2963 = vld [vmem:[%s2090 + $0x58] sm:$0xff]
    %v2964 = vld [vmem:[%s2090 + $0x60] sm:$0xff]
    %v2965 = vld [vmem:[%s2090 + $0x68] sm:$0xff]
    %v2966 = vld [vmem:[%s2090 + $0x70] sm:$0xff]
    %v2967 = vld [vmem:[%s2090 + $0x78] sm:$0xff]
    %v2968 = vld [vmem:[%s2090 + $0x80] sm:$0xff]
    %v2969 = vld [vmem:[%s2090 + $0x88] sm:$0xff]
    %v2970 = vld [vmem:[%s2090 + $0x90] sm:$0xff]
    %v2971 = vld [vmem:[%s2090 + $0x98] sm:$0xff]
    %v2972 = vld [vmem:[%s2090 + $0xa0] sm:$0xff]
    %v2973 = vld [vmem:[%s2090 + $0xa8] sm:$0xff]
    %v2974 = vld [vmem:[%s2090 + $0xb0] sm:$0xff]
    %v2975 = vld [vmem:[%s2090 + $0xb8] sm:$0xff]
    %v2976 = vld [vmem:[%s2090 + $0xc0] sm:$0xff]
    %v2977 = vld [vmem:[%s2090 + $0xc8] sm:$0xff]
    %v2978 = vld [vmem:[%s2090 + $0xd0] sm:$0xff]
    %v2979 = vld [vmem:[%s2090 + $0xd8] sm:$0xff]
    %v2980 = vld [vmem:[%s2090 + $0xe0] sm:$0xff]
    %v2981 = vld [vmem:[%s2090 + $0xe8] sm:$0xff]
    %v2982 = vld [vmem:[%s2090 + $0xf0] sm:$0xff]
    %v2983 = vld [vmem:[%s2090 + $0xf8] sm:$0xff]
    %v2984 = vrot.slane %v1766, 3
    %v2985 = vrot.slane %v1767, 3
    %2988 = vmatprep.subr.mxu0 0.0
    %2989 = vmatpush1.msra.mxu0 %v2967
    %2990 = vmatprep.subr.mxu0 0.0
    %2991 = vmatpush1.msra.mxu0 %v2966
    %2992 = vmatprep.subr.mxu0 0.0
    %2993 = vmatpush1.msra.mxu0 %v2965
    %2994 = vmatprep.subr.mxu0 0.0
    %2995 = vmatpush1.msra.mxu0 %v2964
    %2996 = vmatprep.subr.mxu0 0.0
    %2997 = vmatpush1.msra.mxu0 %v2963
    %2998 = vmatprep.subr.mxu0 0.0
    %2999 = vmatpush1.msra.mxu0 %v2962
    %3000 = vmatprep.subr.mxu0 0.0
    %3001 = vmatpush1.msra.mxu0 %v2961
    %3002 = vmatprep.subr.mxu0 0.0
    %3003 = vmatpush1.msra.mxu0 %v2960
    %3004 = vmatprep.subr.mxu0 0.0
    %3005 = vmatpush1.msra.mxu0 %v2959
    %3006 = vmatprep.subr.mxu0 0.0
    %3007 = vmatpush1.msra.mxu0 %v2958
    %3008 = vmatprep.subr.mxu0 0.0
    %3009 = vmatpush1.msra.mxu0 %v2957
    %3010 = vmatprep.subr.mxu0 0.0
    %3011 = vmatpush1.msra.mxu0 %v2956
    %3012 = vmatprep.subr.mxu0 0.0
    %3013 = vmatpush1.msra.mxu0 %v2955
    %3014 = vmatprep.subr.mxu0 0.0
    %3015 = vmatpush1.msra.mxu0 %v2954
    %3016 = vmatprep.subr.mxu0 0.0
    %3017 = vmatpush1.msra.mxu0 %v2953
    %3018 = vmatprep.subr.mxu0 0.0
    %3019 = vmatpush1.msra.mxu0 %v2952
    %3020 = vmatprep.subr.mxu0 0.0
    %3021 = vmatpush2.msra.mxu0 %v2983
    %3022 = vmatprep.subr.mxu0 0.0
    %3023 = vmatpush2.msra.mxu0 %v2982
    %3024 = vmatprep.subr.mxu0 0.0
    %3025 = vmatpush2.msra.mxu0 %v2981
    %3026 = vmatprep.subr.mxu0 0.0
    %3027 = vmatpush2.msra.mxu0 %v2980
    %3028 = vmatprep.subr.mxu0 0.0
    %3029 = vmatpush2.msra.mxu0 %v2979
    %3030 = vmatprep.subr.mxu0 0.0
    %3031 = vmatpush2.msra.mxu0 %v2978
    %3032 = vmatprep.subr.mxu0 0.0
    %3033 = vmatpush2.msra.mxu0 %v2977
    %3034 = vmatprep.subr.mxu0 0.0
    %3035 = vmatpush2.msra.mxu0 %v2976
    %3036 = vmatprep.subr.mxu0 0.0
    %3037 = vmatpush2.msra.mxu0 %v2975
    %3038 = vmatprep.subr.mxu0 0.0
    %3039 = vmatpush2.msra.mxu0 %v2974
    %3040 = vmatprep.subr.mxu0 0.0
    %3041 = vmatpush2.msra.mxu0 %v2973
    %3042 = vmatprep.subr.mxu0 0.0
    %3043 = vmatpush2.msra.mxu0 %v2972
    %3044 = vmatprep.subr.mxu0 0.0
    %3045 = vmatpush2.msra.mxu0 %v2971
    %3046 = vmatprep.subr.mxu0 0.0
    %3047 = vmatpush2.msra.mxu0 %v2970
    %3048 = vmatprep.subr.mxu0 0.0
    %3049 = vmatpush2.msra.mxu0 %v2969
    %3050 = vmatprep.subr.mxu0 0.0
    %3051 = vmatpush2.msra.mxu0 %v2968
    %3052 = vmatprep.mubr.f32.mxu0 %v2985
    %3053 = vmatmul.mubr.f32.gmra.mxu0 %v2984
    %v3054 = vpop.f32.mrf.mxu0
    %v3055 = vadd.f32 0.0, %v3054
    %v3056 = vpop.f32.mrf.mxu0
    %3057 = vdwg.mxu0
    %v3058 = vadd.f32 %v2951, %v3055
    %v3059 = vld [vmem:[%s2198] sm:$0xff]
    %v3060 = vld [vmem:[%s2198 + $0x8] sm:$0xff]
    %v3061 = vld [vmem:[%s2198 + $0x10] sm:$0xff]
    %v3062 = vld [vmem:[%s2198 + $0x18] sm:$0xff]
    %v3063 = vld [vmem:[%s2198 + $0x20] sm:$0xff]
    %v3064 = vld [vmem:[%s2198 + $0x28] sm:$0xff]
    %v3065 = vld [vmem:[%s2198 + $0x30] sm:$0xff]
    %v3066 = vld [vmem:[%s2198 + $0x38] sm:$0xff]
    %v3067 = vld [vmem:[%s2198 + $0x40] sm:$0xff]
    %v3068 = vld [vmem:[%s2198 + $0x48] sm:$0xff]
    %v3069 = vld [vmem:[%s2198 + $0x50] sm:$0xff]
    %v3070 = vld [vmem:[%s2198 + $0x58] sm:$0xff]
    %v3071 = vld [vmem:[%s2198 + $0x60] sm:$0xff]
    %v3072 = vld [vmem:[%s2198 + $0x68] sm:$0xff]
    %v3073 = vld [vmem:[%s2198 + $0x70] sm:$0xff]
    %v3074 = vld [vmem:[%s2198 + $0x78] sm:$0xff]
    %v3075 = vld [vmem:[%s2198 + $0x80] sm:$0xff]
    %v3076 = vld [vmem:[%s2198 + $0x88] sm:$0xff]
    %v3077 = vld [vmem:[%s2198 + $0x90] sm:$0xff]
    %v3078 = vld [vmem:[%s2198 + $0x98] sm:$0xff]
    %v3079 = vld [vmem:[%s2198 + $0xa0] sm:$0xff]
    %v3080 = vld [vmem:[%s2198 + $0xa8] sm:$0xff]
    %v3081 = vld [vmem:[%s2198 + $0xb0] sm:$0xff]
    %v3082 = vld [vmem:[%s2198 + $0xb8] sm:$0xff]
    %v3083 = vld [vmem:[%s2198 + $0xc0] sm:$0xff]
    %v3084 = vld [vmem:[%s2198 + $0xc8] sm:$0xff]
    %v3085 = vld [vmem:[%s2198 + $0xd0] sm:$0xff]
    %v3086 = vld [vmem:[%s2198 + $0xd8] sm:$0xff]
    %v3087 = vld [vmem:[%s2198 + $0xe0] sm:$0xff]
    %v3088 = vld [vmem:[%s2198 + $0xe8] sm:$0xff]
    %v3089 = vld [vmem:[%s2198 + $0xf0] sm:$0xff]
    %v3090 = vld [vmem:[%s2198 + $0xf8] sm:$0xff]
    %v3091 = vrot.slane %v1766, 4
    %v3092 = vrot.slane %v1767, 4
    %3095 = vmatprep.subr.mxu0 0.0
    %3096 = vmatpush1.msra.mxu0 %v3074
    %3097 = vmatprep.subr.mxu0 0.0
    %3098 = vmatpush1.msra.mxu0 %v3073
    %3099 = vmatprep.subr.mxu0 0.0
    %3100 = vmatpush1.msra.mxu0 %v3072
    %3101 = vmatprep.subr.mxu0 0.0
    %3102 = vmatpush1.msra.mxu0 %v3071
    %3103 = vmatprep.subr.mxu0 0.0
    %3104 = vmatpush1.msra.mxu0 %v3070
    %3105 = vmatprep.subr.mxu0 0.0
    %3106 = vmatpush1.msra.mxu0 %v3069
    %3107 = vmatprep.subr.mxu0 0.0
    %3108 = vmatpush1.msra.mxu0 %v3068
    %3109 = vmatprep.subr.mxu0 0.0
    %3110 = vmatpush1.msra.mxu0 %v3067
    %3111 = vmatprep.subr.mxu0 0.0
    %3112 = vmatpush1.msra.mxu0 %v3066
    %3113 = vmatprep.subr.mxu0 0.0
    %3114 = vmatpush1.msra.mxu0 %v3065
    %3115 = vmatprep.subr.mxu0 0.0
    %3116 = vmatpush1.msra.mxu0 %v3064
    %3117 = vmatprep.subr.mxu0 0.0
    %3118 = vmatpush1.msra.mxu0 %v3063
    %3119 = vmatprep.subr.mxu0 0.0
    %3120 = vmatpush1.msra.mxu0 %v3062
    %3121 = vmatprep.subr.mxu0 0.0
    %3122 = vmatpush1.msra.mxu0 %v3061
    %3123 = vmatprep.subr.mxu0 0.0
    %3124 = vmatpush1.msra.mxu0 %v3060
    %3125 = vmatprep.subr.mxu0 0.0
    %3126 = vmatpush1.msra.mxu0 %v3059
    %3127 = vmatprep.subr.mxu0 0.0
    %3128 = vmatpush2.msra.mxu0 %v3090
    %3129 = vmatprep.subr.mxu0 0.0
    %3130 = vmatpush2.msra.mxu0 %v3089
    %3131 = vmatprep.subr.mxu0 0.0
    %3132 = vmatpush2.msra.mxu0 %v3088
    %3133 = vmatprep.subr.mxu0 0.0
    %3134 = vmatpush2.msra.mxu0 %v3087
    %3135 = vmatprep.subr.mxu0 0.0
    %3136 = vmatpush2.msra.mxu0 %v3086
    %3137 = vmatprep.subr.mxu0 0.0
    %3138 = vmatpush2.msra.mxu0 %v3085
    %3139 = vmatprep.subr.mxu0 0.0
    %3140 = vmatpush2.msra.mxu0 %v3084
    %3141 = vmatprep.subr.mxu0 0.0
    %3142 = vmatpush2.msra.mxu0 %v3083
    %3143 = vmatprep.subr.mxu0 0.0
    %3144 = vmatpush2.msra.mxu0 %v3082
    %3145 = vmatprep.subr.mxu0 0.0
    %3146 = vmatpush2.msra.mxu0 %v3081
    %3147 = vmatprep.subr.mxu0 0.0
    %3148 = vmatpush2.msra.mxu0 %v3080
    %3149 = vmatprep.subr.mxu0 0.0
    %3150 = vmatpush2.msra.mxu0 %v3079
    %3151 = vmatprep.subr.mxu0 0.0
    %3152 = vmatpush2.msra.mxu0 %v3078
    %3153 = vmatprep.subr.mxu0 0.0
    %3154 = vmatpush2.msra.mxu0 %v3077
    %3155 = vmatprep.subr.mxu0 0.0
    %3156 = vmatpush2.msra.mxu0 %v3076
    %3157 = vmatprep.subr.mxu0 0.0
    %3158 = vmatpush2.msra.mxu0 %v3075
    %3159 = vmatprep.mubr.f32.mxu0 %v3092
    %3160 = vmatmul.mubr.f32.gmra.mxu0 %v3091
    %v3161 = vpop.f32.mrf.mxu0
    %v3162 = vadd.f32 0.0, %v3161
    %v3163 = vpop.f32.mrf.mxu0
    %3164 = vdwg.mxu0
    %v3165 = vadd.f32 %v3058, %v3162
    %v3166 = vld [vmem:[%s2306] sm:$0xff]
    %v3167 = vld [vmem:[%s2306 + $0x8] sm:$0xff]
    %v3168 = vld [vmem:[%s2306 + $0x10] sm:$0xff]
    %v3169 = vld [vmem:[%s2306 + $0x18] sm:$0xff]
    %v3170 = vld [vmem:[%s2306 + $0x20] sm:$0xff]
    %v3171 = vld [vmem:[%s2306 + $0x28] sm:$0xff]
    %v3172 = vld [vmem:[%s2306 + $0x30] sm:$0xff]
    %v3173 = vld [vmem:[%s2306 + $0x38] sm:$0xff]
    %v3174 = vld [vmem:[%s2306 + $0x40] sm:$0xff]
    %v3175 = vld [vmem:[%s2306 + $0x48] sm:$0xff]
    %v3176 = vld [vmem:[%s2306 + $0x50] sm:$0xff]
    %v3177 = vld [vmem:[%s2306 + $0x58] sm:$0xff]
    %v3178 = vld [vmem:[%s2306 + $0x60] sm:$0xff]
    %v3179 = vld [vmem:[%s2306 + $0x68] sm:$0xff]
    %v3180 = vld [vmem:[%s2306 + $0x70] sm:$0xff]
    %v3181 = vld [vmem:[%s2306 + $0x78] sm:$0xff]
    %v3182 = vld [vmem:[%s2306 + $0x80] sm:$0xff]
    %v3183 = vld [vmem:[%s2306 + $0x88] sm:$0xff]
    %v3184 = vld [vmem:[%s2306 + $0x90] sm:$0xff]
    %v3185 = vld [vmem:[%s2306 + $0x98] sm:$0xff]
    %v3186 = vld [vmem:[%s2306 + $0xa0] sm:$0xff]
    %v3187 = vld [vmem:[%s2306 + $0xa8] sm:$0xff]
    %v3188 = vld [vmem:[%s2306 + $0xb0] sm:$0xff]
    %v3189 = vld [vmem:[%s2306 + $0xb8] sm:$0xff]
    %v3190 = vld [vmem:[%s2306 + $0xc0] sm:$0xff]
    %v3191 = vld [vmem:[%s2306 + $0xc8] sm:$0xff]
    %v3192 = vld [vmem:[%s2306 + $0xd0] sm:$0xff]
    %v3193 = vld [vmem:[%s2306 + $0xd8] sm:$0xff]
    %v3194 = vld [vmem:[%s2306 + $0xe0] sm:$0xff]
    %v3195 = vld [vmem:[%s2306 + $0xe8] sm:$0xff]
    %v3196 = vld [vmem:[%s2306 + $0xf0] sm:$0xff]
    %v3197 = vld [vmem:[%s2306 + $0xf8] sm:$0xff]
    %v3198 = vrot.slane %v1766, 5
    %v3199 = vrot.slane %v1767, 5
    %3202 = vmatprep.subr.mxu0 0.0
    %3203 = vmatpush1.msra.mxu0 %v3181
    %3204 = vmatprep.subr.mxu0 0.0
    %3205 = vmatpush1.msra.mxu0 %v3180
    %3206 = vmatprep.subr.mxu0 0.0
    %3207 = vmatpush1.msra.mxu0 %v3179
    %3208 = vmatprep.subr.mxu0 0.0
    %3209 = vmatpush1.msra.mxu0 %v3178
    %3210 = vmatprep.subr.mxu0 0.0
    %3211 = vmatpush1.msra.mxu0 %v3177
    %3212 = vmatprep.subr.mxu0 0.0
    %3213 = vmatpush1.msra.mxu0 %v3176
    %3214 = vmatprep.subr.mxu0 0.0
    %3215 = vmatpush1.msra.mxu0 %v3175
    %3216 = vmatprep.subr.mxu0 0.0
    %3217 = vmatpush1.msra.mxu0 %v3174
    %3218 = vmatprep.subr.mxu0 0.0
    %3219 = vmatpush1.msra.mxu0 %v3173
    %3220 = vmatprep.subr.mxu0 0.0
    %3221 = vmatpush1.msra.mxu0 %v3172
    %3222 = vmatprep.subr.mxu0 0.0
    %3223 = vmatpush1.msra.mxu0 %v3171
    %3224 = vmatprep.subr.mxu0 0.0
    %3225 = vmatpush1.msra.mxu0 %v3170
    %3226 = vmatprep.subr.mxu0 0.0
    %3227 = vmatpush1.msra.mxu0 %v3169
    %3228 = vmatprep.subr.mxu0 0.0
    %3229 = vmatpush1.msra.mxu0 %v3168
    %3230 = vmatprep.subr.mxu0 0.0
    %3231 = vmatpush1.msra.mxu0 %v3167
    %3232 = vmatprep.subr.mxu0 0.0
    %3233 = vmatpush1.msra.mxu0 %v3166
    %3234 = vmatprep.subr.mxu0 0.0
    %3235 = vmatpush2.msra.mxu0 %v3197
    %3236 = vmatprep.subr.mxu0 0.0
    %3237 = vmatpush2.msra.mxu0 %v3196
    %3238 = vmatprep.subr.mxu0 0.0
    %3239 = vmatpush2.msra.mxu0 %v3195
    %3240 = vmatprep.subr.mxu0 0.0
    %3241 = vmatpush2.msra.mxu0 %v3194
    %3242 = vmatprep.subr.mxu0 0.0
    %3243 = vmatpush2.msra.mxu0 %v3193
    %3244 = vmatprep.subr.mxu0 0.0
    %3245 = vmatpush2.msra.mxu0 %v3192
    %3246 = vmatprep.subr.mxu0 0.0
    %3247 = vmatpush2.msra.mxu0 %v3191
    %3248 = vmatprep.subr.mxu0 0.0
    %3249 = vmatpush2.msra.mxu0 %v3190
    %3250 = vmatprep.subr.mxu0 0.0
    %3251 = vmatpush2.msra.mxu0 %v3189
    %3252 = vmatprep.subr.mxu0 0.0
    %3253 = vmatpush2.msra.mxu0 %v3188
    %3254 = vmatprep.subr.mxu0 0.0
    %3255 = vmatpush2.msra.mxu0 %v3187
    %3256 = vmatprep.subr.mxu0 0.0
    %3257 = vmatpush2.msra.mxu0 %v3186
    %3258 = vmatprep.subr.mxu0 0.0
    %3259 = vmatpush2.msra.mxu0 %v3185
    %3260 = vmatprep.subr.mxu0 0.0
    %3261 = vmatpush2.msra.mxu0 %v3184
    %3262 = vmatprep.subr.mxu0 0.0
    %3263 = vmatpush2.msra.mxu0 %v3183
    %3264 = vmatprep.subr.mxu0 0.0
    %3265 = vmatpush2.msra.mxu0 %v3182
    %3266 = vmatprep.mubr.f32.mxu0 %v3199
    %3267 = vmatmul.mubr.f32.gmra.mxu0 %v3198
    %v3268 = vpop.f32.mrf.mxu0
    %v3269 = vadd.f32 0.0, %v3268
    %v3270 = vpop.f32.mrf.mxu0
    %3271 = vdwg.mxu0
    %v3272 = vadd.f32 %v3165, %v3269
    %v3273 = vld [vmem:[%s2414] sm:$0xff]
    %v3274 = vld [vmem:[%s2414 + $0x8] sm:$0xff]
    %v3275 = vld [vmem:[%s2414 + $0x10] sm:$0xff]
    %v3276 = vld [vmem:[%s2414 + $0x18] sm:$0xff]
    %v3277 = vld [vmem:[%s2414 + $0x20] sm:$0xff]
    %v3278 = vld [vmem:[%s2414 + $0x28] sm:$0xff]
    %v3279 = vld [vmem:[%s2414 + $0x30] sm:$0xff]
    %v3280 = vld [vmem:[%s2414 + $0x38] sm:$0xff]
    %v3281 = vld [vmem:[%s2414 + $0x40] sm:$0xff]
    %v3282 = vld [vmem:[%s2414 + $0x48] sm:$0xff]
    %v3283 = vld [vmem:[%s2414 + $0x50] sm:$0xff]
    %v3284 = vld [vmem:[%s2414 + $0x58] sm:$0xff]
    %v3285 = vld [vmem:[%s2414 + $0x60] sm:$0xff]
    %v3286 = vld [vmem:[%s2414 + $0x68] sm:$0xff]
    %v3287 = vld [vmem:[%s2414 + $0x70] sm:$0xff]
    %v3288 = vld [vmem:[%s2414 + $0x78] sm:$0xff]
    %v3289 = vld [vmem:[%s2414 + $0x80] sm:$0xff]
    %v3290 = vld [vmem:[%s2414 + $0x88] sm:$0xff]
    %v3291 = vld [vmem:[%s2414 + $0x90] sm:$0xff]
    %v3292 = vld [vmem:[%s2414 + $0x98] sm:$0xff]
    %v3293 = vld [vmem:[%s2414 + $0xa0] sm:$0xff]
    %v3294 = vld [vmem:[%s2414 + $0xa8] sm:$0xff]
    %v3295 = vld [vmem:[%s2414 + $0xb0] sm:$0xff]
    %v3296 = vld [vmem:[%s2414 + $0xb8] sm:$0xff]
    %v3297 = vld [vmem:[%s2414 + $0xc0] sm:$0xff]
    %v3298 = vld [vmem:[%s2414 + $0xc8] sm:$0xff]
    %v3299 = vld [vmem:[%s2414 + $0xd0] sm:$0xff]
    %v3300 = vld [vmem:[%s2414 + $0xd8] sm:$0xff]
    %v3301 = vld [vmem:[%s2414 + $0xe0] sm:$0xff]
    %v3302 = vld [vmem:[%s2414 + $0xe8] sm:$0xff]
    %v3303 = vld [vmem:[%s2414 + $0xf0] sm:$0xff]
    %v3304 = vld [vmem:[%s2414 + $0xf8] sm:$0xff]
    %v3305 = vrot.slane %v1766, 6
    %v3306 = vrot.slane %v1767, 6
    %3309 = vmatprep.subr.mxu0 0.0
    %3310 = vmatpush1.msra.mxu0 %v3288
    %3311 = vmatprep.subr.mxu0 0.0
    %3312 = vmatpush1.msra.mxu0 %v3287
    %3313 = vmatprep.subr.mxu0 0.0
    %3314 = vmatpush1.msra.mxu0 %v3286
    %3315 = vmatprep.subr.mxu0 0.0
    %3316 = vmatpush1.msra.mxu0 %v3285
    %3317 = vmatprep.subr.mxu0 0.0
    %3318 = vmatpush1.msra.mxu0 %v3284
    %3319 = vmatprep.subr.mxu0 0.0
    %3320 = vmatpush1.msra.mxu0 %v3283
    %3321 = vmatprep.subr.mxu0 0.0
    %3322 = vmatpush1.msra.mxu0 %v3282
    %3323 = vmatprep.subr.mxu0 0.0
    %3324 = vmatpush1.msra.mxu0 %v3281
    %3325 = vmatprep.subr.mxu0 0.0
    %3326 = vmatpush1.msra.mxu0 %v3280
    %3327 = vmatprep.subr.mxu0 0.0
    %3328 = vmatpush1.msra.mxu0 %v3279
    %3329 = vmatprep.subr.mxu0 0.0
    %3330 = vmatpush1.msra.mxu0 %v3278
    %3331 = vmatprep.subr.mxu0 0.0
    %3332 = vmatpush1.msra.mxu0 %v3277
    %3333 = vmatprep.subr.mxu0 0.0
    %3334 = vmatpush1.msra.mxu0 %v3276
    %3335 = vmatprep.subr.mxu0 0.0
    %3336 = vmatpush1.msra.mxu0 %v3275
    %3337 = vmatprep.subr.mxu0 0.0
    %3338 = vmatpush1.msra.mxu0 %v3274
    %3339 = vmatprep.subr.mxu0 0.0
    %3340 = vmatpush1.msra.mxu0 %v3273
    %3341 = vmatprep.subr.mxu0 0.0
    %3342 = vmatpush2.msra.mxu0 %v3304
    %3343 = vmatprep.subr.mxu0 0.0
    %3344 = vmatpush2.msra.mxu0 %v3303
    %3345 = vmatprep.subr.mxu0 0.0
    %3346 = vmatpush2.msra.mxu0 %v3302
    %3347 = vmatprep.subr.mxu0 0.0
    %3348 = vmatpush2.msra.mxu0 %v3301
    %3349 = vmatprep.subr.mxu0 0.0
    %3350 = vmatpush2.msra.mxu0 %v3300
    %3351 = vmatprep.subr.mxu0 0.0
    %3352 = vmatpush2.msra.mxu0 %v3299
    %3353 = vmatprep.subr.mxu0 0.0
    %3354 = vmatpush2.msra.mxu0 %v3298
    %3355 = vmatprep.subr.mxu0 0.0
    %3356 = vmatpush2.msra.mxu0 %v3297
    %3357 = vmatprep.subr.mxu0 0.0
    %3358 = vmatpush2.msra.mxu0 %v3296
    %3359 = vmatprep.subr.mxu0 0.0
    %3360 = vmatpush2.msra.mxu0 %v3295
    %3361 = vmatprep.subr.mxu0 0.0
    %3362 = vmatpush2.msra.mxu0 %v3294
    %3363 = vmatprep.subr.mxu0 0.0
    %3364 = vmatpush2.msra.mxu0 %v3293
    %3365 = vmatprep.subr.mxu0 0.0
    %3366 = vmatpush2.msra.mxu0 %v3292
    %3367 = vmatprep.subr.mxu0 0.0
    %3368 = vmatpush2.msra.mxu0 %v3291
    %3369 = vmatprep.subr.mxu0 0.0
    %3370 = vmatpush2.msra.mxu0 %v3290
    %3371 = vmatprep.subr.mxu0 0.0
    %3372 = vmatpush2.msra.mxu0 %v3289
    %3373 = vmatprep.mubr.f32.mxu0 %v3306
    %3374 = vmatmul.mubr.f32.gmra.mxu0 %v3305
    %v3375 = vpop.f32.mrf.mxu0
    %v3376 = vadd.f32 0.0, %v3375
    %v3377 = vpop.f32.mrf.mxu0
    %3378 = vdwg.mxu0
    %v3379 = vadd.f32 %v3272, %v3376
    %v3380 = vld [vmem:[%s2522] sm:$0xff]
    %v3381 = vld [vmem:[%s2522 + $0x8] sm:$0xff]
    %v3382 = vld [vmem:[%s2522 + $0x10] sm:$0xff]
    %v3383 = vld [vmem:[%s2522 + $0x18] sm:$0xff]
    %v3384 = vld [vmem:[%s2522 + $0x20] sm:$0xff]
    %v3385 = vld [vmem:[%s2522 + $0x28] sm:$0xff]
    %v3386 = vld [vmem:[%s2522 + $0x30] sm:$0xff]
    %v3387 = vld [vmem:[%s2522 + $0x38] sm:$0xff]
    %v3388 = vld [vmem:[%s2522 + $0x40] sm:$0xff]
    %v3389 = vld [vmem:[%s2522 + $0x48] sm:$0xff]
    %v3390 = vld [vmem:[%s2522 + $0x50] sm:$0xff]
    %v3391 = vld [vmem:[%s2522 + $0x58] sm:$0xff]
    %v3392 = vld [vmem:[%s2522 + $0x60] sm:$0xff]
    %v3393 = vld [vmem:[%s2522 + $0x68] sm:$0xff]
    %v3394 = vld [vmem:[%s2522 + $0x70] sm:$0xff]
    %v3395 = vld [vmem:[%s2522 + $0x78] sm:$0xff]
    %v3396 = vld [vmem:[%s2522 + $0x80] sm:$0xff]
    %v3397 = vld [vmem:[%s2522 + $0x88] sm:$0xff]
    %v3398 = vld [vmem:[%s2522 + $0x90] sm:$0xff]
    %v3399 = vld [vmem:[%s2522 + $0x98] sm:$0xff]
    %v3400 = vld [vmem:[%s2522 + $0xa0] sm:$0xff]
    %v3401 = vld [vmem:[%s2522 + $0xa8] sm:$0xff]
    %v3402 = vld [vmem:[%s2522 + $0xb0] sm:$0xff]
    %v3403 = vld [vmem:[%s2522 + $0xb8] sm:$0xff]
    %v3404 = vld [vmem:[%s2522 + $0xc0] sm:$0xff]
    %v3405 = vld [vmem:[%s2522 + $0xc8] sm:$0xff]
    %v3406 = vld [vmem:[%s2522 + $0xd0] sm:$0xff]
    %v3407 = vld [vmem:[%s2522 + $0xd8] sm:$0xff]
    %v3408 = vld [vmem:[%s2522 + $0xe0] sm:$0xff]
    %v3409 = vld [vmem:[%s2522 + $0xe8] sm:$0xff]
    %v3410 = vld [vmem:[%s2522 + $0xf0] sm:$0xff]
    %v3411 = vld [vmem:[%s2522 + $0xf8] sm:$0xff]
    %v3412 = vrot.slane %v1766, 7
    %v3413 = vrot.slane %v1767, 7
    %3416 = vmatprep.subr.mxu0 0.0
    %3417 = vmatpush1.msra.mxu0 %v3395
    %3418 = vmatprep.subr.mxu0 0.0
    %3419 = vmatpush1.msra.mxu0 %v3394
    %3420 = vmatprep.subr.mxu0 0.0
    %3421 = vmatpush1.msra.mxu0 %v3393
    %3422 = vmatprep.subr.mxu0 0.0
    %3423 = vmatpush1.msra.mxu0 %v3392
    %3424 = vmatprep.subr.mxu0 0.0
    %3425 = vmatpush1.msra.mxu0 %v3391
    %3426 = vmatprep.subr.mxu0 0.0
    %3427 = vmatpush1.msra.mxu0 %v3390
    %3428 = vmatprep.subr.mxu0 0.0
    %3429 = vmatpush1.msra.mxu0 %v3389
    %3430 = vmatprep.subr.mxu0 0.0
    %3431 = vmatpush1.msra.mxu0 %v3388
    %3432 = vmatprep.subr.mxu0 0.0
    %3433 = vmatpush1.msra.mxu0 %v3387
    %3434 = vmatprep.subr.mxu0 0.0
    %3435 = vmatpush1.msra.mxu0 %v3386
    %3436 = vmatprep.subr.mxu0 0.0
    %3437 = vmatpush1.msra.mxu0 %v3385
    %3438 = vmatprep.subr.mxu0 0.0
    %3439 = vmatpush1.msra.mxu0 %v3384
    %3440 = vmatprep.subr.mxu0 0.0
    %3441 = vmatpush1.msra.mxu0 %v3383
    %3442 = vmatprep.subr.mxu0 0.0
    %3443 = vmatpush1.msra.mxu0 %v3382
    %3444 = vmatprep.subr.mxu0 0.0
    %3445 = vmatpush1.msra.mxu0 %v3381
    %3446 = vmatprep.subr.mxu0 0.0
    %3447 = vmatpush1.msra.mxu0 %v3380
    %3448 = vmatprep.subr.mxu0 0.0
    %3449 = vmatpush2.msra.mxu0 %v3411
    %3450 = vmatprep.subr.mxu0 0.0
    %3451 = vmatpush2.msra.mxu0 %v3410
    %3452 = vmatprep.subr.mxu0 0.0
    %3453 = vmatpush2.msra.mxu0 %v3409
    %3454 = vmatprep.subr.mxu0 0.0
    %3455 = vmatpush2.msra.mxu0 %v3408
    %3456 = vmatprep.subr.mxu0 0.0
    %3457 = vmatpush2.msra.mxu0 %v3407
    %3458 = vmatprep.subr.mxu0 0.0
    %3459 = vmatpush2.msra.mxu0 %v3406
    %3460 = vmatprep.subr.mxu0 0.0
    %3461 = vmatpush2.msra.mxu0 %v3405
    %3462 = vmatprep.subr.mxu0 0.0
    %3463 = vmatpush2.msra.mxu0 %v3404
    %3464 = vmatprep.subr.mxu0 0.0
    %3465 = vmatpush2.msra.mxu0 %v3403
    %3466 = vmatprep.subr.mxu0 0.0
    %3467 = vmatpush2.msra.mxu0 %v3402
    %3468 = vmatprep.subr.mxu0 0.0
    %3469 = vmatpush2.msra.mxu0 %v3401
    %3470 = vmatprep.subr.mxu0 0.0
    %3471 = vmatpush2.msra.mxu0 %v3400
    %3472 = vmatprep.subr.mxu0 0.0
    %3473 = vmatpush2.msra.mxu0 %v3399
    %3474 = vmatprep.subr.mxu0 0.0
    %3475 = vmatpush2.msra.mxu0 %v3398
    %3476 = vmatprep.subr.mxu0 0.0
    %3477 = vmatpush2.msra.mxu0 %v3397
    %3478 = vmatprep.subr.mxu0 0.0
    %3479 = vmatpush2.msra.mxu0 %v3396
    %3480 = vmatprep.mubr.f32.mxu0 %v3413
    %3481 = vmatmul.mubr.f32.gmra.mxu0 %v3412
    %v3482 = vpop.f32.mrf.mxu0
    %v3483 = vadd.f32 0.0, %v3482
    %v3484 = vpop.f32.mrf.mxu0
    %3485 = vdwg.mxu0
    %v3486 = vadd.f32 %v3379, %v3483
    %3487 = vst.msk [vmem:[#allocation8 + $0x1] sm:$0x1] %vm2630, %v3486
    // Predicated region
    $region38: #{forward.1} parent=1 // pred_check
      _
    $region39: #{forward.1} parent=1 // pred_check_branch
      %3489 = sbr.rel (0) target = $region41
    $region40: #{forward.1} parent=1 // pred_region
      %s3491 = ssub.s32 32, 32
      %3492 = vsyncadd [#allocation4], %s3491
      %s3494 = sshll.u32 [#allocation8], 4
      %s3495 = int_to_ptr.vmem [resolvable:$true] %s3494
      %3497 = dma.vmem_to_hbm [thread:$0]  %s3495, 32, %s6, [#allocation4]
    $region41: #{forward.1} parent=1 // pred_fallthru
      _
    // Predicated region
    $region42: #{forward.1} parent=1 // pred_check
      _
    $region43: #{forward.1} parent=1 // pred_check_branch
      %3499 = sbr.rel (0) target = $region45
    $region44: #{forward.1} parent=1 // pred_region
      %3500 = dma.done [#allocation4], 32
    $region45: #{forward.1} parent=1 // pred_fallthru
      _
    %3501 = vsyncpa [#allocation3], 1
    %3502 = vsyncpa [#allocation6], 1
    %3503 = vsyncpa [#allocation4], 1

</llo_original>
